<compile_context>
chip_gen: v6e
topology: v6e:2x2x1
jax: 0.10.0
libtpu: 0.0.40
codegen_flags: <defaults>
</compile_context>

<pallas_src>
import functools
import math

import jax
import jax.numpy as jnp
from jax.experimental import pallas as pl
from jax.experimental.pallas import tpu as pltpu

_LN_EPS = 1e-5
_SLOT = 128  # lane width of one slab slot

_MAT_NAMES = ("sa_wqkv", "sa_wo", "tg_wqkv", "tg_wo", "ca_wq", "ca_wkv", "ca_wo",
              "dg_w", "up_w", "fc1_w", "fc2_w")
_VEC_NAMES = ("sa_bqkv", "sa_bo", "tg_bqkv", "tg_bo", "ca_bq", "ca_bkv", "ca_bo",
              "dg_b", "up_b", "fc1_b", "fc2_b",
              "sa_ln_g", "sa_ln_b", "ca_ln_g", "ca_ln_b",
              "f_ln_g", "f_ln_b", "tg_ln_g", "tg_ln_b")


# -----------------------------------------------------------------------------
# In-kernel helpers (traced into the single fused kernel)
# -----------------------------------------------------------------------------
def _layernorm(x, g, b):
    mu = jnp.mean(x, axis=-1, keepdims=True)
    xc = x - mu
    var = jnp.mean(xc * xc, axis=-1, keepdims=True)
    return xc * jax.lax.rsqrt(var + _LN_EPS) * g + b


def _mha(q, k, v, mask, num_heads, wo, bo, cdt):
    """Multi-head attention + single fused output projection.

    q:(N,D) k,v:(M,D) f32 activations; mask:(N,M) additive f32 (block-diag over batch);
    wo:(D,Dout) compute-dtype weight slice; bo:(1,Dout) f32 bias.

    * No transposes: scores via dot_general contracting the feature dim.
    * All heads' scores stacked along sublanes -> ONE softmax (max/exp/sum/recip).
    * Per-head contexts concatenated into lane slices -> ONE (N,D)@(D,Dout) out-proj.
    """
    N, D = q.shape
    dh = D // num_heads
    qc, kc, vc = q.astype(cdt), k.astype(cdt), v.astype(cdt)
    dn = (((1,), (1,)), ((), ()))      # contract feature dims, no batch dims
    parts = []
    for h in range(num_heads):
        sl = slice(h * dh, (h + 1) * dh)
        s_h = jax.lax.dot_general(qc[:, sl], kc[:, sl], dn,
                                  preferred_element_type=jnp.float32)
        parts.append(s_h + mask)
    s = jnp.concatenate(parts, axis=0)                      # (H*N, M)
    s = s - jnp.max(s, axis=-1, keepdims=True)
    p = jnp.exp(s)
    p = p * pl.reciprocal(jnp.sum(p, axis=-1, keepdims=True), approx=True)
    p = p.astype(cdt)
    ctx = jnp.concatenate(
        [jnp.dot(p[h * N:(h + 1) * N, :], vc[:, h * dh:(h + 1) * dh],
                 preferred_element_type=jnp.float32)
         for h in range(num_heads)], axis=-1)               # (N, D)
    return jnp.dot(ctx.astype(cdt), wo, preferred_element_type=jnp.float32) + bo


# -----------------------------------------------------------------------------
# The fused decoder-layer kernel (one grid step == one batch block)
# -----------------------------------------------------------------------------
def _decoder_layer_kernel(
    hs_ref, enc_ref, m_sa_ref, m_tg_ref, m_ca_ref, w_ref, vec_ref,
    out_ref, sk_ref, sv_ref, tk_ref, tv_ref, ck_ref, cv_ref,
    *, num_heads, tg_num_heads, embed_dim, proj_size, up_scale,
    compute_dtype, mat_layout, vec_layout,
):
    E, P = embed_dim, proj_size
    cdt = compute_dtype

    def W(name):  # static slice of the matrix slab (compute dtype)
        r, off, c = mat_layout[name]
        return w_ref[0:r, off:off + c]

    def V(name):  # static slice of the vector slab, shaped (1, width), f32
        row, c = vec_layout[name]
        return vec_ref[row:row + 1, 0:c]

    hs = hs_ref[0].astype(jnp.float32)        # (N, E) rows = batch_block * T
    hs_c = hs.astype(cdt)
    m_sa = m_sa_ref[0]
    m_tg = m_tg_ref[0]
    m_ca = m_ca_ref[0]

    # ---- self attention (q-scaling folded into sa_wqkv / sa_bqkv) ----
    qkv = jnp.dot(hs_c, W("sa_wqkv"), preferred_element_type=jnp.float32) + V("sa_bqkv")
    k_sa = qkv[:, E:2 * E]
    v_sa = qkv[:, 2 * E:]
    sk_ref[0] = k_sa.astype(sk_ref.dtype)     # lane-dense K/V slabs (no per-head stores)
    sv_ref[0] = v_sa.astype(sv_ref.dtype)
    hs1 = _mha(qkv[:, :E], k_sa, v_sa, m_sa, num_heads, W("sa_wo"), V("sa_bo"), cdt)

    # ---- tg bypass branch (impl == 4: adapter + residual + LN + sigmoid gate) ----
    dg = jnp.dot(hs_c, W("dg_w"), preferred_element_type=jnp.float32) + V("dg_b")
    bypass = dg[:, :P]                        # down_proj(hidden_states)
    gating = jax.nn.sigmoid(dg[:, P:])        # tg_gating(residual)
    tg_qkv = (jnp.dot(bypass.astype(cdt), W("tg_wqkv"),
                      preferred_element_type=jnp.float32) + V("tg_bqkv"))
    k_tg = tg_qkv[:, P:2 * P]
    v_tg = tg_qkv[:, 2 * P:]
    tk_ref[0] = k_tg.astype(tk_ref.dtype)
    tv_ref[0] = v_tg.astype(tv_ref.dtype)
    hs2 = _mha(tg_qkv[:, :P], k_tg, v_tg, m_tg, tg_num_heads, W("tg_wo"), V("tg_bo"), cdt)
    hs2 = hs2 + bypass                                            # impl >= 2
    hs2 = _layernorm(hs2, V("tg_ln_g"), V("tg_ln_b"))             # impl >= 3
    hs2 = jnp.dot(hs2.astype(cdt), W("up_w"), preferred_element_type=jnp.float32) + V("up_b")
    hs2 = gating * (hs2 * up_scale)                               # impl >= 4

    h = hs + hs1 + hs2
    h = _layernorm(h, V("sa_ln_g"), V("sa_ln_b"))

    # ---- cross attention (use_external_feature = False) ----
    enc_c = enc_ref[0].astype(cdt)            # (M, E) rows = batch_block * S
    q = jnp.dot(h.astype(cdt), W("ca_wq"), preferred_element_type=jnp.float32) + V("ca_bq")
    kv = jnp.dot(enc_c, W("ca_wkv"), preferred_element_type=jnp.float32) + V("ca_bkv")
    k_ca = kv[:, :E]
    v_ca = kv[:, E:]
    ck_ref[0] = k_ca.astype(ck_ref.dtype)
    cv_ref[0] = v_ca.astype(cv_ref.dtype)
    ca_out = _mha(q, k_ca, v_ca, m_ca, num_heads, W("ca_wo"), V("ca_bo"), cdt)
    h = h + ca_out
    h = _layernorm(h, V("ca_ln_g"), V("ca_ln_b"))

    # ---- feed-forward (gelu_new == tanh GELU) ----
    f = jnp.dot(h.astype(cdt), W("fc1_w"), preferred_element_type=jnp.float32) + V("fc1_b")
    f = jax.nn.gelu(f, approximate=True)
    h = h + jnp.dot(f.astype(cdt), W("fc2_w"), preferred_element_type=jnp.float32) + V("fc2_b")
    h = _layernorm(h, V("f_ln_g"), V("f_ln_b"))
    out_ref[0] = h.astype(out_ref.dtype)


# -----------------------------------------------------------------------------
# Mask helper: build compact block-diagonal additive masks (no size-1 head dim)
# -----------------------------------------------------------------------------
def _block_diag_mask(mask, batch_block, neg=-1e9):
    """mask: (B, 1, T, S) additive -> (B//Bb, Bb*T, Bb*S) with -inf off the batch diagonal."""
    B, _, T, S = mask.shape
    nb = B // batch_block
    m = mask.reshape(nb, batch_block, T, S).astype(jnp.float32)
    same = jnp.eye(batch_block, dtype=jnp.bool_)[None, :, None, :, None]
    full = jnp.where(same, m[:, :, :, None, :], jnp.float32(neg))
    return full.reshape(nb, batch_block * T, batch_block * S)


# -----------------------------------------------------------------------------
# Wrapper: one pallas_call for the whole layer
# -----------------------------------------------------------------------------
def bart_decoder_layer_forward(
    packed_params,             # (w_slab, v_slab, mat_layout, vec_layout) from pack_params
    hidden_states,             # (B, T, E)
    attention_mask,            # tuple: (self-attn mask, tg-bypass mask), each (B, 1, T, T)
    encoder_hidden_states,     # (B, S, E)
    encoder_attention_mask,    # (B, 1, T, S)
    *,
    num_heads,
    tg_num_heads,
    proj_size,
    scale,
    batch_block=None,          # default: whole batch in one grid step (best for v5e/v6e);
                               # set to B//2 on v7x to occupy both TensorCores.
):
    w_slab, v_slab, mat_layout, vec_layout = packed_params
    B, T, E = hidden_states.shape
    S = encoder_hidden_states.shape[1]
    P = proj_size
    dtype = hidden_states.dtype
    cdt = w_slab.dtype

    Bb = B if batch_block is None else batch_block
    assert B % Bb == 0
    NB = B // Bb
    N, M = Bb * T, Bb * S

    mask_sa, mask_tg = attention_mask if attention_mask is not None else (None, None)
    if mask_sa is None:
        mask_sa = jnp.zeros((B, 1, T, T), jnp.float32)
    if mask_tg is None:
        mask_tg = jnp.zeros((B, 1, T, T), jnp.float32)
    if encoder_attention_mask is None:
        encoder_attention_mask = jnp.zeros((B, 1, T, S), jnp.float32)

    m_sa = _block_diag_mask(mask_sa, Bb)
    m_tg = _block_diag_mask(mask_tg, Bb)
    m_ca = _block_diag_mask(encoder_attention_mask, Bb)

    hs3 = hidden_states.reshape(NB, N, E)
    enc3 = encoder_hidden_states.reshape(NB, M, E)

    def blk_spec(shape):
        nd = len(shape)
        return pl.BlockSpec((1,) + tuple(shape[1:]),
                            lambda i, _nd=nd: (i,) + (0,) * (_nd - 1))

    def whole_spec(shape):
        nd = len(shape)
        return pl.BlockSpec(tuple(shape), lambda i, _nd=nd: (0,) * _nd)

    in_specs = [
        blk_spec(hs3.shape), blk_spec(enc3.shape),
        blk_spec(m_sa.shape), blk_spec(m_tg.shape), blk_spec(m_ca.shape),
        whole_spec(w_slab.shape), whole_spec(v_slab.shape),
    ]

    out_shape = (
        jax.ShapeDtypeStruct((NB, N, E), dtype),   # hidden_states
        jax.ShapeDtypeStruct((NB, N, E), dtype),   # self-attn K slab
        jax.ShapeDtypeStruct((NB, N, E), dtype),   # self-attn V slab
        jax.ShapeDtypeStruct((NB, N, P), dtype),   # tg-attn K slab
        jax.ShapeDtypeStruct((NB, N, P), dtype),   # tg-attn V slab
        jax.ShapeDtypeStruct((NB, M, E), dtype),   # cross-attn K slab
        jax.ShapeDtypeStruct((NB, M, E), dtype),   # cross-attn V slab
    )
    out_specs = tuple(blk_spec(s.shape) for s in out_shape)

    # advisory cost estimate (rough)
    ffn = mat_layout["fc1_w"][2]
    dh = E // num_heads
    tg_dh = P // tg_num_heads
    flops = 2 * B * (
        T * E * (3 * E + E + (P + E) + E + E + 2 * ffn)
        + S * E * (2 * E)
        + T * P * (3 * P + P + E)
        + 2 * num_heads * T * (T + S) * dh
        + 2 * tg_num_heads * T * T * tg_dh
    )
    transcendentals = B * (num_heads * T * (T + S) + tg_num_heads * T * T
                           + T * ffn + 2 * T * E)
    bytes_accessed = int(
        4 * (hs3.size + enc3.size + m_sa.size + m_tg.size + m_ca.size)
        + w_slab.size * w_slab.dtype.itemsize + v_slab.size * 4
        + 4 * sum(math.prod(s.shape) for s in out_shape)
    )

    kernel = functools.partial(
        _decoder_layer_kernel,
        num_heads=num_heads, tg_num_heads=tg_num_heads,
        embed_dim=E, proj_size=P, up_scale=float(scale),
        compute_dtype=cdt, mat_layout=mat_layout, vec_layout=vec_layout,
    )

    outs = pl.pallas_call(
        kernel,
        grid=(NB,),
        in_specs=in_specs,
        out_specs=out_specs,
        out_shape=out_shape,
        compiler_params=pltpu.CompilerParams(
            dimension_semantics=("parallel",),
            vmem_limit_bytes=8 * 1024 * 1024,
        ),
        cost_estimate=pl.CostEstimate(
            flops=int(flops), transcendentals=int(transcendentals),
            bytes_accessed=bytes_accessed),
    )(hs3, enc3, m_sa, m_tg, m_ca, w_slab, v_slab)

    h_out, sk, sv, tk, tv, ck, cv = outs
    hidden_out = h_out.reshape(B, T, E)

    def split_heads(slab, rows, heads):   # lane-dense slab -> (B, H, rows, dh) in the wrapper
        return jnp.transpose(slab.reshape(B, rows, heads, -1), (0, 2, 1, 3))

    sk = split_heads(sk, T, num_heads)
    sv = split_heads(sv, T, num_heads)
    tk = split_heads(tk, T, tg_num_heads)
    tv = split_heads(tv, T, tg_num_heads)
    ck = split_heads(ck, S, num_heads)
    cv = split_heads(cv, S, num_heads)

    present_key_value = ((sk, tk), (sv, tv), ck, cv)   # tuple(zip(pkv1, pkv2)) + cross pkv
    # TODO(synk): RPE branches ('simple'/'alibi'/'rope_seq'), external-feature cross-attn,
    # past_key_value concatenation, dropout and output_attentions are not exercised in this
    # static eval configuration.
    return hidden_out, present_key_value


# -----------------------------------------------------------------------------
# Parameter preparation
# -----------------------------------------------------------------------------
def fuse_params(p, *, num_heads, tg_num_heads, proj_size):
    """Fold q-scaling into Q weights/biases and concatenate QKV / KV / down|gate."""
    E = p["self_attn"]["wq"].shape[0]
    P = proj_size
    sc = (E // num_heads) ** -0.5
    tg_sc = (P // tg_num_heads) ** -0.5
    sa, tg, ca = p["self_attn"], p["tg_self_attn"], p["encoder_attn"]
    f = {
        "sa_wqkv": jnp.concatenate([sa["wq"] * sc, sa["wk"], sa["wv"]], axis=1),
        "sa_bqkv": jnp.concatenate([sa["bq"] * sc, sa["bk"], sa["bv"]]),
        "sa_wo": sa["wo"], "sa_bo": sa["bo"],
        "tg_wqkv": jnp.concatenate([tg["wq"] * tg_sc, tg["wk"], tg["wv"]], axis=1),
        "tg_bqkv": jnp.concatenate([tg["bq"] * tg_sc, tg["bk"], tg["bv"]]),
        "tg_wo": tg["wo"], "tg_bo": tg["bo"],
        "ca_wq": ca["wq"] * sc, "ca_bq": ca["bq"] * sc,
        "ca_wkv": jnp.concatenate([ca["wk"], ca["wv"]], axis=1),
        "ca_bkv": jnp.concatenate([ca["bk"], ca["bv"]]),
        "ca_wo": ca["wo"], "ca_bo": ca["bo"],
        "dg_w": jnp.concatenate([p["down_w"], p["gate_w"]], axis=1),
        "dg_b": jnp.concatenate([p["down_b"], p["gate_b"]]),
        "up_w": p["up_w"], "up_b": p["up_b"],
        "fc1_w": p["fc1_w"], "fc1_b": p["fc1_b"],
        "fc2_w": p["fc2_w"], "fc2_b": p["fc2_b"],
    }
    for n in ("sa_ln", "ca_ln", "f_ln", "tg_ln"):
        f[n + "_g"] = p[n + "_g"]
        f[n + "_b"] = p[n + "_b"]
    return f


def pack_params(fused, compute_dtype=jnp.bfloat16):
    """Pack all matrices into ONE bf16 slab (128-lane-aligned slots) and all vectors
    (biases + LN params) into ONE f32 slab -> 2 weight DMAs per pallas_call."""
    mats = [jnp.asarray(fused[n]) for n in _MAT_NAMES]
    max_rows = ((max(int(m.shape[0]) for m in mats) + 7) // 8) * 8
    mat_layout, cols, off = {}, [], 0
    for n, m in zip(_MAT_NAMES, mats):
        r, c = int(m.shape[0]), int(m.shape[1])
        assert c <= _SLOT, f"{n} wider than one lane slot"
        blk = jnp.zeros((max_rows, _SLOT), compute_dtype).at[:r, :c].set(
            m.astype(compute_dtype))
        cols.append(blk)
        mat_layout[n] = (r, off, c)
        off += _SLOT
    w_slab = jnp.concatenate(cols, axis=1)

    vec_layout, rows = {}, []
    for i, n in enumerate(_VEC_NAMES):
        v = jnp.asarray(fused[n]).reshape(-1).astype(jnp.float32)
        c = int(v.shape[0])
        assert c <= _SLOT
        rows.append(jnp.zeros((_SLOT,), jnp.float32).at[:c].set(v))
        vec_layout[n] = (i, c)
    nrows = ((len(rows) + 7) // 8) * 8
    v_slab = jnp.stack(rows, axis=0)
    v_slab = jnp.concatenate(
        [v_slab, jnp.zeros((nrows - len(rows), _SLOT), jnp.float32)], axis=0)
    return w_slab, v_slab, mat_layout, vec_layout


# -----------------------------------------------------------------------------
# Deterministic parameter init (PyTorch-style raw parameters)
# -----------------------------------------------------------------------------
def _make_linear(key, d_in, d_out):
    kw, kb = jax.random.split(key)
    w = jax.random.normal(kw, (d_in, d_out), jnp.float32) * 0.02
    b = jax.random.normal(kb, (d_out,), jnp.float32) * 0.02
    return w, b


def _make_attn(key, d):
    ks = jax.random.split(key, 4)
    p = {}
    for name, kk in zip(("q", "k", "v", "o"), ks):
        w, b = _make_linear(kk, d, d)
        p["w" + name], p["b" + name] = w, b
    return p


def init_params(key, embed_dim, ffn_dim, proj_size):
    ks = jax.random.split(key, 12)
    params = {
        "self_attn": _make_attn(ks[0], embed_dim),
        "tg_self_attn": _make_attn(ks[1], proj_size),
        "encoder_attn": _make_attn(ks[2], embed_dim),
    }
    params["down_w"], params["down_b"] = _make_linear(ks[3], embed_dim, proj_size)
    params["up_w"], params["up_b"] = _make_linear(ks[4], proj_size, embed_dim)
    params["gate_w"], params["gate_b"] = _make_linear(ks[5], embed_dim, embed_dim)
    params["fc1_w"], params["fc1_b"] = _make_linear(ks[6], embed_dim, ffn_dim)
    params["fc2_w"], params["fc2_b"] = _make_linear(ks[7], ffn_dim, embed_dim)
    for name, d in (("sa_ln", embed_dim), ("ca_ln", embed_dim),
                    ("f_ln", embed_dim), ("tg_ln", proj_size)):
        params[name + "_g"] = jnp.ones((d,), jnp.float32)
        params[name + "_b"] = jnp.zeros((d,), jnp.float32)
    return params


# -----------------------------------------------------------------------------
if __name__ == "__main__":
    B, T, S, E = 2, 8, 16, 32
    NUM_HEADS = 4
    TG_HEADS = 2
    PROJ = 16
    FFN = 64
    SCALE = 256.0 / PROJ      # tg_bypass_proj_scale=True

    key = jax.random.PRNGKey(0)
    k_param, k_hs, k_enc = jax.random.split(key, 3)

    raw_params = init_params(k_param, E, FFN, PROJ)
    fused = fuse_params(raw_params, num_heads=NUM_HEADS, tg_num_heads=TG_HEADS,
                        proj_size=PROJ)
    packed = pack_params(fused, compute_dtype=jnp.bfloat16)

    hidden_states = jax.random.normal(k_hs, (B, T, E), jnp.float32)
    encoder_hidden_states = jax.random.normal(k_enc, (B, S, E), jnp.float32)

    # additive causal masks (0 allowed, -1e9 masked), shape (B, 1, T, T) like HF
    causal = jnp.where(jnp.tril(jnp.ones((T, T), jnp.float32)) > 0, 0.0, -1e9)
    mask0 = jnp.broadcast_to(causal, (B, 1, T, T))
    mask1 = mask0                      # bypass-branch mask (attention_mask[1])
    enc_mask = jnp.zeros((B, 1, T, S), jnp.float32)

    out, present_key_value = bart_decoder_layer_forward(
        packed,
        hidden_states,
        (mask0, mask1),
        encoder_hidden_states,
        enc_mask,
        num_heads=NUM_HEADS,
        tg_num_heads=TG_HEADS,
        proj_size=PROJ,
        scale=SCALE,
    )
    jax.block_until_ready(out)
    assert out.shape == (B, T, E)
    assert bool(jnp.all(jnp.isfinite(out)))
    assert present_key_value[0][0].shape == (B, NUM_HEADS, T, E // NUM_HEADS)
    assert present_key_value[0][1].shape == (B, TG_HEADS, T, PROJ // TG_HEADS)
    assert present_key_value[1][0].shape == (B, NUM_HEADS, T, E // NUM_HEADS)
    assert present_key_value[2].shape == (B, NUM_HEADS, S, E // NUM_HEADS)
    assert present_key_value[3].shape == (B, NUM_HEADS, S, E // NUM_HEADS)
    print("KERNEL_OK")
</pallas_src>

<mosaic_0001>
module attributes {stable_mosaic.version = 11 : i64} {
  func.func @_decoder_layer_kernel(%arg0: i32, %arg1: memref<1x16x32xf32, #tpu.memory_space<vmem>>, %arg2: memref<1x32x32xf32, #tpu.memory_space<vmem>>, %arg3: memref<1x16x16xf32, #tpu.memory_space<vmem>>, %arg4: memref<1x16x16xf32, #tpu.memory_space<vmem>>, %arg5: memref<1x16x32xf32, #tpu.memory_space<vmem>>, %arg6: memref<64x1408xbf16, #tpu.memory_space<vmem>>, %arg7: memref<24x128xf32, #tpu.memory_space<vmem>>, %arg8: memref<1x16x32xf32, #tpu.memory_space<vmem>>, %arg9: memref<1x16x32xf32, #tpu.memory_space<vmem>>, %arg10: memref<1x16x32xf32, #tpu.memory_space<vmem>>, %arg11: memref<1x16x16xf32, #tpu.memory_space<vmem>>, %arg12: memref<1x16x16xf32, #tpu.memory_space<vmem>>, %arg13: memref<1x32x32xf32, #tpu.memory_space<vmem>>, %arg14: memref<1x32x32xf32, #tpu.memory_space<vmem>>) attributes {dimension_semantics = [#tpu.dimension_semantics<parallel>], iteration_bounds = array<i64: 1>, scalar_prefetch = 0 : i64, scratch_operands = 0 : i64, tpu.core_type = #tpu.core_type<tc>, window_params = [{transform_indices = @transform_0, window_bounds = array<i64: 1, 16, 32>}, {transform_indices = @transform_1, window_bounds = array<i64: 1, 32, 32>}, {transform_indices = @transform_2, window_bounds = array<i64: 1, 16, 16>}, {transform_indices = @transform_3, window_bounds = array<i64: 1, 16, 16>}, {transform_indices = @transform_4, window_bounds = array<i64: 1, 16, 32>}, {pipeline_mode = #tpu.pipeline_mode<synchronous>, transform_indices = @transform_5, window_bounds = array<i64: 64, 1408>}, {pipeline_mode = #tpu.pipeline_mode<synchronous>, transform_indices = @transform_6, window_bounds = array<i64: 24, 128>}, {transform_indices = @transform_7, window_bounds = array<i64: 1, 16, 32>}, {transform_indices = @transform_8, window_bounds = array<i64: 1, 16, 32>}, {transform_indices = @transform_9, window_bounds = array<i64: 1, 16, 32>}, {transform_indices = @transform_10, window_bounds = array<i64: 1, 16, 16>}, {transform_indices = @transform_11, window_bounds = array<i64: 1, 16, 16>}, {transform_indices = @transform_12, window_bounds = array<i64: 1, 32, 32>}, {transform_indices = @transform_13, window_bounds = array<i64: 1, 32, 32>}]} {
    %c0 = arith.constant 0 : index
    %c0_0 = arith.constant 0 : index
    %c0_1 = arith.constant 0 : index
    %0 = vector.load %arg1[%c0, %c0_0, %c0_1] : memref<1x16x32xf32, #tpu.memory_space<vmem>>, vector<1x16x32xf32>
    %1 = vector.shape_cast %0 : vector<1x16x32xf32> to vector<16x32xf32>
    %2 = arith.truncf %1 : vector<16x32xf32> to vector<16x32xbf16>
    %c0_2 = arith.constant 0 : index
    %c0_3 = arith.constant 0 : index
    %c0_4 = arith.constant 0 : index
    %3 = vector.load %arg3[%c0_2, %c0_3, %c0_4] : memref<1x16x16xf32, #tpu.memory_space<vmem>>, vector<1x16x16xf32>
    %4 = vector.shape_cast %3 : vector<1x16x16xf32> to vector<16x16xf32>
    %c0_5 = arith.constant 0 : index
    %c0_6 = arith.constant 0 : index
    %c0_7 = arith.constant 0 : index
    %5 = vector.load %arg4[%c0_5, %c0_6, %c0_7] : memref<1x16x16xf32, #tpu.memory_space<vmem>>, vector<1x16x16xf32>
    %6 = vector.shape_cast %5 : vector<1x16x16xf32> to vector<16x16xf32>
    %c0_8 = arith.constant 0 : index
    %c0_9 = arith.constant 0 : index
    %c0_10 = arith.constant 0 : index
    %7 = vector.load %arg5[%c0_8, %c0_9, %c0_10] : memref<1x16x32xf32, #tpu.memory_space<vmem>>, vector<1x16x32xf32>
    %8 = vector.shape_cast %7 : vector<1x16x32xf32> to vector<16x32xf32>
    %c0_11 = arith.constant 0 : index
    %c0_12 = arith.constant 0 : index
    %9 = vector.load %arg6[%c0_11, %c0_12] : memref<64x1408xbf16, #tpu.memory_space<vmem>>, vector<32x96xbf16>
    %cst = arith.constant dense<0.000000e+00> : vector<16x96xf32>
    %10 = tpu.matmul %2, %9, %cst {dimension_numbers = #tpu.dot_dimension_numbers<[1], [0], [0], [1], [0, 0, 1, 1], [], []>} : vector<16x32xbf16>, vector<32x96xbf16>, vector<16x96xf32> -> vector<16x96xf32>
    %c0_13 = arith.constant 0 : index
    %c0_14 = arith.constant 0 : index
    %11 = vector.load %arg7[%c0_13, %c0_14] : memref<24x128xf32, #tpu.memory_space<vmem>>, vector<1x96xf32>
    %12 = vector.broadcast %11 : vector<1x96xf32> to vector<16x96xf32>
    %13 = arith.addf %10, %12 : vector<16x96xf32>
    %14 = vector.extract_strided_slice %13 {offsets = [0, 32], sizes = [16, 32], strides = [1, 1]} : vector<16x96xf32> to vector<16x32xf32>
    %15 = vector.extract_strided_slice %13 {offsets = [0, 64], sizes = [16, 32], strides = [1, 1]} : vector<16x96xf32> to vector<16x32xf32>
    %c0_15 = arith.constant 0 : index
    %c0_16 = arith.constant 0 : index
    %c0_17 = arith.constant 0 : index
    %16 = vector.load %arg9[%c0_15, %c0_16, %c0_17] : memref<1x16x32xf32, #tpu.memory_space<vmem>>, vector<1x16x32xf32>
    %17 = vector.shape_cast %16 : vector<1x16x32xf32> to vector<16x32xf32>
    %18 = vector.shape_cast %14 : vector<16x32xf32> to vector<1x16x32xf32>
    tpu.vector_store %arg9[%c0_15, %c0_16, %c0_17], %18 {strides = array<i32>} : memref<1x16x32xf32, #tpu.memory_space<vmem>>, vector<1x16x32xf32>,
    %c0_18 = arith.constant 0 : index
    %c0_19 = arith.constant 0 : index
    %c0_20 = arith.constant 0 : index
    %19 = vector.load %arg10[%c0_18, %c0_19, %c0_20] : memref<1x16x32xf32, #tpu.memory_space<vmem>>, vector<1x16x32xf32>
    %20 = vector.shape_cast %19 : vector<1x16x32xf32> to vector<16x32xf32>
    %21 = vector.shape_cast %15 : vector<16x32xf32> to vector<1x16x32xf32>
    tpu.vector_store %arg10[%c0_18, %c0_19, %c0_20], %21 {strides = array<i32>} : memref<1x16x32xf32, #tpu.memory_space<vmem>>, vector<1x16x32xf32>,
    %22 = vector.extract_strided_slice %13 {offsets = [0, 0], sizes = [16, 32], strides = [1, 1]} : vector<16x96xf32> to vector<16x32xf32>
    %c0_21 = arith.constant 0 : index
    %c128 = arith.constant 128 : index
    %23 = vector.load %arg6[%c0_21, %c128] : memref<64x1408xbf16, #tpu.memory_space<vmem>>, vector<32x32xbf16>
    %c1 = arith.constant 1 : index
    %c0_22 = arith.constant 0 : index
    %24 = vector.load %arg7[%c1, %c0_22] : memref<24x128xf32, #tpu.memory_space<vmem>>, vector<1x32xf32>
    %25 = arith.truncf %22 : vector<16x32xf32> to vector<16x32xbf16>
    %26 = arith.truncf %14 : vector<16x32xf32> to vector<16x32xbf16>
    %27 = arith.truncf %15 : vector<16x32xf32> to vector<16x32xbf16>
    %28 = vector.extract_strided_slice %25 {offsets = [0, 0], sizes = [16, 8], strides = [1, 1]} : vector<16x32xbf16> to vector<16x8xbf16>
    %29 = vector.extract_strided_slice %26 {offsets = [0, 0], sizes = [16, 8], strides = [1, 1]} : vector<16x32xbf16> to vector<16x8xbf16>
    %cst_23 = arith.constant dense<0.000000e+00> : vector<16x16xf32>
    %30 = tpu.matmul %28, %29, %cst_23 {dimension_numbers = #tpu.dot_dimension_numbers<[1], [1], [0], [0], [0, 0, 1, 0], [], []>} : vector<16x8xbf16>, vector<16x8xbf16>, vector<16x16xf32> -> vector<16x16xf32>
    %31 = arith.addf %30, %4 : vector<16x16xf32>
    %32 = vector.extract_strided_slice %25 {offsets = [0, 8], sizes = [16, 8], strides = [1, 1]} : vector<16x32xbf16> to vector<16x8xbf16>
    %33 = vector.extract_strided_slice %26 {offsets = [0, 8], sizes = [16, 8], strides = [1, 1]} : vector<16x32xbf16> to vector<16x8xbf16>
    %cst_24 = arith.constant dense<0.000000e+00> : vector<16x16xf32>
    %34 = tpu.matmul %32, %33, %cst_24 {dimension_numbers = #tpu.dot_dimension_numbers<[1], [1], [0], [0], [0, 0, 1, 0], [], []>} : vector<16x8xbf16>, vector<16x8xbf16>, vector<16x16xf32> -> vector<16x16xf32>
    %35 = arith.addf %34, %4 : vector<16x16xf32>
    %36 = vector.extract_strided_slice %25 {offsets = [0, 16], sizes = [16, 8], strides = [1, 1]} : vector<16x32xbf16> to vector<16x8xbf16>
    %37 = vector.extract_strided_slice %26 {offsets = [0, 16], sizes = [16, 8], strides = [1, 1]} : vector<16x32xbf16> to vector<16x8xbf16>
    %cst_25 = arith.constant dense<0.000000e+00> : vector<16x16xf32>
    %38 = tpu.matmul %36, %37, %cst_25 {dimension_numbers = #tpu.dot_dimension_numbers<[1], [1], [0], [0], [0, 0, 1, 0], [], []>} : vector<16x8xbf16>, vector<16x8xbf16>, vector<16x16xf32> -> vector<16x16xf32>
    %39 = arith.addf %38, %4 : vector<16x16xf32>
    %40 = vector.extract_strided_slice %25 {offsets = [0, 24], sizes = [16, 8], strides = [1, 1]} : vector<16x32xbf16> to vector<16x8xbf16>
    %41 = vector.extract_strided_slice %26 {offsets = [0, 24], sizes = [16, 8], strides = [1, 1]} : vector<16x32xbf16> to vector<16x8xbf16>
    %cst_26 = arith.constant dense<0.000000e+00> : vector<16x16xf32>
    %42 = tpu.matmul %40, %41, %cst_26 {dimension_numbers = #tpu.dot_dimension_numbers<[1], [1], [0], [0], [0, 0, 1, 0], [], []>} : vector<16x8xbf16>, vector<16x8xbf16>, vector<16x16xf32> -> vector<16x16xf32>
    %43 = arith.addf %42, %4 : vector<16x16xf32>
    %44 = tpu.concatenate %31, %35, %39, %43 in 0 : vector<16x16xf32>, vector<16x16xf32>, vector<16x16xf32>, vector<16x16xf32> -> vector<64x16xf32>
    %cst_27 = arith.constant dense<0xFF800000> : vector<64xf32>
    %45 = vector.multi_reduction <maximumf>, %44, %cst_27 [1] : vector<64x16xf32> to vector<64xf32>
    %46 = vector.shape_cast %45 : vector<64xf32> to vector<64x1xf32>
    %47 = vector.broadcast %46 : vector<64x1xf32> to vector<64x16xf32>
    %48 = arith.subf %44, %47 : vector<64x16xf32>
    %49 = math.exp %48 : vector<64x16xf32>
    %cst_28 = arith.constant dense<0.000000e+00> : vector<64xf32>
    %50 = vector.multi_reduction <add>, %49, %cst_28 [1] : vector<64x16xf32> to vector<64xf32>
    %51 = vector.shape_cast %50 : vector<64xf32> to vector<64x1xf32>
    %52 = tpu.reciprocal %51 {approx = true} : vector<64x1xf32> -> vector<64x1xf32>
    %53 = vector.broadcast %52 : vector<64x1xf32> to vector<64x16xf32>
    %54 = arith.mulf %49, %53 : vector<64x16xf32>
    %55 = arith.truncf %54 : vector<64x16xf32> to vector<64x16xbf16>
    %56 = vector.extract_strided_slice %55 {offsets = [0, 0], sizes = [16, 16], strides = [1, 1]} : vector<64x16xbf16> to vector<16x16xbf16>
    %57 = vector.extract_strided_slice %27 {offsets = [0, 0], sizes = [16, 8], strides = [1, 1]} : vector<16x32xbf16> to vector<16x8xbf16>
    %cst_29 = arith.constant dense<0.000000e+00> : vector<16x8xf32>
    %58 = tpu.matmul %56, %57, %cst_29 {dimension_numbers = #tpu.dot_dimension_numbers<[1], [0], [0], [1], [0, 0, 1, 1], [], []>} : vector<16x16xbf16>, vector<16x8xbf16>, vector<16x8xf32> -> vector<16x8xf32>
    %59 = vector.extract_strided_slice %55 {offsets = [16, 0], sizes = [16, 16], strides = [1, 1]} : vector<64x16xbf16> to vector<16x16xbf16>
    %60 = vector.extract_strided_slice %27 {offsets = [0, 8], sizes = [16, 8], strides = [1, 1]} : vector<16x32xbf16> to vector<16x8xbf16>
    %cst_30 = arith.constant dense<0.000000e+00> : vector<16x8xf32>
    %61 = tpu.matmul %59, %60, %cst_30 {dimension_numbers = #tpu.dot_dimension_numbers<[1], [0], [0], [1], [0, 0, 1, 1], [], []>} : vector<16x16xbf16>, vector<16x8xbf16>, vector<16x8xf32> -> vector<16x8xf32>
    %62 = vector.extract_strided_slice %55 {offsets = [32, 0], sizes = [16, 16], strides = [1, 1]} : vector<64x16xbf16> to vector<16x16xbf16>
    %63 = vector.extract_strided_slice %27 {offsets = [0, 16], sizes = [16, 8], strides = [1, 1]} : vector<16x32xbf16> to vector<16x8xbf16>
    %cst_31 = arith.constant dense<0.000000e+00> : vector<16x8xf32>
    %64 = tpu.matmul %62, %63, %cst_31 {dimension_numbers = #tpu.dot_dimension_numbers<[1], [0], [0], [1], [0, 0, 1, 1], [], []>} : vector<16x16xbf16>, vector<16x8xbf16>, vector<16x8xf32> -> vector<16x8xf32>
    %65 = vector.extract_strided_slice %55 {offsets = [48, 0], sizes = [16, 16], strides = [1, 1]} : vector<64x16xbf16> to vector<16x16xbf16>
    %66 = vector.extract_strided_slice %27 {offsets = [0, 24], sizes = [16, 8], strides = [1, 1]} : vector<16x32xbf16> to vector<16x8xbf16>
    %cst_32 = arith.constant dense<0.000000e+00> : vector<16x8xf32>
    %67 = tpu.matmul %65, %66, %cst_32 {dimension_numbers = #tpu.dot_dimension_numbers<[1], [0], [0], [1], [0, 0, 1, 1], [], []>} : vector<16x16xbf16>, vector<16x8xbf16>, vector<16x8xf32> -> vector<16x8xf32>
    %68 = tpu.concatenate %58, %61, %64, %67 in 1 : vector<16x8xf32>, vector<16x8xf32>, vector<16x8xf32>, vector<16x8xf32> -> vector<16x32xf32>
    %69 = arith.truncf %68 : vector<16x32xf32> to vector<16x32xbf16>
    %cst_33 = arith.constant dense<0.000000e+00> : vector<16x32xf32>
    %70 = tpu.matmul %69, %23, %cst_33 {dimension_numbers = #tpu.dot_dimension_numbers<[1], [0], [0], [1], [0, 0, 1, 1], [], []>} : vector<16x32xbf16>, vector<32x32xbf16>, vector<16x32xf32> -> vector<16x32xf32>
    %71 = vector.broadcast %24 : vector<1x32xf32> to vector<16x32xf32>
    %72 = arith.addf %70, %71 : vector<16x32xf32>
    %c0_34 = arith.constant 0 : index
    %c896 = arith.constant 896 : index
    %73 = vector.load %arg6[%c0_34, %c896] : memref<64x1408xbf16, #tpu.memory_space<vmem>>, vector<32x48xbf16>
    %cst_35 = arith.constant dense<0.000000e+00> : vector<16x48xf32>
    %74 = tpu.matmul %2, %73, %cst_35 {dimension_numbers = #tpu.dot_dimension_numbers<[1], [0], [0], [1], [0, 0, 1, 1], [], []>} : vector<16x32xbf16>, vector<32x48xbf16>, vector<16x48xf32> -> vector<16x48xf32>
    %c7 = arith.constant 7 : index
    %c0_36 = arith.constant 0 : index
    %75 = vector.load %arg7[%c7, %c0_36] : memref<24x128xf32, #tpu.memory_space<vmem>>, vector<1x48xf32>
    %76 = vector.broadcast %75 : vector<1x48xf32> to vector<16x48xf32>
    %77 = arith.addf %74, %76 : vector<16x48xf32>
    %78 = vector.extract_strided_slice %77 {offsets = [0, 0], sizes = [16, 16], strides = [1, 1]} : vector<16x48xf32> to vector<16x16xf32>
    %79 = vector.extract_strided_slice %77 {offsets = [0, 16], sizes = [16, 32], strides = [1, 1]} : vector<16x48xf32> to vector<16x32xf32>
    %80 = arith.negf %79 : vector<16x32xf32>
    %81 = math.exp %80 : vector<16x32xf32>
    %cst_37 = arith.constant 1.000000e+00 : f32
    %82 = vector.broadcast %cst_37 : f32 to vector<16x32xf32>
    %83 = arith.addf %82, %81 : vector<16x32xf32>
    %84 = arith.divf %82, %83 : vector<16x32xf32>
    %85 = arith.truncf %78 : vector<16x16xf32> to vector<16x16xbf16>
    %c0_38 = arith.constant 0 : index
    %c256 = arith.constant 256 : index
    %86 = vector.load %arg6[%c0_38, %c256] : memref<64x1408xbf16, #tpu.memory_space<vmem>>, vector<16x48xbf16>
    %cst_39 = arith.constant dense<0.000000e+00> : vector<16x48xf32>
    %87 = tpu.matmul %85, %86, %cst_39 {dimension_numbers = #tpu.dot_dimension_numbers<[1], [0], [0], [1], [0, 0, 1, 1], [], []>} : vector<16x16xbf16>, vector<16x48xbf16>, vector<16x48xf32> -> vector<16x48xf32>
    %c2 = arith.constant 2 : index
    %c0_40 = arith.constant 0 : index
    %88 = vector.load %arg7[%c2, %c0_40] : memref<24x128xf32, #tpu.memory_space<vmem>>, vector<1x48xf32>
    %89 = vector.broadcast %88 : vector<1x48xf32> to vector<16x48xf32>
    %90 = arith.addf %87, %89 : vector<16x48xf32>
    %91 = vector.extract_strided_slice %90 {offsets = [0, 16], sizes = [16, 16], strides = [1, 1]} : vector<16x48xf32> to vector<16x16xf32>
    %92 = vector.extract_strided_slice %90 {offsets = [0, 32], sizes = [16, 16], strides = [1, 1]} : vector<16x48xf32> to vector<16x16xf32>
    %c0_41 = arith.constant 0 : index
    %c0_42 = arith.constant 0 : index
    %c0_43 = arith.constant 0 : index
    %93 = vector.load %arg11[%c0_41, %c0_42, %c0_43] : memref<1x16x16xf32, #tpu.memory_space<vmem>>, vector<1x16x16xf32>
    %94 = vector.shape_cast %93 : vector<1x16x16xf32> to vector<16x16xf32>
    %95 = vector.shape_cast %91 : vector<16x16xf32> to vector<1x16x16xf32>
    tpu.vector_store %arg11[%c0_41, %c0_42, %c0_43], %95 {strides = array<i32>} : memref<1x16x16xf32, #tpu.memory_space<vmem>>, vector<1x16x16xf32>,
    %c0_44 = arith.constant 0 : index
    %c0_45 = arith.constant 0 : index
    %c0_46 = arith.constant 0 : index
    %96 = vector.load %arg12[%c0_44, %c0_45, %c0_46] : memref<1x16x16xf32, #tpu.memory_space<vmem>>, vector<1x16x16xf32>
    %97 = vector.shape_cast %96 : vector<1x16x16xf32> to vector<16x16xf32>
    %98 = vector.shape_cast %92 : vector<16x16xf32> to vector<1x16x16xf32>
    tpu.vector_store %arg12[%c0_44, %c0_45, %c0_46], %98 {strides = array<i32>} : memref<1x16x16xf32, #tpu.memory_space<vmem>>, vector<1x16x16xf32>,
    %99 = vector.extract_strided_slice %90 {offsets = [0, 0], sizes = [16, 16], strides = [1, 1]} : vector<16x48xf32> to vector<16x16xf32>
    %c0_47 = arith.constant 0 : index
    %c384 = arith.constant 384 : index
    %100 = vector.load %arg6[%c0_47, %c384] : memref<64x1408xbf16, #tpu.memory_space<vmem>>, vector<16x16xbf16>
    %c3 = arith.constant 3 : index
    %c0_48 = arith.constant 0 : index
    %101 = vector.load %arg7[%c3, %c0_48] : memref<24x128xf32, #tpu.memory_space<vmem>>, vector<1x16xf32>
    %102 = arith.truncf %99 : vector<16x16xf32> to vector<16x16xbf16>
    %103 = arith.truncf %91 : vector<16x16xf32> to vector<16x16xbf16>
    %104 = arith.truncf %92 : vector<16x16xf32> to vector<16x16xbf16>
    %105 = vector.extract_strided_slice %102 {offsets = [0, 0], sizes = [16, 8], strides = [1, 1]} : vector<16x16xbf16> to vector<16x8xbf16>
    %106 = vector.extract_strided_slice %103 {offsets = [0, 0], sizes = [16, 8], strides = [1, 1]} : vector<16x16xbf16> to vector<16x8xbf16>
    %cst_49 = arith.constant dense<0.000000e+00> : vector<16x16xf32>
    %107 = tpu.matmul %105, %106, %cst_49 {dimension_numbers = #tpu.dot_dimension_numbers<[1], [1], [0], [0], [0, 0, 1, 0], [], []>} : vector<16x8xbf16>, vector<16x8xbf16>, vector<16x16xf32> -> vector<16x16xf32>
    %108 = arith.addf %107, %6 : vector<16x16xf32>
    %109 = vector.extract_strided_slice %102 {offsets = [0, 8], sizes = [16, 8], strides = [1, 1]} : vector<16x16xbf16> to vector<16x8xbf16>
    %110 = vector.extract_strided_slice %103 {offsets = [0, 8], sizes = [16, 8], strides = [1, 1]} : vector<16x16xbf16> to vector<16x8xbf16>
    %cst_50 = arith.constant dense<0.000000e+00> : vector<16x16xf32>
    %111 = tpu.matmul %109, %110, %cst_50 {dimension_numbers = #tpu.dot_dimension_numbers<[1], [1], [0], [0], [0, 0, 1, 0], [], []>} : vector<16x8xbf16>, vector<16x8xbf16>, vector<16x16xf32> -> vector<16x16xf32>
    %112 = arith.addf %111, %6 : vector<16x16xf32>
    %113 = tpu.concatenate %108, %112 in 0 : vector<16x16xf32>, vector<16x16xf32> -> vector<32x16xf32>
    %cst_51 = arith.constant dense<0xFF800000> : vector<32xf32>
    %114 = vector.multi_reduction <maximumf>, %113, %cst_51 [1] : vector<32x16xf32> to vector<32xf32>
    %115 = vector.shape_cast %114 : vector<32xf32> to vector<32x1xf32>
    %116 = vector.broadcast %115 : vector<32x1xf32> to vector<32x16xf32>
    %117 = arith.subf %113, %116 : vector<32x16xf32>
    %118 = math.exp %117 : vector<32x16xf32>
    %cst_52 = arith.constant dense<0.000000e+00> : vector<32xf32>
    %119 = vector.multi_reduction <add>, %118, %cst_52 [1] : vector<32x16xf32> to vector<32xf32>
    %120 = vector.shape_cast %119 : vector<32xf32> to vector<32x1xf32>
    %121 = tpu.reciprocal %120 {approx = true} : vector<32x1xf32> -> vector<32x1xf32>
    %122 = vector.broadcast %121 : vector<32x1xf32> to vector<32x16xf32>
    %123 = arith.mulf %118, %122 : vector<32x16xf32>
    %124 = arith.truncf %123 : vector<32x16xf32> to vector<32x16xbf16>
    %125 = vector.extract_strided_slice %124 {offsets = [0, 0], sizes = [16, 16], strides = [1, 1]} : vector<32x16xbf16> to vector<16x16xbf16>
    %126 = vector.extract_strided_slice %104 {offsets = [0, 0], sizes = [16, 8], strides = [1, 1]} : vector<16x16xbf16> to vector<16x8xbf16>
    %cst_53 = arith.constant dense<0.000000e+00> : vector<16x8xf32>
    %127 = tpu.matmul %125, %126, %cst_53 {dimension_numbers = #tpu.dot_dimension_numbers<[1], [0], [0], [1], [0, 0, 1, 1], [], []>} : vector<16x16xbf16>, vector<16x8xbf16>, vector<16x8xf32> -> vector<16x8xf32>
    %128 = vector.extract_strided_slice %124 {offsets = [16, 0], sizes = [16, 16], strides = [1, 1]} : vector<32x16xbf16> to vector<16x16xbf16>
    %129 = vector.extract_strided_slice %104 {offsets = [0, 8], sizes = [16, 8], strides = [1, 1]} : vector<16x16xbf16> to vector<16x8xbf16>
    %cst_54 = arith.constant dense<0.000000e+00> : vector<16x8xf32>
    %130 = tpu.matmul %128, %129, %cst_54 {dimension_numbers = #tpu.dot_dimension_numbers<[1], [0], [0], [1], [0, 0, 1, 1], [], []>} : vector<16x16xbf16>, vector<16x8xbf16>, vector<16x8xf32> -> vector<16x8xf32>
    %131 = tpu.concatenate %127, %130 in 1 : vector<16x8xf32>, vector<16x8xf32> -> vector<16x16xf32>
    %132 = arith.truncf %131 : vector<16x16xf32> to vector<16x16xbf16>
    %cst_55 = arith.constant dense<0.000000e+00> : vector<16x16xf32>
    %133 = tpu.matmul %132, %100, %cst_55 {dimension_numbers = #tpu.dot_dimension_numbers<[1], [0], [0], [1], [0, 0, 1, 1], [], []>} : vector<16x16xbf16>, vector<16x16xbf16>, vector<16x16xf32> -> vector<16x16xf32>
    %134 = vector.broadcast %101 : vector<1x16xf32> to vector<16x16xf32>
    %135 = arith.addf %133, %134 : vector<16x16xf32>
    %136 = arith.addf %135, %78 : vector<16x16xf32>
    %c17 = arith.constant 17 : index
    %c0_56 = arith.constant 0 : index
    %137 = vector.load %arg7[%c17, %c0_56] : memref<24x128xf32, #tpu.memory_space<vmem>>, vector<1x16xf32>
    %c18 = arith.constant 18 : index
    %c0_57 = arith.constant 0 : index
    %138 = vector.load %arg7[%c18, %c0_57] : memref<24x128xf32, #tpu.memory_space<vmem>>, vector<1x16xf32>
    %cst_58 = arith.constant dense<0.000000e+00> : vector<16xf32>
    %139 = vector.multi_reduction <add>, %136, %cst_58 [1] : vector<16x16xf32> to vector<16xf32>
    %140 = vector.shape_cast %139 : vector<16xf32> to vector<16x1xf32>
    %cst_59 = arith.constant 1.600000e+01 : f32
    %141 = vector.broadcast %cst_59 : f32 to vector<16x1xf32>
    %142 = arith.divf %140, %141 : vector<16x1xf32>
    %143 = vector.broadcast %142 : vector<16x1xf32> to vector<16x16xf32>
    %144 = arith.subf %136, %143 : vector<16x16xf32>
    %145 = arith.mulf %144, %144 : vector<16x16xf32>
    %cst_60 = arith.constant dense<0.000000e+00> : vector<16xf32>
    %146 = vector.multi_reduction <add>, %145, %cst_60 [1] : vector<16x16xf32> to vector<16xf32>
    %147 = vector.shape_cast %146 : vector<16xf32> to vector<16x1xf32>
    %cst_61 = arith.constant 1.600000e+01 : f32
    %148 = vector.broadcast %cst_61 : f32 to vector<16x1xf32>
    %149 = arith.divf %147, %148 : vector<16x1xf32>
    %cst_62 = arith.constant 9.99999974E-6 : f32
    %150 = vector.broadcast %cst_62 : f32 to vector<16x1xf32>
    %151 = arith.addf %149, %150 : vector<16x1xf32>
    %152 = math.rsqrt %151 : vector<16x1xf32>
    %153 = vector.broadcast %152 : vector<16x1xf32> to vector<16x16xf32>
    %154 = arith.mulf %144, %153 : vector<16x16xf32>
    %155 = vector.broadcast %137 : vector<1x16xf32> to vector<16x16xf32>
    %156 = arith.mulf %154, %155 : vector<16x16xf32>
    %157 = vector.broadcast %138 : vector<1x16xf32> to vector<16x16xf32>
    %158 = arith.addf %156, %157 : vector<16x16xf32>
    %159 = arith.truncf %158 : vector<16x16xf32> to vector<16x16xbf16>
    %c0_63 = arith.constant 0 : index
    %c1024 = arith.constant 1024 : index
    %160 = vector.load %arg6[%c0_63, %c1024] : memref<64x1408xbf16, #tpu.memory_space<vmem>>, vector<16x32xbf16>
    %cst_64 = arith.constant dense<0.000000e+00> : vector<16x32xf32>
    %161 = tpu.matmul %159, %160, %cst_64 {dimension_numbers = #tpu.dot_dimension_numbers<[1], [0], [0], [1], [0, 0, 1, 1], [], []>} : vector<16x16xbf16>, vector<16x32xbf16>, vector<16x32xf32> -> vector<16x32xf32>
    %c8 = arith.constant 8 : index
    %c0_65 = arith.constant 0 : index
    %162 = vector.load %arg7[%c8, %c0_65] : memref<24x128xf32, #tpu.memory_space<vmem>>, vector<1x32xf32>
    %163 = vector.broadcast %162 : vector<1x32xf32> to vector<16x32xf32>
    %164 = arith.addf %161, %163 : vector<16x32xf32>
    %cst_66 = arith.constant 1.600000e+01 : f32
    %165 = vector.broadcast %cst_66 : f32 to vector<16x32xf32>
    %166 = arith.mulf %164, %165 : vector<16x32xf32>
    %167 = arith.mulf %84, %166 : vector<16x32xf32>
    %168 = arith.addf %1, %72 : vector<16x32xf32>
    %169 = arith.addf %168, %167 : vector<16x32xf32>
    %c11 = arith.constant 11 : index
    %c0_67 = arith.constant 0 : index
    %170 = vector.load %arg7[%c11, %c0_67] : memref<24x128xf32, #tpu.memory_space<vmem>>, vector<1x32xf32>
    %c12 = arith.constant 12 : index
    %c0_68 = arith.constant 0 : index
    %171 = vector.load %arg7[%c12, %c0_68] : memref<24x128xf32, #tpu.memory_space<vmem>>, vector<1x32xf32>
    %cst_69 = arith.constant dense<0.000000e+00> : vector<16xf32>
    %172 = vector.multi_reduction <add>, %169, %cst_69 [1] : vector<16x32xf32> to vector<16xf32>
    %173 = vector.shape_cast %172 : vector<16xf32> to vector<16x1xf32>
    %cst_70 = arith.constant 3.200000e+01 : f32
    %174 = vector.broadcast %cst_70 : f32 to vector<16x1xf32>
    %175 = arith.divf %173, %174 : vector<16x1xf32>
    %176 = vector.broadcast %175 : vector<16x1xf32> to vector<16x32xf32>
    %177 = arith.subf %169, %176 : vector<16x32xf32>
    %178 = arith.mulf %177, %177 : vector<16x32xf32>
    %cst_71 = arith.constant dense<0.000000e+00> : vector<16xf32>
    %179 = vector.multi_reduction <add>, %178, %cst_71 [1] : vector<16x32xf32> to vector<16xf32>
    %180 = vector.shape_cast %179 : vector<16xf32> to vector<16x1xf32>
    %cst_72 = arith.constant 3.200000e+01 : f32
    %181 = vector.broadcast %cst_72 : f32 to vector<16x1xf32>
    %182 = arith.divf %180, %181 : vector<16x1xf32>
    %cst_73 = arith.constant 9.99999974E-6 : f32
    %183 = vector.broadcast %cst_73 : f32 to vector<16x1xf32>
    %184 = arith.addf %182, %183 : vector<16x1xf32>
    %185 = math.rsqrt %184 : vector<16x1xf32>
    %186 = vector.broadcast %185 : vector<16x1xf32> to vector<16x32xf32>
    %187 = arith.mulf %177, %186 : vector<16x32xf32>
    %188 = vector.broadcast %170 : vector<1x32xf32> to vector<16x32xf32>
    %189 = arith.mulf %187, %188 : vector<16x32xf32>
    %190 = vector.broadcast %171 : vector<1x32xf32> to vector<16x32xf32>
    %191 = arith.addf %189, %190 : vector<16x32xf32>
    %c0_74 = arith.constant 0 : index
    %c0_75 = arith.constant 0 : index
    %c0_76 = arith.constant 0 : index
    %192 = vector.load %arg2[%c0_74, %c0_75, %c0_76] : memref<1x32x32xf32, #tpu.memory_space<vmem>>, vector<1x32x32xf32>
    %193 = vector.shape_cast %192 : vector<1x32x32xf32> to vector<32x32xf32>
    %194 = arith.truncf %193 : vector<32x32xf32> to vector<32x32xbf16>
    %195 = arith.truncf %191 : vector<16x32xf32> to vector<16x32xbf16>
    %c0_77 = arith.constant 0 : index
    %c512 = arith.constant 512 : index
    %196 = vector.load %arg6[%c0_77, %c512] : memref<64x1408xbf16, #tpu.memory_space<vmem>>, vector<32x32xbf16>
    %cst_78 = arith.constant dense<0.000000e+00> : vector<16x32xf32>
    %197 = tpu.matmul %195, %196, %cst_78 {dimension_numbers = #tpu.dot_dimension_numbers<[1], [0], [0], [1], [0, 0, 1, 1], [], []>} : vector<16x32xbf16>, vector<32x32xbf16>, vector<16x32xf32> -> vector<16x32xf32>
    %c4 = arith.constant 4 : index
    %c0_79 = arith.constant 0 : index
    %198 = vector.load %arg7[%c4, %c0_79] : memref<24x128xf32, #tpu.memory_space<vmem>>, vector<1x32xf32>
    %199 = vector.broadcast %198 : vector<1x32xf32> to vector<16x32xf32>
    %200 = arith.addf %197, %199 : vector<16x32xf32>
    %c0_80 = arith.constant 0 : index
    %c640 = arith.constant 640 : index
    %201 = vector.load %arg6[%c0_80, %c640] : memref<64x1408xbf16, #tpu.memory_space<vmem>>, vector<32x64xbf16>
    %cst_81 = arith.constant dense<0.000000e+00> : vector<32x64xf32>
    %202 = tpu.matmul %194, %201, %cst_81 {dimension_numbers = #tpu.dot_dimension_numbers<[1], [0], [0], [1], [0, 0, 1, 1], [], []>} : vector<32x32xbf16>, vector<32x64xbf16>, vector<32x64xf32> -> vector<32x64xf32>
    %c5 = arith.constant 5 : index
    %c0_82 = arith.constant 0 : index
    %203 = vector.load %arg7[%c5, %c0_82] : memref<24x128xf32, #tpu.memory_space<vmem>>, vector<1x64xf32>
    %204 = vector.broadcast %203 : vector<1x64xf32> to vector<32x64xf32>
    %205 = arith.addf %202, %204 : vector<32x64xf32>
    %206 = vector.extract_strided_slice %205 {offsets = [0, 0], sizes = [32, 32], strides = [1, 1]} : vector<32x64xf32> to vector<32x32xf32>
    %207 = vector.extract_strided_slice %205 {offsets = [0, 32], sizes = [32, 32], strides = [1, 1]} : vector<32x64xf32> to vector<32x32xf32>
    %c0_83 = arith.constant 0 : index
    %c0_84 = arith.constant 0 : index
    %c0_85 = arith.constant 0 : index
    %208 = vector.load %arg13[%c0_83, %c0_84, %c0_85] : memref<1x32x32xf32, #tpu.memory_space<vmem>>, vector<1x32x32xf32>
    %209 = vector.shape_cast %208 : vector<1x32x32xf32> to vector<32x32xf32>
    %210 = vector.shape_cast %206 : vector<32x32xf32> to vector<1x32x32xf32>
    tpu.vector_store %arg13[%c0_83, %c0_84, %c0_85], %210 {strides = array<i32>} : memref<1x32x32xf32, #tpu.memory_space<vmem>>, vector<1x32x32xf32>,
    %c0_86 = arith.constant 0 : index
    %c0_87 = arith.constant 0 : index
    %c0_88 = arith.constant 0 : index
    %211 = vector.load %arg14[%c0_86, %c0_87, %c0_88] : memref<1x32x32xf32, #tpu.memory_space<vmem>>, vector<1x32x32xf32>
    %212 = vector.shape_cast %211 : vector<1x32x32xf32> to vector<32x32xf32>
    %213 = vector.shape_cast %207 : vector<32x32xf32> to vector<1x32x32xf32>
    tpu.vector_store %arg14[%c0_86, %c0_87, %c0_88], %213 {strides = array<i32>} : memref<1x32x32xf32, #tpu.memory_space<vmem>>, vector<1x32x32xf32>,
    %c0_89 = arith.constant 0 : index
    %c768 = arith.constant 768 : index
    %214 = vector.load %arg6[%c0_89, %c768] : memref<64x1408xbf16, #tpu.memory_space<vmem>>, vector<32x32xbf16>
    %c6 = arith.constant 6 : index
    %c0_90 = arith.constant 0 : index
    %215 = vector.load %arg7[%c6, %c0_90] : memref<24x128xf32, #tpu.memory_space<vmem>>, vector<1x32xf32>
    %216 = arith.truncf %200 : vector<16x32xf32> to vector<16x32xbf16>
    %217 = arith.truncf %206 : vector<32x32xf32> to vector<32x32xbf16>
    %218 = arith.truncf %207 : vector<32x32xf32> to vector<32x32xbf16>
    %219 = vector.extract_strided_slice %216 {offsets = [0, 0], sizes = [16, 8], strides = [1, 1]} : vector<16x32xbf16> to vector<16x8xbf16>
    %220 = vector.extract_strided_slice %217 {offsets = [0, 0], sizes = [32, 8], strides = [1, 1]} : vector<32x32xbf16> to vector<32x8xbf16>
    %cst_91 = arith.constant dense<0.000000e+00> : vector<16x32xf32>
    %221 = tpu.matmul %219, %220, %cst_91 {dimension_numbers = #tpu.dot_dimension_numbers<[1], [1], [0], [0], [0, 0, 1, 0], [], []>} : vector<16x8xbf16>, vector<32x8xbf16>, vector<16x32xf32> -> vector<16x32xf32>
    %222 = arith.addf %221, %8 : vector<16x32xf32>
    %223 = vector.extract_strided_slice %216 {offsets = [0, 8], sizes = [16, 8], strides = [1, 1]} : vector<16x32xbf16> to vector<16x8xbf16>
    %224 = vector.extract_strided_slice %217 {offsets = [0, 8], sizes = [32, 8], strides = [1, 1]} : vector<32x32xbf16> to vector<32x8xbf16>
    %cst_92 = arith.constant dense<0.000000e+00> : vector<16x32xf32>
    %225 = tpu.matmul %223, %224, %cst_92 {dimension_numbers = #tpu.dot_dimension_numbers<[1], [1], [0], [0], [0, 0, 1, 0], [], []>} : vector<16x8xbf16>, vector<32x8xbf16>, vector<16x32xf32> -> vector<16x32xf32>
    %226 = arith.addf %225, %8 : vector<16x32xf32>
    %227 = vector.extract_strided_slice %216 {offsets = [0, 16], sizes = [16, 8], strides = [1, 1]} : vector<16x32xbf16> to vector<16x8xbf16>
    %228 = vector.extract_strided_slice %217 {offsets = [0, 16], sizes = [32, 8], strides = [1, 1]} : vector<32x32xbf16> to vector<32x8xbf16>
    %cst_93 = arith.constant dense<0.000000e+00> : vector<16x32xf32>
    %229 = tpu.matmul %227, %228, %cst_93 {dimension_numbers = #tpu.dot_dimension_numbers<[1], [1], [0], [0], [0, 0, 1, 0], [], []>} : vector<16x8xbf16>, vector<32x8xbf16>, vector<16x32xf32> -> vector<16x32xf32>
    %230 = arith.addf %229, %8 : vector<16x32xf32>
    %231 = vector.extract_strided_slice %216 {offsets = [0, 24], sizes = [16, 8], strides = [1, 1]} : vector<16x32xbf16> to vector<16x8xbf16>
    %232 = vector.extract_strided_slice %217 {offsets = [0, 24], sizes = [32, 8], strides = [1, 1]} : vector<32x32xbf16> to vector<32x8xbf16>
    %cst_94 = arith.constant dense<0.000000e+00> : vector<16x32xf32>
    %233 = tpu.matmul %231, %232, %cst_94 {dimension_numbers = #tpu.dot_dimension_numbers<[1], [1], [0], [0], [0, 0, 1, 0], [], []>} : vector<16x8xbf16>, vector<32x8xbf16>, vector<16x32xf32> -> vector<16x32xf32>
    %234 = arith.addf %233, %8 : vector<16x32xf32>
    %235 = tpu.concatenate %222, %226, %230, %234 in 0 : vector<16x32xf32>, vector<16x32xf32>, vector<16x32xf32>, vector<16x32xf32> -> vector<64x32xf32>
    %cst_95 = arith.constant dense<0xFF800000> : vector<64xf32>
    %236 = vector.multi_reduction <maximumf>, %235, %cst_95 [1] : vector<64x32xf32> to vector<64xf32>
    %237 = vector.shape_cast %236 : vector<64xf32> to vector<64x1xf32>
    %238 = vector.broadcast %237 : vector<64x1xf32> to vector<64x32xf32>
    %239 = arith.subf %235, %238 : vector<64x32xf32>
    %240 = math.exp %239 : vector<64x32xf32>
    %cst_96 = arith.constant dense<0.000000e+00> : vector<64xf32>
    %241 = vector.multi_reduction <add>, %240, %cst_96 [1] : vector<64x32xf32> to vector<64xf32>
    %242 = vector.shape_cast %241 : vector<64xf32> to vector<64x1xf32>
    %243 = tpu.reciprocal %242 {approx = true} : vector<64x1xf32> -> vector<64x1xf32>
    %244 = vector.broadcast %243 : vector<64x1xf32> to vector<64x32xf32>
    %245 = arith.mulf %240, %244 : vector<64x32xf32>
    %246 = arith.truncf %245 : vector<64x32xf32> to vector<64x32xbf16>
    %247 = vector.extract_strided_slice %246 {offsets = [0, 0], sizes = [16, 32], strides = [1, 1]} : vector<64x32xbf16> to vector<16x32xbf16>
    %248 = vector.extract_strided_slice %218 {offsets = [0, 0], sizes = [32, 8], strides = [1, 1]} : vector<32x32xbf16> to vector<32x8xbf16>
    %cst_97 = arith.constant dense<0.000000e+00> : vector<16x8xf32>
    %249 = tpu.matmul %247, %248, %cst_97 {dimension_numbers = #tpu.dot_dimension_numbers<[1], [0], [0], [1], [0, 0, 1, 1], [], []>} : vector<16x32xbf16>, vector<32x8xbf16>, vector<16x8xf32> -> vector<16x8xf32>
    %250 = vector.extract_strided_slice %246 {offsets = [16, 0], sizes = [16, 32], strides = [1, 1]} : vector<64x32xbf16> to vector<16x32xbf16>
    %251 = vector.extract_strided_slice %218 {offsets = [0, 8], sizes = [32, 8], strides = [1, 1]} : vector<32x32xbf16> to vector<32x8xbf16>
    %cst_98 = arith.constant dense<0.000000e+00> : vector<16x8xf32>
    %252 = tpu.matmul %250, %251, %cst_98 {dimension_numbers = #tpu.dot_dimension_numbers<[1], [0], [0], [1], [0, 0, 1, 1], [], []>} : vector<16x32xbf16>, vector<32x8xbf16>, vector<16x8xf32> -> vector<16x8xf32>
    %253 = vector.extract_strided_slice %246 {offsets = [32, 0], sizes = [16, 32], strides = [1, 1]} : vector<64x32xbf16> to vector<16x32xbf16>
    %254 = vector.extract_strided_slice %218 {offsets = [0, 16], sizes = [32, 8], strides = [1, 1]} : vector<32x32xbf16> to vector<32x8xbf16>
    %cst_99 = arith.constant dense<0.000000e+00> : vector<16x8xf32>
    %255 = tpu.matmul %253, %254, %cst_99 {dimension_numbers = #tpu.dot_dimension_numbers<[1], [0], [0], [1], [0, 0, 1, 1], [], []>} : vector<16x32xbf16>, vector<32x8xbf16>, vector<16x8xf32> -> vector<16x8xf32>
    %256 = vector.extract_strided_slice %246 {offsets = [48, 0], sizes = [16, 32], strides = [1, 1]} : vector<64x32xbf16> to vector<16x32xbf16>
    %257 = vector.extract_strided_slice %218 {offsets = [0, 24], sizes = [32, 8], strides = [1, 1]} : vector<32x32xbf16> to vector<32x8xbf16>
    %cst_100 = arith.constant dense<0.000000e+00> : vector<16x8xf32>
    %258 = tpu.matmul %256, %257, %cst_100 {dimension_numbers = #tpu.dot_dimension_numbers<[1], [0], [0], [1], [0, 0, 1, 1], [], []>} : vector<16x32xbf16>, vector<32x8xbf16>, vector<16x8xf32> -> vector<16x8xf32>
    %259 = tpu.concatenate %249, %252, %255, %258 in 1 : vector<16x8xf32>, vector<16x8xf32>, vector<16x8xf32>, vector<16x8xf32> -> vector<16x32xf32>
    %260 = arith.truncf %259 : vector<16x32xf32> to vector<16x32xbf16>
    %cst_101 = arith.constant dense<0.000000e+00> : vector<16x32xf32>
    %261 = tpu.matmul %260, %214, %cst_101 {dimension_numbers = #tpu.dot_dimension_numbers<[1], [0], [0], [1], [0, 0, 1, 1], [], []>} : vector<16x32xbf16>, vector<32x32xbf16>, vector<16x32xf32> -> vector<16x32xf32>
    %262 = vector.broadcast %215 : vector<1x32xf32> to vector<16x32xf32>
    %263 = arith.addf %261, %262 : vector<16x32xf32>
    %264 = arith.addf %191, %263 : vector<16x32xf32>
    %c13 = arith.constant 13 : index
    %c0_102 = arith.constant 0 : index
    %265 = vector.load %arg7[%c13, %c0_102] : memref<24x128xf32, #tpu.memory_space<vmem>>, vector<1x32xf32>
    %c14 = arith.constant 14 : index
    %c0_103 = arith.constant 0 : index
    %266 = vector.load %arg7[%c14, %c0_103] : memref<24x128xf32, #tpu.memory_space<vmem>>, vector<1x32xf32>
    %cst_104 = arith.constant dense<0.000000e+00> : vector<16xf32>
    %267 = vector.multi_reduction <add>, %264, %cst_104 [1] : vector<16x32xf32> to vector<16xf32>
    %268 = vector.shape_cast %267 : vector<16xf32> to vector<16x1xf32>
    %cst_105 = arith.constant 3.200000e+01 : f32
    %269 = vector.broadcast %cst_105 : f32 to vector<16x1xf32>
    %270 = arith.divf %268, %269 : vector<16x1xf32>
    %271 = vector.broadcast %270 : vector<16x1xf32> to vector<16x32xf32>
    %272 = arith.subf %264, %271 : vector<16x32xf32>
    %273 = arith.mulf %272, %272 : vector<16x32xf32>
    %cst_106 = arith.constant dense<0.000000e+00> : vector<16xf32>
    %274 = vector.multi_reduction <add>, %273, %cst_106 [1] : vector<16x32xf32> to vector<16xf32>
    %275 = vector.shape_cast %274 : vector<16xf32> to vector<16x1xf32>
    %cst_107 = arith.constant 3.200000e+01 : f32
    %276 = vector.broadcast %cst_107 : f32 to vector<16x1xf32>
    %277 = arith.divf %275, %276 : vector<16x1xf32>
    %cst_108 = arith.constant 9.99999974E-6 : f32
    %278 = vector.broadcast %cst_108 : f32 to vector<16x1xf32>
    %279 = arith.addf %277, %278 : vector<16x1xf32>
    %280 = math.rsqrt %279 : vector<16x1xf32>
    %281 = vector.broadcast %280 : vector<16x1xf32> to vector<16x32xf32>
    %282 = arith.mulf %272, %281 : vector<16x32xf32>
    %283 = vector.broadcast %265 : vector<1x32xf32> to vector<16x32xf32>
    %284 = arith.mulf %282, %283 : vector<16x32xf32>
    %285 = vector.broadcast %266 : vector<1x32xf32> to vector<16x32xf32>
    %286 = arith.addf %284, %285 : vector<16x32xf32>
    %287 = arith.truncf %286 : vector<16x32xf32> to vector<16x32xbf16>
    %c0_109 = arith.constant 0 : index
    %c1152 = arith.constant 1152 : index
    %288 = vector.load %arg6[%c0_109, %c1152] : memref<64x1408xbf16, #tpu.memory_space<vmem>>, vector<32x64xbf16>
    %cst_110 = arith.constant dense<0.000000e+00> : vector<16x64xf32>
    %289 = tpu.matmul %287, %288, %cst_110 {dimension_numbers = #tpu.dot_dimension_numbers<[1], [0], [0], [1], [0, 0, 1, 1], [], []>} : vector<16x32xbf16>, vector<32x64xbf16>, vector<16x64xf32> -> vector<16x64xf32>
    %c9 = arith.constant 9 : index
    %c0_111 = arith.constant 0 : index
    %290 = vector.load %arg7[%c9, %c0_111] : memref<24x128xf32, #tpu.memory_space<vmem>>, vector<1x64xf32>
    %291 = vector.broadcast %290 : vector<1x64xf32> to vector<16x64xf32>
    %292 = arith.addf %289, %291 : vector<16x64xf32>
    %293 = arith.mulf %292, %292 : vector<16x64xf32>
    %294 = arith.mulf %292, %293 : vector<16x64xf32>
    %cst_112 = arith.constant 4.471500e-02 : f32
    %295 = vector.broadcast %cst_112 : f32 to vector<16x64xf32>
    %296 = arith.mulf %295, %294 : vector<16x64xf32>
    %297 = arith.addf %292, %296 : vector<16x64xf32>
    %cst_113 = arith.constant 0.797884583 : f32
    %298 = vector.broadcast %cst_113 : f32 to vector<16x64xf32>
    %299 = arith.mulf %298, %297 : vector<16x64xf32>
    %300 = math.tanh %299 : vector<16x64xf32>
    %cst_114 = arith.constant 1.000000e+00 : f32
    %301 = vector.broadcast %cst_114 : f32 to vector<16x64xf32>
    %302 = arith.addf %301, %300 : vector<16x64xf32>
    %cst_115 = arith.constant 5.000000e-01 : f32
    %303 = vector.broadcast %cst_115 : f32 to vector<16x64xf32>
    %304 = arith.mulf %303, %302 : vector<16x64xf32>
    %305 = arith.mulf %292, %304 : vector<16x64xf32>
    %306 = arith.truncf %305 : vector<16x64xf32> to vector<16x64xbf16>
    %c0_116 = arith.constant 0 : index
    %c1280 = arith.constant 1280 : index
    %307 = vector.load %arg6[%c0_116, %c1280] : memref<64x1408xbf16, #tpu.memory_space<vmem>>, vector<64x32xbf16>
    %cst_117 = arith.constant dense<0.000000e+00> : vector<16x32xf32>
    %308 = tpu.matmul %306, %307, %cst_117 {dimension_numbers = #tpu.dot_dimension_numbers<[1], [0], [0], [1], [0, 0, 1, 1], [], []>} : vector<16x64xbf16>, vector<64x32xbf16>, vector<16x32xf32> -> vector<16x32xf32>
    %309 = arith.addf %286, %308 : vector<16x32xf32>
    %c10 = arith.constant 10 : index
    %c0_118 = arith.constant 0 : index
    %310 = vector.load %arg7[%c10, %c0_118] : memref<24x128xf32, #tpu.memory_space<vmem>>, vector<1x32xf32>
    %311 = vector.broadcast %310 : vector<1x32xf32> to vector<16x32xf32>
    %312 = arith.addf %309, %311 : vector<16x32xf32>
    %c15 = arith.constant 15 : index
    %c0_119 = arith.constant 0 : index
    %313 = vector.load %arg7[%c15, %c0_119] : memref<24x128xf32, #tpu.memory_space<vmem>>, vector<1x32xf32>
    %c16 = arith.constant 16 : index
    %c0_120 = arith.constant 0 : index
    %314 = vector.load %arg7[%c16, %c0_120] : memref<24x128xf32, #tpu.memory_space<vmem>>, vector<1x32xf32>
    %cst_121 = arith.constant dense<0.000000e+00> : vector<16xf32>
    %315 = vector.multi_reduction <add>, %312, %cst_121 [1] : vector<16x32xf32> to vector<16xf32>
    %316 = vector.shape_cast %315 : vector<16xf32> to vector<16x1xf32>
    %cst_122 = arith.constant 3.200000e+01 : f32
    %317 = vector.broadcast %cst_122 : f32 to vector<16x1xf32>
    %318 = arith.divf %316, %317 : vector<16x1xf32>
    %319 = vector.broadcast %318 : vector<16x1xf32> to vector<16x32xf32>
    %320 = arith.subf %312, %319 : vector<16x32xf32>
    %321 = arith.mulf %320, %320 : vector<16x32xf32>
    %cst_123 = arith.constant dense<0.000000e+00> : vector<16xf32>
    %322 = vector.multi_reduction <add>, %321, %cst_123 [1] : vector<16x32xf32> to vector<16xf32>
    %323 = vector.shape_cast %322 : vector<16xf32> to vector<16x1xf32>
    %cst_124 = arith.constant 3.200000e+01 : f32
    %324 = vector.broadcast %cst_124 : f32 to vector<16x1xf32>
    %325 = arith.divf %323, %324 : vector<16x1xf32>
    %cst_125 = arith.constant 9.99999974E-6 : f32
    %326 = vector.broadcast %cst_125 : f32 to vector<16x1xf32>
    %327 = arith.addf %325, %326 : vector<16x1xf32>
    %328 = math.rsqrt %327 : vector<16x1xf32>
    %329 = vector.broadcast %328 : vector<16x1xf32> to vector<16x32xf32>
    %330 = arith.mulf %320, %329 : vector<16x32xf32>
    %331 = vector.broadcast %313 : vector<1x32xf32> to vector<16x32xf32>
    %332 = arith.mulf %330, %331 : vector<16x32xf32>
    %333 = vector.broadcast %314 : vector<1x32xf32> to vector<16x32xf32>
    %334 = arith.addf %332, %333 : vector<16x32xf32>
    %c0_126 = arith.constant 0 : index
    %c0_127 = arith.constant 0 : index
    %c0_128 = arith.constant 0 : index
    %335 = vector.load %arg8[%c0_126, %c0_127, %c0_128] : memref<1x16x32xf32, #tpu.memory_space<vmem>>, vector<1x16x32xf32>
    %336 = vector.shape_cast %335 : vector<1x16x32xf32> to vector<16x32xf32>
    %337 = vector.shape_cast %334 : vector<16x32xf32> to vector<1x16x32xf32>
    tpu.vector_store %arg8[%c0_126, %c0_127, %c0_128], %337 {strides = array<i32>} : memref<1x16x32xf32, #tpu.memory_space<vmem>>, vector<1x16x32xf32>,
    return
  }
  func.func @transform_0(%arg0: i32) -> (i32, i32, i32) {
    %c0_i32 = arith.constant 0 : i32
    %c0_i32_0 = arith.constant 0 : i32
    %c0_i32_1 = arith.constant 0 : i32
    return %arg0, %c0_i32, %c0_i32_0 : i32, i32, i32
  }
  func.func @transform_1(%arg0: i32) -> (i32, i32, i32) {
    %c0_i32 = arith.constant 0 : i32
    %c0_i32_0 = arith.constant 0 : i32
    %c0_i32_1 = arith.constant 0 : i32
    return %arg0, %c0_i32, %c0_i32_0 : i32, i32, i32
  }
  func.func @transform_2(%arg0: i32) -> (i32, i32, i32) {
    %c0_i32 = arith.constant 0 : i32
    %c0_i32_0 = arith.constant 0 : i32
    %c0_i32_1 = arith.constant 0 : i32
    return %arg0, %c0_i32, %c0_i32_0 : i32, i32, i32
  }
  func.func @transform_3(%arg0: i32) -> (i32, i32, i32) {
    %c0_i32 = arith.constant 0 : i32
    %c0_i32_0 = arith.constant 0 : i32
    %c0_i32_1 = arith.constant 0 : i32
    return %arg0, %c0_i32, %c0_i32_0 : i32, i32, i32
  }
  func.func @transform_4(%arg0: i32) -> (i32, i32, i32) {
    %c0_i32 = arith.constant 0 : i32
    %c0_i32_0 = arith.constant 0 : i32
    %c0_i32_1 = arith.constant 0 : i32
    return %arg0, %c0_i32, %c0_i32_0 : i32, i32, i32
  }
  func.func @transform_5(%arg0: i32) -> (i32, i32) {
    %c0_i32 = arith.constant 0 : i32
    %c0_i32_0 = arith.constant 0 : i32
    %c0_i32_1 = arith.constant 0 : i32
    return %c0_i32, %c0_i32_0 : i32, i32
  }
  func.func @transform_6(%arg0: i32) -> (i32, i32) {
    %c0_i32 = arith.constant 0 : i32
    %c0_i32_0 = arith.constant 0 : i32
    %c0_i32_1 = arith.constant 0 : i32
    return %c0_i32, %c0_i32_0 : i32, i32
  }
  func.func @transform_7(%arg0: i32) -> (i32, i32, i32) {
    %c0_i32 = arith.constant 0 : i32
    %c0_i32_0 = arith.constant 0 : i32
    %c0_i32_1 = arith.constant 0 : i32
    return %arg0, %c0_i32, %c0_i32_0 : i32, i32, i32
  }
  func.func @transform_8(%arg0: i32) -> (i32, i32, i32) {
    %c0_i32 = arith.constant 0 : i32
    %c0_i32_0 = arith.constant 0 : i32
    %c0_i32_1 = arith.constant 0 : i32
    return %arg0, %c0_i32, %c0_i32_0 : i32, i32, i32
  }
  func.func @transform_9(%arg0: i32) -> (i32, i32, i32) {
    %c0_i32 = arith.constant 0 : i32
    %c0_i32_0 = arith.constant 0 : i32
    %c0_i32_1 = arith.constant 0 : i32
    return %arg0, %c0_i32, %c0_i32_0 : i32, i32, i32
  }
  func.func @transform_10(%arg0: i32) -> (i32, i32, i32) {
    %c0_i32 = arith.constant 0 : i32
    %c0_i32_0 = arith.constant 0 : i32
    %c0_i32_1 = arith.constant 0 : i32
    return %arg0, %c0_i32, %c0_i32_0 : i32, i32, i32
  }
  func.func @transform_11(%arg0: i32) -> (i32, i32, i32) {
    %c0_i32 = arith.constant 0 : i32
    %c0_i32_0 = arith.constant 0 : i32
    %c0_i32_1 = arith.constant 0 : i32
    return %arg0, %c0_i32, %c0_i32_0 : i32, i32, i32
  }
  func.func @transform_12(%arg0: i32) -> (i32, i32, i32) {
    %c0_i32 = arith.constant 0 : i32
    %c0_i32_0 = arith.constant 0 : i32
    %c0_i32_1 = arith.constant 0 : i32
    return %arg0, %c0_i32, %c0_i32_0 : i32, i32, i32
  }
  func.func @transform_13(%arg0: i32) -> (i32, i32, i32) {
    %c0_i32 = arith.constant 0 : i32
    %c0_i32_0 = arith.constant 0 : i32
    %c0_i32_1 = arith.constant 0 : i32
    return %arg0, %c0_i32, %c0_i32_0 : i32, i32, i32
  }
}

</mosaic_0001>

<llo_original>
// kernel: tpu_custom_call.1
$region0: #{tpu_custom_call.1}
  #allocation0 [shape = 'u32[]', space=smem, size = 0x4, offset = 0x4, fixed_abs, tag = 'smem constant byte address 0x4 - core index']
  #allocation1 [shape = 'u32[144,128]{1,0:T(1,128)}', space=vmem, size = 0x12000, scoped, tag = 'internal scratch']
  %s0 = inlined_call_operand.hbm [shape: f32[1,16,32], index: 0, kind: input, shape index: {}]
  %s1 = inlined_call_operand.hbm [shape: f32[1,32,32], index: 1, kind: input, shape index: {}]
  %s2 = inlined_call_operand.hbm [shape: f32[1,16,16], index: 2, kind: input, shape index: {}]
  %s3 = inlined_call_operand.hbm [shape: f32[1,16,16], index: 3, kind: input, shape index: {}]
  %s4 = inlined_call_operand.hbm [shape: f32[1,16,32], index: 4, kind: input, shape index: {}]
  %s5 = inlined_call_operand.hbm [shape: bf16[64,1408], index: 5, kind: input, shape index: {}]
  %s6 = inlined_call_operand.hbm [shape: f32[24,128], index: 6, kind: input, shape index: {}]
  %s7 = inlined_call_operand.hbm [shape: f32[1,16,32], index: 7, kind: output, shape index: {0}]
  %s8 = inlined_call_operand.hbm [shape: f32[1,16,32], index: 8, kind: output, shape index: {1}]
  %s9 = inlined_call_operand.hbm [shape: f32[1,16,32], index: 9, kind: output, shape index: {2}]
  %s10 = inlined_call_operand.hbm [shape: f32[1,16,16], index: 10, kind: output, shape index: {3}]
  %s11 = inlined_call_operand.hbm [shape: f32[1,16,16], index: 11, kind: output, shape index: {4}]
  %s12 = inlined_call_operand.hbm [shape: f32[1,32,32], index: 12, kind: output, shape index: {5}]
  %s13 = inlined_call_operand.hbm [shape: f32[1,32,32], index: 13, kind: output, shape index: {6}]
  %14 = xla_tuple %s7, %s8, %s9, %s10, %s11, %s12, %s13
  %s15 = sld [smem:[#allocation0]]
  $region114: #{tpu_custom_call.1} parent=0
    _
  %s17 = ssub.s32 1, %s15
  %s18 = scalar_select 0, %s17, %s15
  $region1: #{tpu_custom_call.1} parent=0
    #allocation2 [shape = 'u8[8192]{0}', space=vmem, size = 0x2000, scoped, tag = 'input window, operand 0, single buffered']
    #allocation3 [shape = 's32[1]{0}', space=sflag, size = 0x4, scoped, tag = 'scoped memory for tpu_custom_call.1']
    #allocation4 [shape = 's32[1]{0}', space=sflag, size = 0x4, scoped, tag = 'scoped memory for tpu_custom_call.1']
    #allocation5 [shape = 'u8[16384]{0}', space=vmem, size = 0x4000, scoped, tag = 'input window, operand 1, single buffered']
    #allocation6 [shape = 's32[1]{0}', space=sflag, size = 0x4, scoped, tag = 'scoped memory for tpu_custom_call.1']
    #allocation7 [shape = 'u8[8192]{0}', space=vmem, size = 0x2000, scoped, tag = 'input window, operand 2, single buffered']
    #allocation8 [shape = 'u8[8192]{0}', space=vmem, size = 0x2000, scoped, tag = 'input window, operand 3, single buffered']
    #allocation9 [shape = 's32[1]{0}', space=sflag, size = 0x4, scoped, tag = 'scoped memory for tpu_custom_call.1']
    #allocation10 [shape = 'u8[8192]{0}', space=vmem, size = 0x2000, scoped, tag = 'input window, operand 4, single buffered']
    #allocation11 [shape = 'u8[180224]{0}', space=vmem, size = 0x2c000, scoped, tag = 'input window, operand 5, single buffered']
    #allocation12 [shape = 's32[1]{0}', space=sflag, size = 0x4, scoped, tag = 'scoped memory for tpu_custom_call.1']
    #allocation13 [shape = 'u8[12288]{0}', space=vmem, size = 0x3000, scoped, tag = 'input window, operand 6, single buffered']
    #allocation14 [shape = 'u8[8192]{0}', space=vmem, size = 0x2000, scoped, tag = 'output window, operand 0, single buffered']
    #allocation15 [shape = 'u8[8192]{0}', space=vmem, size = 0x2000, scoped, tag = 'output window, operand 1, single buffered']
    #allocation16 [shape = 's32[1]{0}', space=sflag, size = 0x4, scoped, tag = 'scoped memory for tpu_custom_call.1']
    #allocation17 [shape = 'u8[8192]{0}', space=vmem, size = 0x2000, scoped, tag = 'output window, operand 2, single buffered']
    #allocation18 [shape = 'u8[8192]{0}', space=vmem, size = 0x2000, scoped, tag = 'output window, operand 3, single buffered']
    #allocation19 [shape = 's32[1]{0}', space=sflag, size = 0x4, scoped, tag = 'scoped memory for tpu_custom_call.1']
    #allocation20 [shape = 'u8[8192]{0}', space=vmem, size = 0x2000, scoped, tag = 'output window, operand 4, single buffered']
    #allocation21 [shape = 'u8[16384]{0}', space=vmem, size = 0x4000, scoped, tag = 'output window, operand 5, single buffered']
    #allocation22 [shape = 's32[1]{0}', space=sflag, size = 0x4, scoped, tag = 'scoped memory for tpu_custom_call.1']
    #allocation23 [shape = 'u8[16384]{0}', space=vmem, size = 0x4000, scoped, tag = 'output window, operand 6, single buffered']
    %19 = vsyncpa [#allocation3], 0
    %20 = vsyncpa [#allocation6], 0
    %21 = vsyncpa [#allocation9], 0
    %22 = vsyncpa [#allocation12], 0
    %23 = vsyncpa [#allocation4], 0
    %24 = vsyncpa [#allocation16], 0
    %25 = vsyncpa [#allocation19], 0
    %26 = vsyncpa [#allocation22], 0
    // Predicated region
    $region2: #{tpu_custom_call.1} parent=1 // pred_check
      _
    $region3: #{tpu_custom_call.1} parent=1 // pred_check_branch
      %28 = sbr.rel (0) target = $region5
    $region4: #{tpu_custom_call.1} parent=1 // pred_region
      %s30 = ssub.s32 256, 256
      %31 = vsyncadd [#allocation3], %s30
      %s32 = sshll.u32 [#allocation2], 4
      %s33 = int_to_ptr.vmem [resolvable:$true] %s32
      %38 = dma.hbm_to_vmem [thread:$0]  %s0, 256, %s33, [#allocation3], 128, 128, 8
    $region5: #{tpu_custom_call.1} parent=1 // pred_fallthru
      _
    // Predicated region
    $region6: #{tpu_custom_call.1} parent=1 // pred_check
      _
    $region7: #{tpu_custom_call.1} parent=1 // pred_check_branch
      %40 = sbr.rel (0) target = $region9
    $region8: #{tpu_custom_call.1} parent=1 // pred_region
      %s42 = ssub.s32 512, 512
      %43 = vsyncadd [#allocation6], %s42
      %s44 = sshll.u32 [#allocation5], 4
      %s45 = int_to_ptr.vmem [resolvable:$true] %s44
      %50 = dma.hbm_to_vmem [thread:$0]  %s1, 512, %s45, [#allocation6], 128, 128, 8
    $region9: #{tpu_custom_call.1} parent=1 // pred_fallthru
      _
    // Predicated region
    $region10: #{tpu_custom_call.1} parent=1 // pred_check
      _
    $region11: #{tpu_custom_call.1} parent=1 // pred_check_branch
      %52 = sbr.rel (0) target = $region13
    $region12: #{tpu_custom_call.1} parent=1 // pred_region
      %s54 = ssub.s32 256, 256
      %55 = vsyncadd [#allocation6], %s54
      %s56 = sshll.u32 [#allocation7], 4
      %s57 = int_to_ptr.vmem [resolvable:$true] %s56
      %62 = dma.hbm_to_vmem [thread:$0]  %s2, 256, %s57, [#allocation6], 128, 128, 8
    $region13: #{tpu_custom_call.1} parent=1 // pred_fallthru
      _
    // Predicated region
    $region14: #{tpu_custom_call.1} parent=1 // pred_check
      _
    $region15: #{tpu_custom_call.1} parent=1 // pred_check_branch
      %64 = sbr.rel (0) target = $region17
    $region16: #{tpu_custom_call.1} parent=1 // pred_region
      %s66 = ssub.s32 256, 256
      %67 = vsyncadd [#allocation9], %s66
      %s68 = sshll.u32 [#allocation8], 4
      %s69 = int_to_ptr.vmem [resolvable:$true] %s68
      %74 = dma.hbm_to_vmem [thread:$0]  %s3, 256, %s69, [#allocation9], 128, 128, 8
    $region17: #{tpu_custom_call.1} parent=1 // pred_fallthru
      _
    // Predicated region
    $region18: #{tpu_custom_call.1} parent=1 // pred_check
      _
    $region19: #{tpu_custom_call.1} parent=1 // pred_check_branch
      %76 = sbr.rel (0) target = $region21
    $region20: #{tpu_custom_call.1} parent=1 // pred_region
      %s78 = ssub.s32 256, 256
      %79 = vsyncadd [#allocation9], %s78
      %s80 = sshll.u32 [#allocation10], 4
      %s81 = int_to_ptr.vmem [resolvable:$true] %s80
      %86 = dma.hbm_to_vmem [thread:$0]  %s4, 256, %s81, [#allocation9], 128, 128, 8
    $region21: #{tpu_custom_call.1} parent=1 // pred_fallthru
      _
    // Predicated region
    $region22: #{tpu_custom_call.1} parent=1 // pred_check
      _
    $region23: #{tpu_custom_call.1} parent=1 // pred_check_branch
      %88 = sbr.rel (0) target = $region25
    $region24: #{tpu_custom_call.1} parent=1 // pred_region
      %s90 = ssub.s32 5632, 5632
      %91 = vsyncadd [#allocation12], %s90
      %s92 = sshll.u32 [#allocation11], 4
      %s93 = int_to_ptr.vmem [resolvable:$true] %s92
      %98 = dma.hbm_to_vmem [thread:$0]  %s5, 5632, %s93, [#allocation12], 704, 704, 44
    $region25: #{tpu_custom_call.1} parent=1 // pred_fallthru
      _
    // Predicated region
    $region26: #{tpu_custom_call.1} parent=1 // pred_check
      _
    $region27: #{tpu_custom_call.1} parent=1 // pred_check_branch
      %100 = sbr.rel (0) target = $region29
    $region28: #{tpu_custom_call.1} parent=1 // pred_region
      %s102 = ssub.s32 384, 384
      %103 = vsyncadd [#allocation12], %s102
      %s104 = sshll.u32 [#allocation13], 4
      %s105 = int_to_ptr.vmem [resolvable:$true] %s104
      %110 = dma.hbm_to_vmem [thread:$0]  %s6, 384, %s105, [#allocation12], 128, 128, 8
    $region29: #{tpu_custom_call.1} parent=1 // pred_fallthru
      _
    // Predicated region
    $region30: #{tpu_custom_call.1} parent=1 // pred_check
      _
    $region31: #{tpu_custom_call.1} parent=1 // pred_check_branch
      %112 = sbr.rel (0) target = $region33
    $region32: #{tpu_custom_call.1} parent=1 // pred_region
      %113 = dma.done [#allocation3], 256
    $region33: #{tpu_custom_call.1} parent=1 // pred_fallthru
      _
    // Predicated region
    $region34: #{tpu_custom_call.1} parent=1 // pred_check
      _
    $region35: #{tpu_custom_call.1} parent=1 // pred_check_branch
      %115 = sbr.rel (0) target = $region37
    $region36: #{tpu_custom_call.1} parent=1 // pred_region
      %116 = dma.done [#allocation6], 512
    $region37: #{tpu_custom_call.1} parent=1 // pred_fallthru
      _
    // Predicated region
    $region38: #{tpu_custom_call.1} parent=1 // pred_check
      _
    $region39: #{tpu_custom_call.1} parent=1 // pred_check_branch
      %118 = sbr.rel (0) target = $region41
    $region40: #{tpu_custom_call.1} parent=1 // pred_region
      %119 = dma.done [#allocation6], 256
    $region41: #{tpu_custom_call.1} parent=1 // pred_fallthru
      _
    // Predicated region
    $region42: #{tpu_custom_call.1} parent=1 // pred_check
      _
    $region43: #{tpu_custom_call.1} parent=1 // pred_check_branch
      %121 = sbr.rel (0) target = $region45
    $region44: #{tpu_custom_call.1} parent=1 // pred_region
      %122 = dma.done [#allocation9], 256
    $region45: #{tpu_custom_call.1} parent=1 // pred_fallthru
      _
    // Predicated region
    $region46: #{tpu_custom_call.1} parent=1 // pred_check
      _
    $region47: #{tpu_custom_call.1} parent=1 // pred_check_branch
      %124 = sbr.rel (0) target = $region49
    $region48: #{tpu_custom_call.1} parent=1 // pred_region
      %125 = dma.done [#allocation9], 256
    $region49: #{tpu_custom_call.1} parent=1 // pred_fallthru
      _
    // Predicated region
    $region50: #{tpu_custom_call.1} parent=1 // pred_check
      _
    $region51: #{tpu_custom_call.1} parent=1 // pred_check_branch
      %127 = sbr.rel (0) target = $region53
    $region52: #{tpu_custom_call.1} parent=1 // pred_region
      %128 = dma.done [#allocation12], 5632
    $region53: #{tpu_custom_call.1} parent=1 // pred_fallthru
      _
    // Predicated region
    $region54: #{tpu_custom_call.1} parent=1 // pred_check
      _
    $region55: #{tpu_custom_call.1} parent=1 // pred_check_branch
      %130 = sbr.rel (0) target = $region57
    $region56: #{tpu_custom_call.1} parent=1 // pred_region
      %131 = dma.done [#allocation12], 384
    $region57: #{tpu_custom_call.1} parent=1 // pred_fallthru
      _
    %v133 = vld [vmem:[#allocation2] sm:$0xff]
    %v134 = vld [vmem:[#allocation2 + $0x8] sm:$0xff]
    %v135 = vpack.c.bf16 %v134, %v133
    %v136 = vld [vmem:[#allocation7] sm:$0xff]
    %v137 = vld [vmem:[#allocation7 + $0x8] sm:$0xff]
    %v138 = vld [vmem:[#allocation8] sm:$0xff]
    %v139 = vld [vmem:[#allocation8 + $0x8] sm:$0xff]
    %v140 = vld [vmem:[#allocation10] sm:$0xff]
    %v141 = vld [vmem:[#allocation10 + $0x8] sm:$0xff]
    %v142 = vld [vmem:[#allocation11] sm:$0xf]
    %v143 = vld [vmem:[#allocation11 + $0x2c] sm:$0xf]
    %v144 = vld [vmem:[#allocation11 + $0x58] sm:$0xf]
    %v145 = vld [vmem:[#allocation11 + $0x84] sm:$0xf]
    %v146 = vld [vmem:[#allocation13] sm:$0x1]
    %v147 = vlaneseq
    %v148 = vshrl.u32 %v147, 7
    %v149 = vsub.s32 0, %v148
    %v150 = vrot.slane %v146, %v149
    %v155 = vunpack.c.l.b16 %v142
    %v156 = vunpack.c.l.b16 %v143
    %v157 = vunpack.c.l.b16 %v144
    %v158 = vunpack.c.l.b16 %v145
    %v159 = vpack.c.b16 %v156, %v155
    %v160 = vpack.c.b16 %v158, %v157
    %vm163 = vcmask 261120
    %v165 = vsel %vm163, %v135, 0
    %167 = vmatprep.subr.bf16.mxu0 0
    %168 = vmatpush1.bf16.msra.mxu0 0
    %169 = vmatprep.subr.bf16.mxu0 0
    %170 = vmatpush1.bf16.msra.mxu0 0
    %171 = vmatprep.subr.bf16.mxu0 0
    %172 = vmatpush1.bf16.msra.mxu0 0
    %173 = vmatprep.subr.bf16.mxu0 0
    %174 = vmatpush1.bf16.msra.mxu0 0
    %175 = vmatprep.subr.bf16.mxu0 0
    %176 = vmatpush1.bf16.msra.mxu0 0
    %177 = vmatprep.subr.bf16.mxu0 0
    %178 = vmatpush1.bf16.msra.mxu0 0
    %179 = vmatprep.subr.bf16.mxu0 0
    %180 = vmatpush1.bf16.msra.mxu0 %v160
    %181 = vmatprep.subr.bf16.mxu0 0
    %182 = vmatpush1.bf16.msra.mxu0 %v159
    %183 = vmatprep.subr.bf16.mxu0 0
    %184 = vmatpush2.bf16.msra.mxu0 0
    %185 = vmatprep.subr.bf16.mxu0 0
    %186 = vmatpush2.bf16.msra.mxu0 0
    %187 = vmatprep.subr.bf16.mxu0 0
    %188 = vmatpush2.bf16.msra.mxu0 0
    %189 = vmatprep.subr.bf16.mxu0 0
    %190 = vmatpush2.bf16.msra.mxu0 0
    %191 = vmatprep.subr.bf16.mxu0 0
    %192 = vmatpush2.bf16.msra.mxu0 0
    %193 = vmatprep.subr.bf16.mxu0 0
    %194 = vmatpush2.bf16.msra.mxu0 0
    %195 = vmatprep.subr.bf16.mxu0 0
    %196 = vmatpush2.bf16.msra.mxu0 0
    %197 = vmatprep.subr.bf16.mxu0 0
    %198 = vmatpush2.bf16.msra.mxu0 0
    %199 = vmatprep.mubr.bf16.mxu0 0
    %200 = vmatmul.mubr.bf16.gmra.mxu0 %v165
    %v201 = vpop.f32.mrf.mxu0
    %v202 = vadd.f32 %v150, %v201
    %v203 = vpop.f32.mrf.mxu0
    %v204 = vpop.f32.mrf.mxu0
    %v205 = vadd.f32 %v150, %v204
    %v206 = vpop.f32.mrf.mxu0
    %207 = vdwg.mxu0
    %210 = vrot.lane.b32.xlu0 %v202, 96
    %v211 = vpop.permute.xlu0 %210
    %212 = vrot.lane.b32.xlu0 %v205, 96
    %v213 = vpop.permute.xlu0 %212
    %216 = vst.msk [vmem:[#allocation15] sm:$0xff] %vm163, %v211
    %217 = vst.msk [vmem:[#allocation15 + $0x8] sm:$0xff] %vm163, %v213
    %218 = vrot.lane.b32.xlu0 %v202, 64
    %v219 = vpop.permute.xlu0 %218
    %220 = vrot.lane.b32.xlu0 %v205, 64
    %v221 = vpop.permute.xlu0 %220
    %224 = vst.msk [vmem:[#allocation17] sm:$0xff] %vm163, %v219
    %225 = vst.msk [vmem:[#allocation17 + $0x8] sm:$0xff] %vm163, %v221
    %v226 = vld [vmem:[#allocation11 + $0x4] sm:$0xf]
    %v227 = vld [vmem:[#allocation11 + $0x30] sm:$0xf]
    %v228 = vld [vmem:[#allocation11 + $0x5c] sm:$0xf]
    %v229 = vld [vmem:[#allocation11 + $0x88] sm:$0xf]
    %v230 = vld [vmem:[#allocation13 + $0x1] sm:$0x1]
    %v231 = vpack.c.bf16 %v205, %v202
    %233 = vrot.lane.b32.xlu0 %v231, 96
    %v234 = vpop.permute.xlu0 %233
    %vm235 = vcmask 64512
    %v237 = vsel %vm235, %v231, 0
    %v240 = vsel %vm235, %v234, 0
    %242 = vmatprep.subr.bf16.mxu0 0
    %243 = vmatpush1.bf16.xpose.msra.mxu0 0
    %244 = vmatprep.subr.bf16.mxu0 0
    %245 = vmatpush1.bf16.xpose.msra.mxu0 0
    %246 = vmatprep.subr.bf16.mxu0 0
    %247 = vmatpush1.bf16.xpose.msra.mxu0 0
    %248 = vmatprep.subr.bf16.mxu0 0
    %249 = vmatpush1.bf16.xpose.msra.mxu0 0
    %250 = vmatprep.subr.bf16.mxu0 0
    %251 = vmatpush1.bf16.xpose.msra.mxu0 0
    %252 = vmatprep.subr.bf16.mxu0 0
    %253 = vmatpush1.bf16.xpose.msra.mxu0 0
    %254 = vmatprep.subr.bf16.mxu0 0
    %255 = vmatpush1.bf16.xpose.msra.mxu0 0
    %256 = vmatprep.subr.bf16.mxu0 0
    %257 = vmatpush1.bf16.xpose.msra.mxu0 %v240
    %258 = vmatprep.subr.bf16.mxu0 0
    %259 = vmatpush2.bf16.xpose.msra.mxu0 0
    %260 = vmatprep.subr.bf16.mxu0 0
    %261 = vmatpush2.bf16.xpose.msra.mxu0 0
    %262 = vmatprep.subr.bf16.mxu0 0
    %263 = vmatpush2.bf16.xpose.msra.mxu0 0
    %264 = vmatprep.subr.bf16.mxu0 0
    %265 = vmatpush2.bf16.xpose.msra.mxu0 0
    %266 = vmatprep.subr.bf16.mxu0 0
    %267 = vmatpush2.bf16.xpose.msra.mxu0 0
    %268 = vmatprep.subr.bf16.mxu0 0
    %269 = vmatpush2.bf16.xpose.msra.mxu0 0
    %270 = vmatprep.subr.bf16.mxu0 0
    %271 = vmatpush2.bf16.xpose.msra.mxu0 0
    %272 = vmatprep.subr.bf16.mxu0 0
    %273 = vmatpush2.bf16.xpose.msra.mxu0 0
    %274 = vmatprep.mubr.bf16.mxu0 0
    %275 = vmatmul.mubr.bf16.gmra.mxu0 %v237
    %v276 = vpop.f32.mrf.mxu0
    %v277 = vadd.f32 %v136, %v276
    %v278 = vpop.f32.mrf.mxu0
    %v279 = vpop.f32.mrf.mxu0
    %v280 = vadd.f32 %v137, %v279
    %v281 = vpop.f32.mrf.mxu0
    %282 = vdwg.mxu0
    %283 = vrot.lane.b32.xlu0 %v231, 120
    %v284 = vpop.permute.xlu0 %283
    %285 = vrot.lane.b32.xlu0 %v231, 88
    %v286 = vpop.permute.xlu0 %285
    %v288 = vsel %vm235, %v284, 0
    %v291 = vsel %vm235, %v286, 0
    %293 = vmatprep.subr.bf16.mxu0 0
    %294 = vmatpush1.bf16.xpose.msra.mxu0 0
    %295 = vmatprep.subr.bf16.mxu0 0
    %296 = vmatpush1.bf16.xpose.msra.mxu0 0
    %297 = vmatprep.subr.bf16.mxu0 0
    %298 = vmatpush1.bf16.xpose.msra.mxu0 0
    %299 = vmatprep.subr.bf16.mxu0 0
    %300 = vmatpush1.bf16.xpose.msra.mxu0 0
    %301 = vmatprep.subr.bf16.mxu0 0
    %302 = vmatpush1.bf16.xpose.msra.mxu0 0
    %303 = vmatprep.subr.bf16.mxu0 0
    %304 = vmatpush1.bf16.xpose.msra.mxu0 0
    %305 = vmatprep.subr.bf16.mxu0 0
    %306 = vmatpush1.bf16.xpose.msra.mxu0 0
    %307 = vmatprep.subr.bf16.mxu0 0
    %308 = vmatpush1.bf16.xpose.msra.mxu0 %v291
    %309 = vmatprep.subr.bf16.mxu0 0
    %310 = vmatpush2.bf16.xpose.msra.mxu0 0
    %311 = vmatprep.subr.bf16.mxu0 0
    %312 = vmatpush2.bf16.xpose.msra.mxu0 0
    %313 = vmatprep.subr.bf16.mxu0 0
    %314 = vmatpush2.bf16.xpose.msra.mxu0 0
    %315 = vmatprep.subr.bf16.mxu0 0
    %316 = vmatpush2.bf16.xpose.msra.mxu0 0
    %317 = vmatprep.subr.bf16.mxu0 0
    %318 = vmatpush2.bf16.xpose.msra.mxu0 0
    %319 = vmatprep.subr.bf16.mxu0 0
    %320 = vmatpush2.bf16.xpose.msra.mxu0 0
    %321 = vmatprep.subr.bf16.mxu0 0
    %322 = vmatpush2.bf16.xpose.msra.mxu0 0
    %323 = vmatprep.subr.bf16.mxu0 0
    %324 = vmatpush2.bf16.xpose.msra.mxu0 0
    %325 = vmatprep.mubr.bf16.mxu0 0
    %326 = vmatmul.mubr.bf16.gmra.mxu0 %v288
    %v327 = vpop.f32.mrf.mxu0
    %v328 = vadd.f32 %v136, %v327
    %v329 = vpop.f32.mrf.mxu0
    %v330 = vpop.f32.mrf.mxu0
    %v331 = vadd.f32 %v137, %v330
    %v332 = vpop.f32.mrf.mxu0
    %333 = vdwg.mxu0
    %334 = vrot.lane.b32.xlu0 %v231, 112
    %v335 = vpop.permute.xlu0 %334
    %336 = vrot.lane.b32.xlu0 %v231, 80
    %v337 = vpop.permute.xlu0 %336
    %v339 = vsel %vm235, %v335, 0
    %v342 = vsel %vm235, %v337, 0
    %344 = vmatprep.subr.bf16.mxu0 0
    %345 = vmatpush1.bf16.xpose.msra.mxu0 0
    %346 = vmatprep.subr.bf16.mxu0 0
    %347 = vmatpush1.bf16.xpose.msra.mxu0 0
    %348 = vmatprep.subr.bf16.mxu0 0
    %349 = vmatpush1.bf16.xpose.msra.mxu0 0
    %350 = vmatprep.subr.bf16.mxu0 0
    %351 = vmatpush1.bf16.xpose.msra.mxu0 0
    %352 = vmatprep.subr.bf16.mxu0 0
    %353 = vmatpush1.bf16.xpose.msra.mxu0 0
    %354 = vmatprep.subr.bf16.mxu0 0
    %355 = vmatpush1.bf16.xpose.msra.mxu0 0
    %356 = vmatprep.subr.bf16.mxu0 0
    %357 = vmatpush1.bf16.xpose.msra.mxu0 0
    %358 = vmatprep.subr.bf16.mxu0 0
    %359 = vmatpush1.bf16.xpose.msra.mxu0 %v342
    %360 = vmatprep.subr.bf16.mxu0 0
    %361 = vmatpush2.bf16.xpose.msra.mxu0 0
    %362 = vmatprep.subr.bf16.mxu0 0
    %363 = vmatpush2.bf16.xpose.msra.mxu0 0
    %364 = vmatprep.subr.bf16.mxu0 0
    %365 = vmatpush2.bf16.xpose.msra.mxu0 0
    %366 = vmatprep.subr.bf16.mxu0 0
    %367 = vmatpush2.bf16.xpose.msra.mxu0 0
    %368 = vmatprep.subr.bf16.mxu0 0
    %369 = vmatpush2.bf16.xpose.msra.mxu0 0
    %370 = vmatprep.subr.bf16.mxu0 0
    %371 = vmatpush2.bf16.xpose.msra.mxu0 0
    %372 = vmatprep.subr.bf16.mxu0 0
    %373 = vmatpush2.bf16.xpose.msra.mxu0 0
    %374 = vmatprep.subr.bf16.mxu0 0
    %375 = vmatpush2.bf16.xpose.msra.mxu0 0
    %376 = vmatprep.mubr.bf16.mxu0 0
    %377 = vmatmul.mubr.bf16.gmra.mxu0 %v339
    %v378 = vpop.f32.mrf.mxu0
    %v379 = vadd.f32 %v136, %v378
    %v380 = vpop.f32.mrf.mxu0
    %v381 = vpop.f32.mrf.mxu0
    %v382 = vadd.f32 %v137, %v381
    %v383 = vpop.f32.mrf.mxu0
    %384 = vdwg.mxu0
    %385 = vrot.lane.b32.xlu0 %v231, 104
    %v386 = vpop.permute.xlu0 %385
    %387 = vrot.lane.b32.xlu0 %v231, 72
    %v388 = vpop.permute.xlu0 %387
    %v390 = vsel %vm235, %v386, 0
    %v393 = vsel %vm235, %v388, 0
    %395 = vmatprep.subr.bf16.mxu0 0
    %396 = vmatpush1.bf16.xpose.msra.mxu0 0
    %397 = vmatprep.subr.bf16.mxu0 0
    %398 = vmatpush1.bf16.xpose.msra.mxu0 0
    %399 = vmatprep.subr.bf16.mxu0 0
    %400 = vmatpush1.bf16.xpose.msra.mxu0 0
    %401 = vmatprep.subr.bf16.mxu0 0
    %402 = vmatpush1.bf16.xpose.msra.mxu0 0
    %403 = vmatprep.subr.bf16.mxu0 0
    %404 = vmatpush1.bf16.xpose.msra.mxu0 0
    %405 = vmatprep.subr.bf16.mxu0 0
    %406 = vmatpush1.bf16.xpose.msra.mxu0 0
    %407 = vmatprep.subr.bf16.mxu0 0
    %408 = vmatpush1.bf16.xpose.msra.mxu0 0
    %409 = vmatprep.subr.bf16.mxu0 0
    %410 = vmatpush1.bf16.xpose.msra.mxu0 %v393
    %411 = vmatprep.subr.bf16.mxu0 0
    %412 = vmatpush2.bf16.xpose.msra.mxu0 0
    %413 = vmatprep.subr.bf16.mxu0 0
    %414 = vmatpush2.bf16.xpose.msra.mxu0 0
    %415 = vmatprep.subr.bf16.mxu0 0
    %416 = vmatpush2.bf16.xpose.msra.mxu0 0
    %417 = vmatprep.subr.bf16.mxu0 0
    %418 = vmatpush2.bf16.xpose.msra.mxu0 0
    %419 = vmatprep.subr.bf16.mxu0 0
    %420 = vmatpush2.bf16.xpose.msra.mxu0 0
    %421 = vmatprep.subr.bf16.mxu0 0
    %422 = vmatpush2.bf16.xpose.msra.mxu0 0
    %423 = vmatprep.subr.bf16.mxu0 0
    %424 = vmatpush2.bf16.xpose.msra.mxu0 0
    %425 = vmatprep.subr.bf16.mxu0 0
    %426 = vmatpush2.bf16.xpose.msra.mxu0 0
    %427 = vmatprep.mubr.bf16.mxu0 0
    %428 = vmatmul.mubr.bf16.gmra.mxu0 %v390
    %v429 = vpop.f32.mrf.mxu0
    %v430 = vadd.f32 %v136, %v429
    %v431 = vpop.f32.mrf.mxu0
    %v432 = vpop.f32.mrf.mxu0
    %v433 = vadd.f32 %v137, %v432
    %v434 = vpop.f32.mrf.mxu0
    %435 = vdwg.mxu0
    %vm436 = vcmask 130048
    %v437 = vsel %vm436, %v277, -inf
    %438 = vmax.xlane.f32.xlu0 %v437
    %v439 = vpop.xlane.xlu0 %438
    %v440 = vsel %vm436, %v280, -inf
    %441 = vmax.xlane.f32.xlu0 %v440
    %v442 = vpop.xlane.xlu0 %441
    %v443 = vsel %vm436, %v328, -inf
    %444 = vmax.xlane.f32.xlu0 %v443
    %v445 = vpop.xlane.xlu0 %444
    %v446 = vsel %vm436, %v331, -inf
    %447 = vmax.xlane.f32.xlu0 %v446
    %v448 = vpop.xlane.xlu0 %447
    %v449 = vsel %vm436, %v379, -inf
    %450 = vmax.xlane.f32.xlu0 %v449
    %v451 = vpop.xlane.xlu0 %450
    %v452 = vsel %vm436, %v382, -inf
    %453 = vmax.xlane.f32.xlu0 %v452
    %v454 = vpop.xlane.xlu0 %453
    %v455 = vsel %vm436, %v430, -inf
    %456 = vmax.xlane.f32.xlu0 %v455
    %v457 = vpop.xlane.xlu0 %456
    %v458 = vsel %vm436, %v433, -inf
    %459 = vmax.xlane.f32.xlu0 %v458
    %v460 = vpop.xlane.xlu0 %459
    %v461 = vsub.f32 %v277, %v439
    %v462 = vsub.f32 %v280, %v442
    %v463 = vsub.f32 %v328, %v445
    %v464 = vsub.f32 %v331, %v448
    %v465 = vsub.f32 %v379, %v451
    %v466 = vsub.f32 %v382, %v454
    %v467 = vsub.f32 %v430, %v457
    %v468 = vsub.f32 %v433, %v460
    %v469 = vmul.f32 %v461, 1.442695
    %v470 = vpow.pop %v469
    %v471 = vmul.f32 %v462, 1.442695
    %v472 = vpow.pop %v471
    %v473 = vmul.f32 %v463, 1.442695
    %v474 = vpow.pop %v473
    %v475 = vmul.f32 %v464, 1.442695
    %v476 = vpow.pop %v475
    %v477 = vmul.f32 %v465, 1.442695
    %v478 = vpow.pop %v477
    %v479 = vmul.f32 %v466, 1.442695
    %v480 = vpow.pop %v479
    %v481 = vmul.f32 %v467, 1.442695
    %v482 = vpow.pop %v481
    %v483 = vmul.f32 %v468, 1.442695
    %v484 = vpow.pop %v483
    %v485 = vsel %vm436, %v470, 0.0
    %486 = vadd.xlane.f32.xlu0 %v485
    %v487 = vpop.xlane.xlu0 %486
    %v488 = vsel %vm436, %v472, 0.0
    %489 = vadd.xlane.f32.xlu0 %v488
    %v490 = vpop.xlane.xlu0 %489
    %v491 = vsel %vm436, %v474, 0.0
    %492 = vadd.xlane.f32.xlu0 %v491
    %v493 = vpop.xlane.xlu0 %492
    %v494 = vsel %vm436, %v476, 0.0
    %495 = vadd.xlane.f32.xlu0 %v494
    %v496 = vpop.xlane.xlu0 %495
    %v497 = vsel %vm436, %v478, 0.0
    %498 = vadd.xlane.f32.xlu0 %v497
    %v499 = vpop.xlane.xlu0 %498
    %v500 = vsel %vm436, %v480, 0.0
    %501 = vadd.xlane.f32.xlu0 %v500
    %v502 = vpop.xlane.xlu0 %501
    %v503 = vsel %vm436, %v482, 0.0
    %504 = vadd.xlane.f32.xlu0 %v503
    %v505 = vpop.xlane.xlu0 %504
    %v506 = vsel %vm436, %v484, 0.0
    %507 = vadd.xlane.f32.xlu0 %v506
    %v508 = vpop.xlane.xlu0 %507
    %v509 = vrcp.pop %v487
    %v510 = vrcp.pop %v490
    %v511 = vrcp.pop %v493
    %v512 = vrcp.pop %v496
    %v513 = vrcp.pop %v499
    %v514 = vrcp.pop %v502
    %v515 = vrcp.pop %v505
    %v516 = vrcp.pop %v508
    %v517 = vmul.f32 %v470, %v509
    %v518 = vmul.f32 %v472, %v510
    %v519 = vmul.f32 %v474, %v511
    %v520 = vmul.f32 %v476, %v512
    %v521 = vmul.f32 %v478, %v513
    %v522 = vmul.f32 %v480, %v514
    %v523 = vmul.f32 %v482, %v515
    %v524 = vmul.f32 %v484, %v516
    %v525 = vpack.c.bf16 %v518, %v517
    %v526 = vpack.c.bf16 %v520, %v519
    %v527 = vpack.c.bf16 %v522, %v521
    %v528 = vpack.c.bf16 %v524, %v523
    %529 = vrot.lane.b32.xlu0 %v231, 64
    %v530 = vpop.permute.xlu0 %529
    %v533 = vsel %vm436, %v525, 0
    %535 = vmatprep.subr.bf16.mxu0 0
    %536 = vmatpush1.bf16.msra.mxu0 0
    %537 = vmatprep.subr.bf16.mxu0 0
    %538 = vmatpush1.bf16.msra.mxu0 0
    %539 = vmatprep.subr.bf16.mxu0 0
    %540 = vmatpush1.bf16.msra.mxu0 0
    %541 = vmatprep.subr.bf16.mxu0 0
    %542 = vmatpush1.bf16.msra.mxu0 0
    %543 = vmatprep.subr.bf16.mxu0 0
    %544 = vmatpush1.bf16.msra.mxu0 0
    %545 = vmatprep.subr.bf16.mxu0 0
    %546 = vmatpush1.bf16.msra.mxu0 0
    %547 = vmatprep.subr.bf16.mxu0 0
    %548 = vmatpush1.bf16.msra.mxu0 0
    %549 = vmatprep.subr.bf16.mxu0 0
    %550 = vmatpush1.bf16.msra.mxu0 %v530
    %551 = vmatprep.subr.bf16.mxu0 0
    %552 = vmatpush2.bf16.msra.mxu0 0
    %553 = vmatprep.subr.bf16.mxu0 0
    %554 = vmatpush2.bf16.msra.mxu0 0
    %555 = vmatprep.subr.bf16.mxu0 0
    %556 = vmatpush2.bf16.msra.mxu0 0
    %557 = vmatprep.subr.bf16.mxu0 0
    %558 = vmatpush2.bf16.msra.mxu0 0
    %559 = vmatprep.subr.bf16.mxu0 0
    %560 = vmatpush2.bf16.msra.mxu0 0
    %561 = vmatprep.subr.bf16.mxu0 0
    %562 = vmatpush2.bf16.msra.mxu0 0
    %563 = vmatprep.subr.bf16.mxu0 0
    %564 = vmatpush2.bf16.msra.mxu0 0
    %565 = vmatprep.subr.bf16.mxu0 0
    %566 = vmatpush2.bf16.msra.mxu0 0
    %567 = vmatprep.mubr.bf16.mxu0 0
    %568 = vmatmul.mubr.bf16.gmra.mxu0 %v533
    %v569 = vpop.f32.mrf.mxu0
    %v570 = vadd.f32 0.0, %v569
    %v571 = vpop.f32.mrf.mxu0
    %v572 = vpop.f32.mrf.mxu0
    %v573 = vadd.f32 0.0, %v572
    %v574 = vpop.f32.mrf.mxu0
    %575 = vdwg.mxu0
    %576 = vrot.lane.b32.xlu0 %v231, 56
    %v577 = vpop.permute.xlu0 %576
    %v580 = vsel %vm436, %v526, 0
    %582 = vmatprep.subr.bf16.mxu0 0
    %583 = vmatpush1.bf16.msra.mxu0 0
    %584 = vmatprep.subr.bf16.mxu0 0
    %585 = vmatpush1.bf16.msra.mxu0 0
    %586 = vmatprep.subr.bf16.mxu0 0
    %587 = vmatpush1.bf16.msra.mxu0 0
    %588 = vmatprep.subr.bf16.mxu0 0
    %589 = vmatpush1.bf16.msra.mxu0 0
    %590 = vmatprep.subr.bf16.mxu0 0
    %591 = vmatpush1.bf16.msra.mxu0 0
    %592 = vmatprep.subr.bf16.mxu0 0
    %593 = vmatpush1.bf16.msra.mxu0 0
    %594 = vmatprep.subr.bf16.mxu0 0
    %595 = vmatpush1.bf16.msra.mxu0 0
    %596 = vmatprep.subr.bf16.mxu0 0
    %597 = vmatpush1.bf16.msra.mxu0 %v577
    %598 = vmatprep.subr.bf16.mxu0 0
    %599 = vmatpush2.bf16.msra.mxu0 0
    %600 = vmatprep.subr.bf16.mxu0 0
    %601 = vmatpush2.bf16.msra.mxu0 0
    %602 = vmatprep.subr.bf16.mxu0 0
    %603 = vmatpush2.bf16.msra.mxu0 0
    %604 = vmatprep.subr.bf16.mxu0 0
    %605 = vmatpush2.bf16.msra.mxu0 0
    %606 = vmatprep.subr.bf16.mxu0 0
    %607 = vmatpush2.bf16.msra.mxu0 0
    %608 = vmatprep.subr.bf16.mxu0 0
    %609 = vmatpush2.bf16.msra.mxu0 0
    %610 = vmatprep.subr.bf16.mxu0 0
    %611 = vmatpush2.bf16.msra.mxu0 0
    %612 = vmatprep.subr.bf16.mxu0 0
    %613 = vmatpush2.bf16.msra.mxu0 0
    %614 = vmatprep.mubr.bf16.mxu0 0
    %615 = vmatmul.mubr.bf16.gmra.mxu0 %v580
    %v616 = vpop.f32.mrf.mxu0
    %v617 = vadd.f32 0.0, %v616
    %v618 = vpop.f32.mrf.mxu0
    %v619 = vpop.f32.mrf.mxu0
    %v620 = vadd.f32 0.0, %v619
    %v621 = vpop.f32.mrf.mxu0
    %622 = vdwg.mxu0
    %623 = vrot.lane.b32.xlu0 %v231, 48
    %v624 = vpop.permute.xlu0 %623
    %v627 = vsel %vm436, %v527, 0
    %629 = vmatprep.subr.bf16.mxu0 0
    %630 = vmatpush1.bf16.msra.mxu0 0
    %631 = vmatprep.subr.bf16.mxu0 0
    %632 = vmatpush1.bf16.msra.mxu0 0
    %633 = vmatprep.subr.bf16.mxu0 0
    %634 = vmatpush1.bf16.msra.mxu0 0
    %635 = vmatprep.subr.bf16.mxu0 0
    %636 = vmatpush1.bf16.msra.mxu0 0
    %637 = vmatprep.subr.bf16.mxu0 0
    %638 = vmatpush1.bf16.msra.mxu0 0
    %639 = vmatprep.subr.bf16.mxu0 0
    %640 = vmatpush1.bf16.msra.mxu0 0
    %641 = vmatprep.subr.bf16.mxu0 0
    %642 = vmatpush1.bf16.msra.mxu0 0
    %643 = vmatprep.subr.bf16.mxu0 0
    %644 = vmatpush1.bf16.msra.mxu0 %v624
    %645 = vmatprep.subr.bf16.mxu0 0
    %646 = vmatpush2.bf16.msra.mxu0 0
    %647 = vmatprep.subr.bf16.mxu0 0
    %648 = vmatpush2.bf16.msra.mxu0 0
    %649 = vmatprep.subr.bf16.mxu0 0
    %650 = vmatpush2.bf16.msra.mxu0 0
    %651 = vmatprep.subr.bf16.mxu0 0
    %652 = vmatpush2.bf16.msra.mxu0 0
    %653 = vmatprep.subr.bf16.mxu0 0
    %654 = vmatpush2.bf16.msra.mxu0 0
    %655 = vmatprep.subr.bf16.mxu0 0
    %656 = vmatpush2.bf16.msra.mxu0 0
    %657 = vmatprep.subr.bf16.mxu0 0
    %658 = vmatpush2.bf16.msra.mxu0 0
    %659 = vmatprep.subr.bf16.mxu0 0
    %660 = vmatpush2.bf16.msra.mxu0 0
    %661 = vmatprep.mubr.bf16.mxu0 0
    %662 = vmatmul.mubr.bf16.gmra.mxu0 %v627
    %v663 = vpop.f32.mrf.mxu0
    %v664 = vadd.f32 0.0, %v663
    %v665 = vpop.f32.mrf.mxu0
    %v666 = vpop.f32.mrf.mxu0
    %v667 = vadd.f32 0.0, %v666
    %v668 = vpop.f32.mrf.mxu0
    %669 = vdwg.mxu0
    %670 = vrot.lane.b32.xlu0 %v231, 40
    %v671 = vpop.permute.xlu0 %670
    %v674 = vsel %vm436, %v528, 0
    %676 = vmatprep.subr.bf16.mxu0 0
    %677 = vmatpush1.bf16.msra.mxu0 0
    %678 = vmatprep.subr.bf16.mxu0 0
    %679 = vmatpush1.bf16.msra.mxu0 0
    %680 = vmatprep.subr.bf16.mxu0 0
    %681 = vmatpush1.bf16.msra.mxu0 0
    %682 = vmatprep.subr.bf16.mxu0 0
    %683 = vmatpush1.bf16.msra.mxu0 0
    %684 = vmatprep.subr.bf16.mxu0 0
    %685 = vmatpush1.bf16.msra.mxu0 0
    %686 = vmatprep.subr.bf16.mxu0 0
    %687 = vmatpush1.bf16.msra.mxu0 0
    %688 = vmatprep.subr.bf16.mxu0 0
    %689 = vmatpush1.bf16.msra.mxu0 0
    %690 = vmatprep.subr.bf16.mxu0 0
    %691 = vmatpush1.bf16.msra.mxu0 %v671
    %692 = vmatprep.subr.bf16.mxu0 0
    %693 = vmatpush2.bf16.msra.mxu0 0
    %694 = vmatprep.subr.bf16.mxu0 0
    %695 = vmatpush2.bf16.msra.mxu0 0
    %696 = vmatprep.subr.bf16.mxu0 0
    %697 = vmatpush2.bf16.msra.mxu0 0
    %698 = vmatprep.subr.bf16.mxu0 0
    %699 = vmatpush2.bf16.msra.mxu0 0
    %700 = vmatprep.subr.bf16.mxu0 0
    %701 = vmatpush2.bf16.msra.mxu0 0
    %702 = vmatprep.subr.bf16.mxu0 0
    %703 = vmatpush2.bf16.msra.mxu0 0
    %704 = vmatprep.subr.bf16.mxu0 0
    %705 = vmatpush2.bf16.msra.mxu0 0
    %706 = vmatprep.subr.bf16.mxu0 0
    %707 = vmatpush2.bf16.msra.mxu0 0
    %708 = vmatprep.mubr.bf16.mxu0 0
    %709 = vmatmul.mubr.bf16.gmra.mxu0 %v674
    %v710 = vpop.f32.mrf.mxu0
    %v711 = vadd.f32 0.0, %v710
    %v712 = vpop.f32.mrf.mxu0
    %v713 = vpop.f32.mrf.mxu0
    %v714 = vadd.f32 0.0, %v713
    %v715 = vpop.f32.mrf.mxu0
    %716 = vdwg.mxu0
    %719 = vrot.lane.b32.xlu0 %v617, 8
    %v720 = vpop.permute.xlu0 %719
    %721 = vrot.lane.b32.xlu0 %v620, 8
    %v722 = vpop.permute.xlu0 %721
    %727 = vrot.lane.b32.xlu0 %v664, 16
    %v728 = vpop.permute.xlu0 %727
    %729 = vrot.lane.b32.xlu0 %v667, 16
    %v730 = vpop.permute.xlu0 %729
    %735 = vrot.lane.b32.xlu0 %v711, 24
    %v736 = vpop.permute.xlu0 %735
    %737 = vrot.lane.b32.xlu0 %v714, 24
    %v738 = vpop.permute.xlu0 %737
    %v741 = vsel %vm235, %v570, %v720
    %v742 = vsel %vm235, %v573, %v722
    %v743 = vsel %vm436, %v741, %v728
    %v744 = vsel %vm436, %v742, %v730
    %vm745 = vcmask 195584
    %v746 = vsel %vm745, %v743, %v736
    %v747 = vsel %vm745, %v744, %v738
    %v748 = vpack.c.bf16 %v747, %v746
    %v749 = vlaneseq
    %v750 = vshrl.u32 %v749, 7
    %v751 = vsub.s32 0, %v750
    %v752 = vrot.slane %v230, %v751
    %v757 = vunpack.c.l.b16 %v226
    %v758 = vunpack.c.l.b16 %v227
    %v759 = vunpack.c.l.b16 %v228
    %v760 = vunpack.c.l.b16 %v229
    %v761 = vpack.c.b16 %v758, %v757
    %v762 = vpack.c.b16 %v760, %v759
    %v766 = vsel %vm163, %v748, 0
    %768 = vmatprep.subr.bf16.mxu0 0
    %769 = vmatpush1.bf16.msra.mxu0 0
    %770 = vmatprep.subr.bf16.mxu0 0
    %771 = vmatpush1.bf16.msra.mxu0 0
    %772 = vmatprep.subr.bf16.mxu0 0
    %773 = vmatpush1.bf16.msra.mxu0 0
    %774 = vmatprep.subr.bf16.mxu0 0
    %775 = vmatpush1.bf16.msra.mxu0 0
    %776 = vmatprep.subr.bf16.mxu0 0
    %777 = vmatpush1.bf16.msra.mxu0 0
    %778 = vmatprep.subr.bf16.mxu0 0
    %779 = vmatpush1.bf16.msra.mxu0 0
    %780 = vmatprep.subr.bf16.mxu0 0
    %781 = vmatpush1.bf16.msra.mxu0 %v762
    %782 = vmatprep.subr.bf16.mxu0 0
    %783 = vmatpush1.bf16.msra.mxu0 %v761
    %784 = vmatprep.subr.bf16.mxu0 0
    %785 = vmatpush2.bf16.msra.mxu0 0
    %786 = vmatprep.subr.bf16.mxu0 0
    %787 = vmatpush2.bf16.msra.mxu0 0
    %788 = vmatprep.subr.bf16.mxu0 0
    %789 = vmatpush2.bf16.msra.mxu0 0
    %790 = vmatprep.subr.bf16.mxu0 0
    %791 = vmatpush2.bf16.msra.mxu0 0
    %792 = vmatprep.subr.bf16.mxu0 0
    %793 = vmatpush2.bf16.msra.mxu0 0
    %794 = vmatprep.subr.bf16.mxu0 0
    %795 = vmatpush2.bf16.msra.mxu0 0
    %796 = vmatprep.subr.bf16.mxu0 0
    %797 = vmatpush2.bf16.msra.mxu0 0
    %798 = vmatprep.subr.bf16.mxu0 0
    %799 = vmatpush2.bf16.msra.mxu0 0
    %800 = vmatprep.mubr.bf16.mxu0 0
    %801 = vmatmul.mubr.bf16.gmra.mxu0 %v766
    %v802 = vpop.f32.mrf.mxu0
    %v803 = vadd.f32 %v752, %v802
    %v804 = vpop.f32.mrf.mxu0
    %v805 = vpop.f32.mrf.mxu0
    %v806 = vadd.f32 %v752, %v805
    %v807 = vpop.f32.mrf.mxu0
    %808 = vdwg.mxu0
    %v809 = vld [vmem:[#allocation11 + $0x1c] sm:$0xf]
    %v810 = vld [vmem:[#allocation11 + $0x48] sm:$0xf]
    %v811 = vld [vmem:[#allocation11 + $0x74] sm:$0xf]
    %v812 = vld [vmem:[#allocation11 + $0xa0] sm:$0xf]
    %v813 = vld [vmem:[#allocation13 + $0x7] sm:$0x1]
    %v814 = vlaneseq
    %v815 = vshrl.u32 %v814, 7
    %v816 = vsub.s32 0, %v815
    %v817 = vrot.slane %v813, %v816
    %v822 = vunpack.c.l.b16 %v809
    %v823 = vunpack.c.l.b16 %v810
    %v824 = vunpack.c.l.b16 %v811
    %v825 = vunpack.c.l.b16 %v812
    %v826 = vpack.c.b16 %v823, %v822
    %v827 = vpack.c.b16 %v825, %v824
    %830 = vmatprep.subr.bf16.mxu0 0
    %831 = vmatpush1.bf16.msra.mxu0 0
    %832 = vmatprep.subr.bf16.mxu0 0
    %833 = vmatpush1.bf16.msra.mxu0 0
    %834 = vmatprep.subr.bf16.mxu0 0
    %835 = vmatpush1.bf16.msra.mxu0 0
    %836 = vmatprep.subr.bf16.mxu0 0
    %837 = vmatpush1.bf16.msra.mxu0 0
    %838 = vmatprep.subr.bf16.mxu0 0
    %839 = vmatpush1.bf16.msra.mxu0 0
    %840 = vmatprep.subr.bf16.mxu0 0
    %841 = vmatpush1.bf16.msra.mxu0 0
    %842 = vmatprep.subr.bf16.mxu0 0
    %843 = vmatpush1.bf16.msra.mxu0 %v827
    %844 = vmatprep.subr.bf16.mxu0 0
    %845 = vmatpush1.bf16.msra.mxu0 %v826
    %846 = vmatprep.subr.bf16.mxu0 0
    %847 = vmatpush2.bf16.msra.mxu0 0
    %848 = vmatprep.subr.bf16.mxu0 0
    %849 = vmatpush2.bf16.msra.mxu0 0
    %850 = vmatprep.subr.bf16.mxu0 0
    %851 = vmatpush2.bf16.msra.mxu0 0
    %852 = vmatprep.subr.bf16.mxu0 0
    %853 = vmatpush2.bf16.msra.mxu0 0
    %854 = vmatprep.subr.bf16.mxu0 0
    %855 = vmatpush2.bf16.msra.mxu0 0
    %856 = vmatprep.subr.bf16.mxu0 0
    %857 = vmatpush2.bf16.msra.mxu0 0
    %858 = vmatprep.subr.bf16.mxu0 0
    %859 = vmatpush2.bf16.msra.mxu0 0
    %860 = vmatprep.subr.bf16.mxu0 0
    %861 = vmatpush2.bf16.msra.mxu0 0
    %862 = vmatprep.mubr.bf16.mxu0 0
    %863 = vmatmul.mubr.bf16.gmra.mxu0 %v165
    %v864 = vpop.f32.mrf.mxu0
    %v865 = vadd.f32 %v817, %v864
    %v866 = vpop.f32.mrf.mxu0
    %v867 = vpop.f32.mrf.mxu0
    %v868 = vadd.f32 %v817, %v867
    %v869 = vpop.f32.mrf.mxu0
    %870 = vdwg.mxu0
    %v871 = vxor.u32 %v865, 2147483648
    %v872 = vxor.u32 %v868, 2147483648
    %v873 = vmul.f32 %v871, 1.442695
    %v874 = vpow.pop %v873
    %v875 = vmul.f32 %v872, 1.442695
    %v876 = vpow.pop %v875
    %v877 = vadd.f32 %v874, 1.0
    %v878 = vadd.f32 %v876, 1.0
    %v879 = vrcp.pop %v877
    %v880 = vmul.f32 1.0, %v879
    %v881 = vrcp.pop %v878
    %v882 = vmul.f32 1.0, %v881
    %v883 = vpack.c.bf16 %v868, %v865
    %v884 = vld [vmem:[#allocation11 + $0x8] sm:$0xf]
    %v885 = vld [vmem:[#allocation11 + $0x34] sm:$0xf]
    %v886 = vld [vmem:[#allocation13 + $0x2] sm:$0x1]
    %v887 = vlaneseq
    %v888 = vshrl.u32 %v887, 7
    %v889 = vsub.s32 0, %v888
    %v890 = vrot.slane %v886, %v889
    %v893 = vunpack.c.l.b16 %v884
    %v894 = vunpack.c.l.b16 %v885
    %v895 = vpack.c.b16 %v894, %v893
    %v898 = vsel %vm436, %v883, 0
    %900 = vmatprep.subr.bf16.mxu0 0
    %901 = vmatpush1.bf16.msra.mxu0 0
    %902 = vmatprep.subr.bf16.mxu0 0
    %903 = vmatpush1.bf16.msra.mxu0 0
    %904 = vmatprep.subr.bf16.mxu0 0
    %905 = vmatpush1.bf16.msra.mxu0 0
    %906 = vmatprep.subr.bf16.mxu0 0
    %907 = vmatpush1.bf16.msra.mxu0 0
    %908 = vmatprep.subr.bf16.mxu0 0
    %909 = vmatpush1.bf16.msra.mxu0 0
    %910 = vmatprep.subr.bf16.mxu0 0
    %911 = vmatpush1.bf16.msra.mxu0 0
    %912 = vmatprep.subr.bf16.mxu0 0
    %913 = vmatpush1.bf16.msra.mxu0 0
    %914 = vmatprep.subr.bf16.mxu0 0
    %915 = vmatpush1.bf16.msra.mxu0 %v895
    %916 = vmatprep.subr.bf16.mxu0 0
    %917 = vmatpush2.bf16.msra.mxu0 0
    %918 = vmatprep.subr.bf16.mxu0 0
    %919 = vmatpush2.bf16.msra.mxu0 0
    %920 = vmatprep.subr.bf16.mxu0 0
    %921 = vmatpush2.bf16.msra.mxu0 0
    %922 = vmatprep.subr.bf16.mxu0 0
    %923 = vmatpush2.bf16.msra.mxu0 0
    %924 = vmatprep.subr.bf16.mxu0 0
    %925 = vmatpush2.bf16.msra.mxu0 0
    %926 = vmatprep.subr.bf16.mxu0 0
    %927 = vmatpush2.bf16.msra.mxu0 0
    %928 = vmatprep.subr.bf16.mxu0 0
    %929 = vmatpush2.bf16.msra.mxu0 0
    %930 = vmatprep.subr.bf16.mxu0 0
    %931 = vmatpush2.bf16.msra.mxu0 0
    %932 = vmatprep.mubr.bf16.mxu0 0
    %933 = vmatmul.mubr.bf16.gmra.mxu0 %v898
    %v934 = vpop.f32.mrf.mxu0
    %v935 = vadd.f32 %v890, %v934
    %v936 = vpop.f32.mrf.mxu0
    %v937 = vpop.f32.mrf.mxu0
    %v938 = vadd.f32 %v890, %v937
    %v939 = vpop.f32.mrf.mxu0
    %940 = vdwg.mxu0
    %943 = vrot.lane.b32.xlu0 %v935, 112
    %v944 = vpop.permute.xlu0 %943
    %945 = vrot.lane.b32.xlu0 %v938, 112
    %v946 = vpop.permute.xlu0 %945
    %949 = vst.msk [vmem:[#allocation18] sm:$0xff] %vm436, %v944
    %950 = vst.msk [vmem:[#allocation18 + $0x8] sm:$0xff] %vm436, %v946
    %951 = vrot.lane.b32.xlu0 %v935, 96
    %v952 = vpop.permute.xlu0 %951
    %953 = vrot.lane.b32.xlu0 %v938, 96
    %v954 = vpop.permute.xlu0 %953
    %957 = vst.msk [vmem:[#allocation20] sm:$0xff] %vm436, %v952
    %958 = vst.msk [vmem:[#allocation20 + $0x8] sm:$0xff] %vm436, %v954
    %v959 = vld [vmem:[#allocation11 + $0xc] sm:$0xf]
    %v960 = vld [vmem:[#allocation11 + $0x38] sm:$0xf]
    %v961 = vld [vmem:[#allocation13 + $0x3] sm:$0x1]
    %v962 = vpack.c.bf16 %v938, %v935
    %964 = vrot.lane.b32.xlu0 %v962, 112
    %v965 = vpop.permute.xlu0 %964
    %v967 = vsel %vm235, %v962, 0
    %v970 = vsel %vm235, %v965, 0
    %972 = vmatprep.subr.bf16.mxu0 0
    %973 = vmatpush1.bf16.xpose.msra.mxu0 0
    %974 = vmatprep.subr.bf16.mxu0 0
    %975 = vmatpush1.bf16.xpose.msra.mxu0 0
    %976 = vmatprep.subr.bf16.mxu0 0
    %977 = vmatpush1.bf16.xpose.msra.mxu0 0
    %978 = vmatprep.subr.bf16.mxu0 0
    %979 = vmatpush1.bf16.xpose.msra.mxu0 0
    %980 = vmatprep.subr.bf16.mxu0 0
    %981 = vmatpush1.bf16.xpose.msra.mxu0 0
    %982 = vmatprep.subr.bf16.mxu0 0
    %983 = vmatpush1.bf16.xpose.msra.mxu0 0
    %984 = vmatprep.subr.bf16.mxu0 0
    %985 = vmatpush1.bf16.xpose.msra.mxu0 0
    %986 = vmatprep.subr.bf16.mxu0 0
    %987 = vmatpush1.bf16.xpose.msra.mxu0 %v970
    %988 = vmatprep.subr.bf16.mxu0 0
    %989 = vmatpush2.bf16.xpose.msra.mxu0 0
    %990 = vmatprep.subr.bf16.mxu0 0
    %991 = vmatpush2.bf16.xpose.msra.mxu0 0
    %992 = vmatprep.subr.bf16.mxu0 0
    %993 = vmatpush2.bf16.xpose.msra.mxu0 0
    %994 = vmatprep.subr.bf16.mxu0 0
    %995 = vmatpush2.bf16.xpose.msra.mxu0 0
    %996 = vmatprep.subr.bf16.mxu0 0
    %997 = vmatpush2.bf16.xpose.msra.mxu0 0
    %998 = vmatprep.subr.bf16.mxu0 0
    %999 = vmatpush2.bf16.xpose.msra.mxu0 0
    %1000 = vmatprep.subr.bf16.mxu0 0
    %1001 = vmatpush2.bf16.xpose.msra.mxu0 0
    %1002 = vmatprep.subr.bf16.mxu0 0
    %1003 = vmatpush2.bf16.xpose.msra.mxu0 0
    %1004 = vmatprep.mubr.bf16.mxu0 0
    %1005 = vmatmul.mubr.bf16.gmra.mxu0 %v967
    %v1006 = vpop.f32.mrf.mxu0
    %v1007 = vadd.f32 %v138, %v1006
    %v1008 = vpop.f32.mrf.mxu0
    %v1009 = vpop.f32.mrf.mxu0
    %v1010 = vadd.f32 %v139, %v1009
    %v1011 = vpop.f32.mrf.mxu0
    %1012 = vdwg.mxu0
    %1013 = vrot.lane.b32.xlu0 %v962, 120
    %v1014 = vpop.permute.xlu0 %1013
    %1015 = vrot.lane.b32.xlu0 %v962, 104
    %v1016 = vpop.permute.xlu0 %1015
    %v1018 = vsel %vm235, %v1014, 0
    %v1021 = vsel %vm235, %v1016, 0
    %1023 = vmatprep.subr.bf16.mxu0 0
    %1024 = vmatpush1.bf16.xpose.msra.mxu0 0
    %1025 = vmatprep.subr.bf16.mxu0 0
    %1026 = vmatpush1.bf16.xpose.msra.mxu0 0
    %1027 = vmatprep.subr.bf16.mxu0 0
    %1028 = vmatpush1.bf16.xpose.msra.mxu0 0
    %1029 = vmatprep.subr.bf16.mxu0 0
    %1030 = vmatpush1.bf16.xpose.msra.mxu0 0
    %1031 = vmatprep.subr.bf16.mxu0 0
    %1032 = vmatpush1.bf16.xpose.msra.mxu0 0
    %1033 = vmatprep.subr.bf16.mxu0 0
    %1034 = vmatpush1.bf16.xpose.msra.mxu0 0
    %1035 = vmatprep.subr.bf16.mxu0 0
    %1036 = vmatpush1.bf16.xpose.msra.mxu0 0
    %1037 = vmatprep.subr.bf16.mxu0 0
    %1038 = vmatpush1.bf16.xpose.msra.mxu0 %v1021
    %1039 = vmatprep.subr.bf16.mxu0 0
    %1040 = vmatpush2.bf16.xpose.msra.mxu0 0
    %1041 = vmatprep.subr.bf16.mxu0 0
    %1042 = vmatpush2.bf16.xpose.msra.mxu0 0
    %1043 = vmatprep.subr.bf16.mxu0 0
    %1044 = vmatpush2.bf16.xpose.msra.mxu0 0
    %1045 = vmatprep.subr.bf16.mxu0 0
    %1046 = vmatpush2.bf16.xpose.msra.mxu0 0
    %1047 = vmatprep.subr.bf16.mxu0 0
    %1048 = vmatpush2.bf16.xpose.msra.mxu0 0
    %1049 = vmatprep.subr.bf16.mxu0 0
    %1050 = vmatpush2.bf16.xpose.msra.mxu0 0
    %1051 = vmatprep.subr.bf16.mxu0 0
    %1052 = vmatpush2.bf16.xpose.msra.mxu0 0
    %1053 = vmatprep.subr.bf16.mxu0 0
    %1054 = vmatpush2.bf16.xpose.msra.mxu0 0
    %1055 = vmatprep.mubr.bf16.mxu0 0
    %1056 = vmatmul.mubr.bf16.gmra.mxu0 %v1018
    %v1057 = vpop.f32.mrf.mxu0
    %v1058 = vadd.f32 %v138, %v1057
    %v1059 = vpop.f32.mrf.mxu0
    %v1060 = vpop.f32.mrf.mxu0
    %v1061 = vadd.f32 %v139, %v1060
    %v1062 = vpop.f32.mrf.mxu0
    %1063 = vdwg.mxu0
    %v1064 = vsel %vm436, %v1007, -inf
    %1065 = vmax.xlane.f32.xlu0 %v1064
    %v1066 = vpop.xlane.xlu0 %1065
    %v1067 = vsel %vm436, %v1010, -inf
    %1068 = vmax.xlane.f32.xlu0 %v1067
    %v1069 = vpop.xlane.xlu0 %1068
    %v1070 = vsel %vm436, %v1058, -inf
    %1071 = vmax.xlane.f32.xlu0 %v1070
    %v1072 = vpop.xlane.xlu0 %1071
    %v1073 = vsel %vm436, %v1061, -inf
    %1074 = vmax.xlane.f32.xlu0 %v1073
    %v1075 = vpop.xlane.xlu0 %1074
    %v1076 = vsub.f32 %v1007, %v1066
    %v1077 = vsub.f32 %v1010, %v1069
    %v1078 = vsub.f32 %v1058, %v1072
    %v1079 = vsub.f32 %v1061, %v1075
    %v1080 = vmul.f32 %v1076, 1.442695
    %v1081 = vpow.pop %v1080
    %v1082 = vmul.f32 %v1077, 1.442695
    %v1083 = vpow.pop %v1082
    %v1084 = vmul.f32 %v1078, 1.442695
    %v1085 = vpow.pop %v1084
    %v1086 = vmul.f32 %v1079, 1.442695
    %v1087 = vpow.pop %v1086
    %v1088 = vsel %vm436, %v1081, 0.0
    %1089 = vadd.xlane.f32.xlu0 %v1088
    %v1090 = vpop.xlane.xlu0 %1089
    %v1091 = vsel %vm436, %v1083, 0.0
    %1092 = vadd.xlane.f32.xlu0 %v1091
    %v1093 = vpop.xlane.xlu0 %1092
    %v1094 = vsel %vm436, %v1085, 0.0
    %1095 = vadd.xlane.f32.xlu0 %v1094
    %v1096 = vpop.xlane.xlu0 %1095
    %v1097 = vsel %vm436, %v1087, 0.0
    %1098 = vadd.xlane.f32.xlu0 %v1097
    %v1099 = vpop.xlane.xlu0 %1098
    %v1100 = vrcp.pop %v1090
    %v1101 = vrcp.pop %v1093
    %v1102 = vrcp.pop %v1096
    %v1103 = vrcp.pop %v1099
    %v1104 = vmul.f32 %v1081, %v1100
    %v1105 = vmul.f32 %v1083, %v1101
    %v1106 = vmul.f32 %v1085, %v1102
    %v1107 = vmul.f32 %v1087, %v1103
    %v1108 = vpack.c.bf16 %v1105, %v1104
    %v1109 = vpack.c.bf16 %v1107, %v1106
    %1110 = vrot.lane.b32.xlu0 %v962, 96
    %v1111 = vpop.permute.xlu0 %1110
    %v1114 = vsel %vm436, %v1108, 0
    %1116 = vmatprep.subr.bf16.mxu0 0
    %1117 = vmatpush1.bf16.msra.mxu0 0
    %1118 = vmatprep.subr.bf16.mxu0 0
    %1119 = vmatpush1.bf16.msra.mxu0 0
    %1120 = vmatprep.subr.bf16.mxu0 0
    %1121 = vmatpush1.bf16.msra.mxu0 0
    %1122 = vmatprep.subr.bf16.mxu0 0
    %1123 = vmatpush1.bf16.msra.mxu0 0
    %1124 = vmatprep.subr.bf16.mxu0 0
    %1125 = vmatpush1.bf16.msra.mxu0 0
    %1126 = vmatprep.subr.bf16.mxu0 0
    %1127 = vmatpush1.bf16.msra.mxu0 0
    %1128 = vmatprep.subr.bf16.mxu0 0
    %1129 = vmatpush1.bf16.msra.mxu0 0
    %1130 = vmatprep.subr.bf16.mxu0 0
    %1131 = vmatpush1.bf16.msra.mxu0 %v1111
    %1132 = vmatprep.subr.bf16.mxu0 0
    %1133 = vmatpush2.bf16.msra.mxu0 0
    %1134 = vmatprep.subr.bf16.mxu0 0
    %1135 = vmatpush2.bf16.msra.mxu0 0
    %1136 = vmatprep.subr.bf16.mxu0 0
    %1137 = vmatpush2.bf16.msra.mxu0 0
    %1138 = vmatprep.subr.bf16.mxu0 0
    %1139 = vmatpush2.bf16.msra.mxu0 0
    %1140 = vmatprep.subr.bf16.mxu0 0
    %1141 = vmatpush2.bf16.msra.mxu0 0
    %1142 = vmatprep.subr.bf16.mxu0 0
    %1143 = vmatpush2.bf16.msra.mxu0 0
    %1144 = vmatprep.subr.bf16.mxu0 0
    %1145 = vmatpush2.bf16.msra.mxu0 0
    %1146 = vmatprep.subr.bf16.mxu0 0
    %1147 = vmatpush2.bf16.msra.mxu0 0
    %1148 = vmatprep.mubr.bf16.mxu0 0
    %1149 = vmatmul.mubr.bf16.gmra.mxu0 %v1114
    %v1150 = vpop.f32.mrf.mxu0
    %v1151 = vadd.f32 0.0, %v1150
    %v1152 = vpop.f32.mrf.mxu0
    %v1153 = vpop.f32.mrf.mxu0
    %v1154 = vadd.f32 0.0, %v1153
    %v1155 = vpop.f32.mrf.mxu0
    %1156 = vdwg.mxu0
    %1157 = vrot.lane.b32.xlu0 %v962, 88
    %v1158 = vpop.permute.xlu0 %1157
    %v1161 = vsel %vm436, %v1109, 0
    %1163 = vmatprep.subr.bf16.mxu0 0
    %1164 = vmatpush1.bf16.msra.mxu0 0
    %1165 = vmatprep.subr.bf16.mxu0 0
    %1166 = vmatpush1.bf16.msra.mxu0 0
    %1167 = vmatprep.subr.bf16.mxu0 0
    %1168 = vmatpush1.bf16.msra.mxu0 0
    %1169 = vmatprep.subr.bf16.mxu0 0
    %1170 = vmatpush1.bf16.msra.mxu0 0
    %1171 = vmatprep.subr.bf16.mxu0 0
    %1172 = vmatpush1.bf16.msra.mxu0 0
    %1173 = vmatprep.subr.bf16.mxu0 0
    %1174 = vmatpush1.bf16.msra.mxu0 0
    %1175 = vmatprep.subr.bf16.mxu0 0
    %1176 = vmatpush1.bf16.msra.mxu0 0
    %1177 = vmatprep.subr.bf16.mxu0 0
    %1178 = vmatpush1.bf16.msra.mxu0 %v1158
    %1179 = vmatprep.subr.bf16.mxu0 0
    %1180 = vmatpush2.bf16.msra.mxu0 0
    %1181 = vmatprep.subr.bf16.mxu0 0
    %1182 = vmatpush2.bf16.msra.mxu0 0
    %1183 = vmatprep.subr.bf16.mxu0 0
    %1184 = vmatpush2.bf16.msra.mxu0 0
    %1185 = vmatprep.subr.bf16.mxu0 0
    %1186 = vmatpush2.bf16.msra.mxu0 0
    %1187 = vmatprep.subr.bf16.mxu0 0
    %1188 = vmatpush2.bf16.msra.mxu0 0
    %1189 = vmatprep.subr.bf16.mxu0 0
    %1190 = vmatpush2.bf16.msra.mxu0 0
    %1191 = vmatprep.subr.bf16.mxu0 0
    %1192 = vmatpush2.bf16.msra.mxu0 0
    %1193 = vmatprep.subr.bf16.mxu0 0
    %1194 = vmatpush2.bf16.msra.mxu0 0
    %1195 = vmatprep.mubr.bf16.mxu0 0
    %1196 = vmatmul.mubr.bf16.gmra.mxu0 %v1161
    %v1197 = vpop.f32.mrf.mxu0
    %v1198 = vadd.f32 0.0, %v1197
    %v1199 = vpop.f32.mrf.mxu0
    %v1200 = vpop.f32.mrf.mxu0
    %v1201 = vadd.f32 0.0, %v1200
    %v1202 = vpop.f32.mrf.mxu0
    %1203 = vdwg.mxu0
    %1206 = vrot.lane.b32.xlu0 %v1198, 8
    %v1207 = vpop.permute.xlu0 %1206
    %1208 = vrot.lane.b32.xlu0 %v1201, 8
    %v1209 = vpop.permute.xlu0 %1208
    %v1212 = vsel %vm235, %v1151, %v1207
    %v1213 = vsel %vm235, %v1154, %v1209
    %v1214 = vpack.c.bf16 %v1213, %v1212
    %v1215 = vlaneseq
    %v1216 = vshrl.u32 %v1215, 7
    %v1217 = vsub.s32 0, %v1216
    %v1218 = vrot.slane %v961, %v1217
    %v1221 = vunpack.c.l.b16 %v959
    %v1222 = vunpack.c.l.b16 %v960
    %v1223 = vpack.c.b16 %v1222, %v1221
    %v1226 = vsel %vm436, %v1214, 0
    %1228 = vmatprep.subr.bf16.mxu0 0
    %1229 = vmatpush1.bf16.msra.mxu0 0
    %1230 = vmatprep.subr.bf16.mxu0 0
    %1231 = vmatpush1.bf16.msra.mxu0 0
    %1232 = vmatprep.subr.bf16.mxu0 0
    %1233 = vmatpush1.bf16.msra.mxu0 0
    %1234 = vmatprep.subr.bf16.mxu0 0
    %1235 = vmatpush1.bf16.msra.mxu0 0
    %1236 = vmatprep.subr.bf16.mxu0 0
    %1237 = vmatpush1.bf16.msra.mxu0 0
    %1238 = vmatprep.subr.bf16.mxu0 0
    %1239 = vmatpush1.bf16.msra.mxu0 0
    %1240 = vmatprep.subr.bf16.mxu0 0
    %1241 = vmatpush1.bf16.msra.mxu0 0
    %1242 = vmatprep.subr.bf16.mxu0 0
    %1243 = vmatpush1.bf16.msra.mxu0 %v1223
    %1244 = vmatprep.subr.bf16.mxu0 0
    %1245 = vmatpush2.bf16.msra.mxu0 0
    %1246 = vmatprep.subr.bf16.mxu0 0
    %1247 = vmatpush2.bf16.msra.mxu0 0
    %1248 = vmatprep.subr.bf16.mxu0 0
    %1249 = vmatpush2.bf16.msra.mxu0 0
    %1250 = vmatprep.subr.bf16.mxu0 0
    %1251 = vmatpush2.bf16.msra.mxu0 0
    %1252 = vmatprep.subr.bf16.mxu0 0
    %1253 = vmatpush2.bf16.msra.mxu0 0
    %1254 = vmatprep.subr.bf16.mxu0 0
    %1255 = vmatpush2.bf16.msra.mxu0 0
    %1256 = vmatprep.subr.bf16.mxu0 0
    %1257 = vmatpush2.bf16.msra.mxu0 0
    %1258 = vmatprep.subr.bf16.mxu0 0
    %1259 = vmatpush2.bf16.msra.mxu0 0
    %1260 = vmatprep.mubr.bf16.mxu0 0
    %1261 = vmatmul.mubr.bf16.gmra.mxu0 %v1226
    %v1262 = vpop.f32.mrf.mxu0
    %v1263 = vadd.f32 %v1218, %v1262
    %v1264 = vpop.f32.mrf.mxu0
    %v1265 = vpop.f32.mrf.mxu0
    %v1266 = vadd.f32 %v1218, %v1265
    %v1267 = vpop.f32.mrf.mxu0
    %1268 = vdwg.mxu0
    %v1269 = vadd.f32 %v1263, %v865
    %v1270 = vadd.f32 %v1266, %v868
    %v1271 = vld [vmem:[#allocation13 + $0x11] sm:$0x1]
    %v1272 = vld [vmem:[#allocation13 + $0x12] sm:$0x1]
    %v1273 = vsel %vm436, %v1269, 0.0
    %1274 = vadd.xlane.f32.xlu0 %v1273
    %v1275 = vpop.xlane.xlu0 %1274
    %v1276 = vsel %vm436, %v1270, 0.0
    %1277 = vadd.xlane.f32.xlu0 %v1276
    %v1278 = vpop.xlane.xlu0 %1277
    %v1279 = vrcp.pop 16.0
    %v1280 = vmul.f32 %v1275, %v1279
    %v1281 = vmul.f32 %v1278, %v1279
    %v1282 = vsub.f32 %v1269, %v1280
    %v1283 = vsub.f32 %v1270, %v1281
    %v1284 = vmul.f32 %v1282, %v1282
    %v1285 = vmul.f32 %v1283, %v1283
    %v1286 = vsel %vm436, %v1284, 0.0
    %1287 = vadd.xlane.f32.xlu0 %v1286
    %v1288 = vpop.xlane.xlu0 %1287
    %v1289 = vsel %vm436, %v1285, 0.0
    %1290 = vadd.xlane.f32.xlu0 %v1289
    %v1291 = vpop.xlane.xlu0 %1290
    %v1292 = vmul.f32 %v1288, %v1279
    %v1293 = vmul.f32 %v1291, %v1279
    %v1294 = vadd.f32 %v1292, 1e-05
    %v1295 = vadd.f32 %v1293, 1e-05
    %v1296 = vrsqrt.pop %v1294
    %v1297 = vrsqrt.pop %v1295
    %v1298 = vmul.f32 %v1282, %v1296
    %v1299 = vmul.f32 %v1283, %v1297
    %v1300 = vlaneseq
    %v1301 = vshrl.u32 %v1300, 7
    %v1302 = vsub.s32 0, %v1301
    %v1303 = vrot.slane %v1271, %v1302
    %v1304 = vmul.f32 %v1298, %v1303
    %v1305 = vmul.f32 %v1299, %v1303
    %v1306 = vlaneseq
    %v1307 = vshrl.u32 %v1306, 7
    %v1308 = vsub.s32 0, %v1307
    %v1309 = vrot.slane %v1272, %v1308
    %v1310 = vadd.f32 %v1304, %v1309
    %v1311 = vadd.f32 %v1305, %v1309
    %v1312 = vpack.c.bf16 %v1311, %v1310
    %v1313 = vld [vmem:[#allocation11 + $0x20] sm:$0xf]
    %v1314 = vld [vmem:[#allocation11 + $0x4c] sm:$0xf]
    %v1315 = vld [vmem:[#allocation13 + $0x8] sm:$0x1]
    %v1316 = vlaneseq
    %v1317 = vshrl.u32 %v1316, 7
    %v1318 = vsub.s32 0, %v1317
    %v1319 = vrot.slane %v1315, %v1318
    %v1322 = vunpack.c.l.b16 %v1313
    %v1323 = vunpack.c.l.b16 %v1314
    %v1324 = vpack.c.b16 %v1323, %v1322
    %v1327 = vsel %vm436, %v1312, 0
    %1329 = vmatprep.subr.bf16.mxu0 0
    %1330 = vmatpush1.bf16.msra.mxu0 0
    %1331 = vmatprep.subr.bf16.mxu0 0
    %1332 = vmatpush1.bf16.msra.mxu0 0
    %1333 = vmatprep.subr.bf16.mxu0 0
    %1334 = vmatpush1.bf16.msra.mxu0 0
    %1335 = vmatprep.subr.bf16.mxu0 0
    %1336 = vmatpush1.bf16.msra.mxu0 0
    %1337 = vmatprep.subr.bf16.mxu0 0
    %1338 = vmatpush1.bf16.msra.mxu0 0
    %1339 = vmatprep.subr.bf16.mxu0 0
    %1340 = vmatpush1.bf16.msra.mxu0 0
    %1341 = vmatprep.subr.bf16.mxu0 0
    %1342 = vmatpush1.bf16.msra.mxu0 0
    %1343 = vmatprep.subr.bf16.mxu0 0
    %1344 = vmatpush1.bf16.msra.mxu0 %v1324
    %1345 = vmatprep.subr.bf16.mxu0 0
    %1346 = vmatpush2.bf16.msra.mxu0 0
    %1347 = vmatprep.subr.bf16.mxu0 0
    %1348 = vmatpush2.bf16.msra.mxu0 0
    %1349 = vmatprep.subr.bf16.mxu0 0
    %1350 = vmatpush2.bf16.msra.mxu0 0
    %1351 = vmatprep.subr.bf16.mxu0 0
    %1352 = vmatpush2.bf16.msra.mxu0 0
    %1353 = vmatprep.subr.bf16.mxu0 0
    %1354 = vmatpush2.bf16.msra.mxu0 0
    %1355 = vmatprep.subr.bf16.mxu0 0
    %1356 = vmatpush2.bf16.msra.mxu0 0
    %1357 = vmatprep.subr.bf16.mxu0 0
    %1358 = vmatpush2.bf16.msra.mxu0 0
    %1359 = vmatprep.subr.bf16.mxu0 0
    %1360 = vmatpush2.bf16.msra.mxu0 0
    %1361 = vmatprep.mubr.bf16.mxu0 0
    %1362 = vmatmul.mubr.bf16.gmra.mxu0 %v1327
    %v1363 = vpop.f32.mrf.mxu0
    %v1364 = vadd.f32 %v1319, %v1363
    %v1365 = vpop.f32.mrf.mxu0
    %v1366 = vpop.f32.mrf.mxu0
    %v1367 = vadd.f32 %v1319, %v1366
    %v1368 = vpop.f32.mrf.mxu0
    %1369 = vdwg.mxu0
    %v1370 = vmul.f32 %v1364, 16.0
    %v1371 = vmul.f32 %v1367, 16.0
    %1374 = vrot.lane.b32.xlu0 %v1370, 16
    %v1375 = vpop.permute.xlu0 %1374
    %1376 = vrot.lane.b32.xlu0 %v1371, 16
    %v1377 = vpop.permute.xlu0 %1376
    %v1380 = vmul.f32 %v880, %v1375
    %v1381 = vmul.f32 %v882, %v1377
    %v1382 = vadd.f32 %v133, %v803
    %v1383 = vadd.f32 %v134, %v806
    %1386 = vrot.lane.b32.xlu0 %v1380, 112
    %v1387 = vpop.permute.xlu0 %1386
    %1388 = vrot.lane.b32.xlu0 %v1381, 112
    %v1389 = vpop.permute.xlu0 %1388
    %v1392 = vadd.f32 %v1382, %v1387
    %v1393 = vadd.f32 %v1383, %v1389
    %v1394 = vld [vmem:[#allocation13 + $0xb] sm:$0x1]
    %v1395 = vld [vmem:[#allocation13 + $0xc] sm:$0x1]
    %v1396 = vsel %vm163, %v1392, 0.0
    %1397 = vadd.xlane.f32.xlu0 %v1396
    %v1398 = vpop.xlane.xlu0 %1397
    %v1399 = vsel %vm163, %v1393, 0.0
    %1400 = vadd.xlane.f32.xlu0 %v1399
    %v1401 = vpop.xlane.xlu0 %1400
    %v1402 = vrcp.pop 32.0
    %v1403 = vmul.f32 %v1398, %v1402
    %v1404 = vmul.f32 %v1401, %v1402
    %v1405 = vsub.f32 %v1392, %v1403
    %v1406 = vsub.f32 %v1393, %v1404
    %v1407 = vmul.f32 %v1405, %v1405
    %v1408 = vmul.f32 %v1406, %v1406
    %v1409 = vsel %vm163, %v1407, 0.0
    %1410 = vadd.xlane.f32.xlu0 %v1409
    %v1411 = vpop.xlane.xlu0 %1410
    %v1412 = vsel %vm163, %v1408, 0.0
    %1413 = vadd.xlane.f32.xlu0 %v1412
    %v1414 = vpop.xlane.xlu0 %1413
    %v1415 = vmul.f32 %v1411, %v1402
    %v1416 = vmul.f32 %v1414, %v1402
    %v1417 = vadd.f32 %v1415, 1e-05
    %v1418 = vadd.f32 %v1416, 1e-05
    %v1419 = vrsqrt.pop %v1417
    %v1420 = vrsqrt.pop %v1418
    %v1421 = vmul.f32 %v1405, %v1419
    %v1422 = vmul.f32 %v1406, %v1420
    %v1423 = vlaneseq
    %v1424 = vshrl.u32 %v1423, 7
    %v1425 = vsub.s32 0, %v1424
    %v1426 = vrot.slane %v1394, %v1425
    %v1427 = vmul.f32 %v1421, %v1426
    %v1428 = vmul.f32 %v1422, %v1426
    %v1429 = vlaneseq
    %v1430 = vshrl.u32 %v1429, 7
    %v1431 = vsub.s32 0, %v1430
    %v1432 = vrot.slane %v1395, %v1431
    %v1433 = vadd.f32 %v1427, %v1432
    %v1434 = vadd.f32 %v1428, %v1432
    %v1435 = vld [vmem:[#allocation5] sm:$0xff]
    %v1436 = vld [vmem:[#allocation5 + $0x8] sm:$0xff]
    %v1437 = vld [vmem:[#allocation5 + $0x10] sm:$0xff]
    %v1438 = vld [vmem:[#allocation5 + $0x18] sm:$0xff]
    %v1439 = vpack.c.bf16 %v1436, %v1435
    %v1440 = vpack.c.bf16 %v1438, %v1437
    %v1441 = vpack.c.bf16 %v1434, %v1433
    %v1442 = vld [vmem:[#allocation11 + $0x10] sm:$0xf]
    %v1443 = vld [vmem:[#allocation11 + $0x3c] sm:$0xf]
    %v1444 = vld [vmem:[#allocation11 + $0x68] sm:$0xf]
    %v1445 = vld [vmem:[#allocation11 + $0x94] sm:$0xf]
    %v1446 = vld [vmem:[#allocation13 + $0x4] sm:$0x1]
    %v1447 = vlaneseq
    %v1448 = vshrl.u32 %v1447, 7
    %v1449 = vsub.s32 0, %v1448
    %v1450 = vrot.slane %v1446, %v1449
    %v1455 = vunpack.c.l.b16 %v1442
    %v1456 = vunpack.c.l.b16 %v1443
    %v1457 = vunpack.c.l.b16 %v1444
    %v1458 = vunpack.c.l.b16 %v1445
    %v1459 = vpack.c.b16 %v1456, %v1455
    %v1460 = vpack.c.b16 %v1458, %v1457
    %v1464 = vsel %vm163, %v1441, 0
    %1466 = vmatprep.subr.bf16.mxu0 0
    %1467 = vmatpush1.bf16.msra.mxu0 0
    %1468 = vmatprep.subr.bf16.mxu0 0
    %1469 = vmatpush1.bf16.msra.mxu0 0
    %1470 = vmatprep.subr.bf16.mxu0 0
    %1471 = vmatpush1.bf16.msra.mxu0 0
    %1472 = vmatprep.subr.bf16.mxu0 0
    %1473 = vmatpush1.bf16.msra.mxu0 0
    %1474 = vmatprep.subr.bf16.mxu0 0
    %1475 = vmatpush1.bf16.msra.mxu0 0
    %1476 = vmatprep.subr.bf16.mxu0 0
    %1477 = vmatpush1.bf16.msra.mxu0 0
    %1478 = vmatprep.subr.bf16.mxu0 0
    %1479 = vmatpush1.bf16.msra.mxu0 %v1460
    %1480 = vmatprep.subr.bf16.mxu0 0
    %1481 = vmatpush1.bf16.msra.mxu0 %v1459
    %1482 = vmatprep.subr.bf16.mxu0 0
    %1483 = vmatpush2.bf16.msra.mxu0 0
    %1484 = vmatprep.subr.bf16.mxu0 0
    %1485 = vmatpush2.bf16.msra.mxu0 0
    %1486 = vmatprep.subr.bf16.mxu0 0
    %1487 = vmatpush2.bf16.msra.mxu0 0
    %1488 = vmatprep.subr.bf16.mxu0 0
    %1489 = vmatpush2.bf16.msra.mxu0 0
    %1490 = vmatprep.subr.bf16.mxu0 0
    %1491 = vmatpush2.bf16.msra.mxu0 0
    %1492 = vmatprep.subr.bf16.mxu0 0
    %1493 = vmatpush2.bf16.msra.mxu0 0
    %1494 = vmatprep.subr.bf16.mxu0 0
    %1495 = vmatpush2.bf16.msra.mxu0 0
    %1496 = vmatprep.subr.bf16.mxu0 0
    %1497 = vmatpush2.bf16.msra.mxu0 0
    %1498 = vmatprep.mubr.bf16.mxu0 0
    %1499 = vmatmul.mubr.bf16.gmra.mxu0 %v1464
    %v1500 = vpop.f32.mrf.mxu0
    %v1501 = vadd.f32 %v1450, %v1500
    %v1502 = vpop.f32.mrf.mxu0
    %v1503 = vpop.f32.mrf.mxu0
    %v1504 = vadd.f32 %v1450, %v1503
    %v1505 = vpop.f32.mrf.mxu0
    %1506 = vdwg.mxu0
    %v1507 = vld [vmem:[#allocation11 + $0x14] sm:$0xf]
    %v1508 = vld [vmem:[#allocation11 + $0x40] sm:$0xf]
    %v1509 = vld [vmem:[#allocation11 + $0x6c] sm:$0xf]
    %v1510 = vld [vmem:[#allocation11 + $0x98] sm:$0xf]
    %v1511 = vld [vmem:[#allocation13 + $0x5] sm:$0x1]
    %v1512 = vlaneseq
    %v1513 = vshrl.u32 %v1512, 7
    %v1514 = vsub.s32 0, %v1513
    %v1515 = vrot.slane %v1511, %v1514
    %v1520 = vunpack.c.l.b16 %v1507
    %v1521 = vunpack.c.l.b16 %v1508
    %v1522 = vunpack.c.l.b16 %v1509
    %v1523 = vunpack.c.l.b16 %v1510
    %v1524 = vpack.c.b16 %v1521, %v1520
    %v1525 = vpack.c.b16 %v1523, %v1522
    %v1529 = vsel %vm163, %v1439, 0
    %v1532 = vsel %vm163, %v1440, 0
    %1534 = vmatprep.subr.bf16.mxu0 0
    %1535 = vmatpush1.bf16.msra.mxu0 0
    %1536 = vmatprep.subr.bf16.mxu0 0
    %1537 = vmatpush1.bf16.msra.mxu0 0
    %1538 = vmatprep.subr.bf16.mxu0 0
    %1539 = vmatpush1.bf16.msra.mxu0 0
    %1540 = vmatprep.subr.bf16.mxu0 0
    %1541 = vmatpush1.bf16.msra.mxu0 0
    %1542 = vmatprep.subr.bf16.mxu0 0
    %1543 = vmatpush1.bf16.msra.mxu0 0
    %1544 = vmatprep.subr.bf16.mxu0 0
    %1545 = vmatpush1.bf16.msra.mxu0 0
    %1546 = vmatprep.subr.bf16.mxu0 0
    %1547 = vmatpush1.bf16.msra.mxu0 %v1525
    %1548 = vmatprep.subr.bf16.mxu0 0
    %1549 = vmatpush1.bf16.msra.mxu0 %v1524
    %1550 = vmatprep.subr.bf16.mxu0 0
    %1551 = vmatpush2.bf16.msra.mxu0 0
    %1552 = vmatprep.subr.bf16.mxu0 0
    %1553 = vmatpush2.bf16.msra.mxu0 0
    %1554 = vmatprep.subr.bf16.mxu0 0
    %1555 = vmatpush2.bf16.msra.mxu0 0
    %1556 = vmatprep.subr.bf16.mxu0 0
    %1557 = vmatpush2.bf16.msra.mxu0 0
    %1558 = vmatprep.subr.bf16.mxu0 0
    %1559 = vmatpush2.bf16.msra.mxu0 0
    %1560 = vmatprep.subr.bf16.mxu0 0
    %1561 = vmatpush2.bf16.msra.mxu0 0
    %1562 = vmatprep.subr.bf16.mxu0 0
    %1563 = vmatpush2.bf16.msra.mxu0 0
    %1564 = vmatprep.subr.bf16.mxu0 0
    %1565 = vmatpush2.bf16.msra.mxu0 0
    %1566 = vmatprep.mubr.bf16.mxu0 0
    %1567 = vmatmul.mubr.bf16.gmra.mxu0 %v1529
    %v1568 = vpop.f32.mrf.mxu0
    %v1569 = vadd.f32 %v1515, %v1568
    %v1570 = vpop.f32.mrf.mxu0
    %v1571 = vpop.f32.mrf.mxu0
    %v1572 = vadd.f32 %v1515, %v1571
    %v1573 = vpop.f32.mrf.mxu0
    %1574 = vmatprep.mubr.bf16.mxu0 0
    %1575 = vmatmul.mubr.bf16.gmra.mxu0 %v1532
    %v1576 = vpop.f32.mrf.mxu0
    %v1577 = vadd.f32 %v1515, %v1576
    %v1578 = vpop.f32.mrf.mxu0
    %v1579 = vpop.f32.mrf.mxu0
    %v1580 = vadd.f32 %v1515, %v1579
    %v1581 = vpop.f32.mrf.mxu0
    %1582 = vdwg.mxu0
    %1583 = vst.msk [vmem:[#allocation21] sm:$0xff] %vm163, %v1569
    %1584 = vst.msk [vmem:[#allocation21 + $0x8] sm:$0xff] %vm163, %v1572
    %1585 = vst.msk [vmem:[#allocation21 + $0x10] sm:$0xff] %vm163, %v1577
    %1586 = vst.msk [vmem:[#allocation21 + $0x18] sm:$0xff] %vm163, %v1580
    %1591 = vrot.lane.b32.xlu0 %v1569, 96
    %v1592 = vpop.permute.xlu0 %1591
    %1593 = vrot.lane.b32.xlu0 %v1572, 96
    %v1594 = vpop.permute.xlu0 %1593
    %1595 = vrot.lane.b32.xlu0 %v1577, 96
    %v1596 = vpop.permute.xlu0 %1595
    %1597 = vrot.lane.b32.xlu0 %v1580, 96
    %v1598 = vpop.permute.xlu0 %1597
    %1603 = vst.msk [vmem:[#allocation23] sm:$0xff] %vm163, %v1592
    %1604 = vst.msk [vmem:[#allocation23 + $0x8] sm:$0xff] %vm163, %v1594
    %1605 = vst.msk [vmem:[#allocation23 + $0x10] sm:$0xff] %vm163, %v1596
    %1606 = vst.msk [vmem:[#allocation23 + $0x18] sm:$0xff] %vm163, %v1598
    %v1607 = vld [vmem:[#allocation11 + $0x18] sm:$0xf]
    %v1608 = vld [vmem:[#allocation11 + $0x44] sm:$0xf]
    %v1609 = vld [vmem:[#allocation11 + $0x70] sm:$0xf]
    %v1610 = vld [vmem:[#allocation11 + $0x9c] sm:$0xf]
    %v1611 = vld [vmem:[#allocation13 + $0x6] sm:$0x1]
    %v1612 = vpack.c.bf16 %v1504, %v1501
    %v1613 = vpack.c.bf16 %v1572, %v1569
    %v1614 = vpack.c.bf16 %v1580, %v1577
    %v1616 = vsel %vm235, %v1612, 0
    %v1619 = vsel %vm235, %v1613, 0
    %v1622 = vsel %vm235, %v1614, 0
    %1624 = vmatprep.subr.bf16.mxu0 0
    %1625 = vmatpush1.bf16.xpose.msra.mxu0 0
    %1626 = vmatprep.subr.bf16.mxu0 0
    %1627 = vmatpush1.bf16.xpose.msra.mxu0 0
    %1628 = vmatprep.subr.bf16.mxu0 0
    %1629 = vmatpush1.bf16.xpose.msra.mxu0 0
    %1630 = vmatprep.subr.bf16.mxu0 0
    %1631 = vmatpush1.bf16.xpose.msra.mxu0 0
    %1632 = vmatprep.subr.bf16.mxu0 0
    %1633 = vmatpush1.bf16.xpose.msra.mxu0 0
    %1634 = vmatprep.subr.bf16.mxu0 0
    %1635 = vmatpush1.bf16.xpose.msra.mxu0 0
    %1636 = vmatprep.subr.bf16.mxu0 0
    %1637 = vmatpush1.bf16.xpose.msra.mxu0 %v1622
    %1638 = vmatprep.subr.bf16.mxu0 0
    %1639 = vmatpush1.bf16.xpose.msra.mxu0 %v1619
    %1640 = vmatprep.subr.bf16.mxu0 0
    %1641 = vmatpush2.bf16.xpose.msra.mxu0 0
    %1642 = vmatprep.subr.bf16.mxu0 0
    %1643 = vmatpush2.bf16.xpose.msra.mxu0 0
    %1644 = vmatprep.subr.bf16.mxu0 0
    %1645 = vmatpush2.bf16.xpose.msra.mxu0 0
    %1646 = vmatprep.subr.bf16.mxu0 0
    %1647 = vmatpush2.bf16.xpose.msra.mxu0 0
    %1648 = vmatprep.subr.bf16.mxu0 0
    %1649 = vmatpush2.bf16.xpose.msra.mxu0 0
    %1650 = vmatprep.subr.bf16.mxu0 0
    %1651 = vmatpush2.bf16.xpose.msra.mxu0 0
    %1652 = vmatprep.subr.bf16.mxu0 0
    %1653 = vmatpush2.bf16.xpose.msra.mxu0 0
    %1654 = vmatprep.subr.bf16.mxu0 0
    %1655 = vmatpush2.bf16.xpose.msra.mxu0 0
    %1656 = vmatprep.mubr.bf16.mxu0 0
    %1657 = vmatmul.mubr.bf16.gmra.mxu0 %v1616
    %v1658 = vpop.f32.mrf.mxu0
    %v1659 = vadd.f32 %v140, %v1658
    %v1660 = vpop.f32.mrf.mxu0
    %v1661 = vpop.f32.mrf.mxu0
    %v1662 = vadd.f32 %v141, %v1661
    %v1663 = vpop.f32.mrf.mxu0
    %1664 = vdwg.mxu0
    %1666 = vrot.lane.b32.xlu0 %v1612, 120
    %v1667 = vpop.permute.xlu0 %1666
    %1670 = vrot.lane.b32.xlu0 %v1613, 120
    %v1671 = vpop.permute.xlu0 %1670
    %1672 = vrot.lane.b32.xlu0 %v1614, 120
    %v1673 = vpop.permute.xlu0 %1672
    %v1675 = vsel %vm235, %v1667, 0
    %v1678 = vsel %vm235, %v1671, 0
    %v1681 = vsel %vm235, %v1673, 0
    %1683 = vmatprep.subr.bf16.mxu0 0
    %1684 = vmatpush1.bf16.xpose.msra.mxu0 0
    %1685 = vmatprep.subr.bf16.mxu0 0
    %1686 = vmatpush1.bf16.xpose.msra.mxu0 0
    %1687 = vmatprep.subr.bf16.mxu0 0
    %1688 = vmatpush1.bf16.xpose.msra.mxu0 0
    %1689 = vmatprep.subr.bf16.mxu0 0
    %1690 = vmatpush1.bf16.xpose.msra.mxu0 0
    %1691 = vmatprep.subr.bf16.mxu0 0
    %1692 = vmatpush1.bf16.xpose.msra.mxu0 0
    %1693 = vmatprep.subr.bf16.mxu0 0
    %1694 = vmatpush1.bf16.xpose.msra.mxu0 0
    %1695 = vmatprep.subr.bf16.mxu0 0
    %1696 = vmatpush1.bf16.xpose.msra.mxu0 %v1681
    %1697 = vmatprep.subr.bf16.mxu0 0
    %1698 = vmatpush1.bf16.xpose.msra.mxu0 %v1678
    %1699 = vmatprep.subr.bf16.mxu0 0
    %1700 = vmatpush2.bf16.xpose.msra.mxu0 0
    %1701 = vmatprep.subr.bf16.mxu0 0
    %1702 = vmatpush2.bf16.xpose.msra.mxu0 0
    %1703 = vmatprep.subr.bf16.mxu0 0
    %1704 = vmatpush2.bf16.xpose.msra.mxu0 0
    %1705 = vmatprep.subr.bf16.mxu0 0
    %1706 = vmatpush2.bf16.xpose.msra.mxu0 0
    %1707 = vmatprep.subr.bf16.mxu0 0
    %1708 = vmatpush2.bf16.xpose.msra.mxu0 0
    %1709 = vmatprep.subr.bf16.mxu0 0
    %1710 = vmatpush2.bf16.xpose.msra.mxu0 0
    %1711 = vmatprep.subr.bf16.mxu0 0
    %1712 = vmatpush2.bf16.xpose.msra.mxu0 0
    %1713 = vmatprep.subr.bf16.mxu0 0
    %1714 = vmatpush2.bf16.xpose.msra.mxu0 0
    %1715 = vmatprep.mubr.bf16.mxu0 0
    %1716 = vmatmul.mubr.bf16.gmra.mxu0 %v1675
    %v1717 = vpop.f32.mrf.mxu0
    %v1718 = vadd.f32 %v140, %v1717
    %v1719 = vpop.f32.mrf.mxu0
    %v1720 = vpop.f32.mrf.mxu0
    %v1721 = vadd.f32 %v141, %v1720
    %v1722 = vpop.f32.mrf.mxu0
    %1723 = vdwg.mxu0
    %1724 = vrot.lane.b32.xlu0 %v1612, 112
    %v1725 = vpop.permute.xlu0 %1724
    %1726 = vrot.lane.b32.xlu0 %v1613, 112
    %v1727 = vpop.permute.xlu0 %1726
    %1728 = vrot.lane.b32.xlu0 %v1614, 112
    %v1729 = vpop.permute.xlu0 %1728
    %v1731 = vsel %vm235, %v1725, 0
    %v1734 = vsel %vm235, %v1727, 0
    %v1737 = vsel %vm235, %v1729, 0
    %1739 = vmatprep.subr.bf16.mxu0 0
    %1740 = vmatpush1.bf16.xpose.msra.mxu0 0
    %1741 = vmatprep.subr.bf16.mxu0 0
    %1742 = vmatpush1.bf16.xpose.msra.mxu0 0
    %1743 = vmatprep.subr.bf16.mxu0 0
    %1744 = vmatpush1.bf16.xpose.msra.mxu0 0
    %1745 = vmatprep.subr.bf16.mxu0 0
    %1746 = vmatpush1.bf16.xpose.msra.mxu0 0
    %1747 = vmatprep.subr.bf16.mxu0 0
    %1748 = vmatpush1.bf16.xpose.msra.mxu0 0
    %1749 = vmatprep.subr.bf16.mxu0 0
    %1750 = vmatpush1.bf16.xpose.msra.mxu0 0
    %1751 = vmatprep.subr.bf16.mxu0 0
    %1752 = vmatpush1.bf16.xpose.msra.mxu0 %v1737
    %1753 = vmatprep.subr.bf16.mxu0 0
    %1754 = vmatpush1.bf16.xpose.msra.mxu0 %v1734
    %1755 = vmatprep.subr.bf16.mxu0 0
    %1756 = vmatpush2.bf16.xpose.msra.mxu0 0
    %1757 = vmatprep.subr.bf16.mxu0 0
    %1758 = vmatpush2.bf16.xpose.msra.mxu0 0
    %1759 = vmatprep.subr.bf16.mxu0 0
    %1760 = vmatpush2.bf16.xpose.msra.mxu0 0
    %1761 = vmatprep.subr.bf16.mxu0 0
    %1762 = vmatpush2.bf16.xpose.msra.mxu0 0
    %1763 = vmatprep.subr.bf16.mxu0 0
    %1764 = vmatpush2.bf16.xpose.msra.mxu0 0
    %1765 = vmatprep.subr.bf16.mxu0 0
    %1766 = vmatpush2.bf16.xpose.msra.mxu0 0
    %1767 = vmatprep.subr.bf16.mxu0 0
    %1768 = vmatpush2.bf16.xpose.msra.mxu0 0
    %1769 = vmatprep.subr.bf16.mxu0 0
    %1770 = vmatpush2.bf16.xpose.msra.mxu0 0
    %1771 = vmatprep.mubr.bf16.mxu0 0
    %1772 = vmatmul.mubr.bf16.gmra.mxu0 %v1731
    %v1773 = vpop.f32.mrf.mxu0
    %v1774 = vadd.f32 %v140, %v1773
    %v1775 = vpop.f32.mrf.mxu0
    %v1776 = vpop.f32.mrf.mxu0
    %v1777 = vadd.f32 %v141, %v1776
    %v1778 = vpop.f32.mrf.mxu0
    %1779 = vdwg.mxu0
    %1780 = vrot.lane.b32.xlu0 %v1612, 104
    %v1781 = vpop.permute.xlu0 %1780
    %1782 = vrot.lane.b32.xlu0 %v1613, 104
    %v1783 = vpop.permute.xlu0 %1782
    %1784 = vrot.lane.b32.xlu0 %v1614, 104
    %v1785 = vpop.permute.xlu0 %1784
    %v1787 = vsel %vm235, %v1781, 0
    %v1790 = vsel %vm235, %v1783, 0
    %v1793 = vsel %vm235, %v1785, 0
    %1795 = vmatprep.subr.bf16.mxu0 0
    %1796 = vmatpush1.bf16.xpose.msra.mxu0 0
    %1797 = vmatprep.subr.bf16.mxu0 0
    %1798 = vmatpush1.bf16.xpose.msra.mxu0 0
    %1799 = vmatprep.subr.bf16.mxu0 0
    %1800 = vmatpush1.bf16.xpose.msra.mxu0 0
    %1801 = vmatprep.subr.bf16.mxu0 0
    %1802 = vmatpush1.bf16.xpose.msra.mxu0 0
    %1803 = vmatprep.subr.bf16.mxu0 0
    %1804 = vmatpush1.bf16.xpose.msra.mxu0 0
    %1805 = vmatprep.subr.bf16.mxu0 0
    %1806 = vmatpush1.bf16.xpose.msra.mxu0 0
    %1807 = vmatprep.subr.bf16.mxu0 0
    %1808 = vmatpush1.bf16.xpose.msra.mxu0 %v1793
    %1809 = vmatprep.subr.bf16.mxu0 0
    %1810 = vmatpush1.bf16.xpose.msra.mxu0 %v1790
    %1811 = vmatprep.subr.bf16.mxu0 0
    %1812 = vmatpush2.bf16.xpose.msra.mxu0 0
    %1813 = vmatprep.subr.bf16.mxu0 0
    %1814 = vmatpush2.bf16.xpose.msra.mxu0 0
    %1815 = vmatprep.subr.bf16.mxu0 0
    %1816 = vmatpush2.bf16.xpose.msra.mxu0 0
    %1817 = vmatprep.subr.bf16.mxu0 0
    %1818 = vmatpush2.bf16.xpose.msra.mxu0 0
    %1819 = vmatprep.subr.bf16.mxu0 0
    %1820 = vmatpush2.bf16.xpose.msra.mxu0 0
    %1821 = vmatprep.subr.bf16.mxu0 0
    %1822 = vmatpush2.bf16.xpose.msra.mxu0 0
    %1823 = vmatprep.subr.bf16.mxu0 0
    %1824 = vmatpush2.bf16.xpose.msra.mxu0 0
    %1825 = vmatprep.subr.bf16.mxu0 0
    %1826 = vmatpush2.bf16.xpose.msra.mxu0 0
    %1827 = vmatprep.mubr.bf16.mxu0 0
    %1828 = vmatmul.mubr.bf16.gmra.mxu0 %v1787
    %v1829 = vpop.f32.mrf.mxu0
    %v1830 = vadd.f32 %v140, %v1829
    %v1831 = vpop.f32.mrf.mxu0
    %v1832 = vpop.f32.mrf.mxu0
    %v1833 = vadd.f32 %v141, %v1832
    %v1834 = vpop.f32.mrf.mxu0
    %1835 = vdwg.mxu0
    %v1836 = vsel %vm163, %v1659, -inf
    %1837 = vmax.xlane.f32.xlu0 %v1836
    %v1838 = vpop.xlane.xlu0 %1837
    %v1839 = vsel %vm163, %v1662, -inf
    %1840 = vmax.xlane.f32.xlu0 %v1839
    %v1841 = vpop.xlane.xlu0 %1840
    %v1842 = vsel %vm163, %v1718, -inf
    %1843 = vmax.xlane.f32.xlu0 %v1842
    %v1844 = vpop.xlane.xlu0 %1843
    %v1845 = vsel %vm163, %v1721, -inf
    %1846 = vmax.xlane.f32.xlu0 %v1845
    %v1847 = vpop.xlane.xlu0 %1846
    %v1848 = vsel %vm163, %v1774, -inf
    %1849 = vmax.xlane.f32.xlu0 %v1848
    %v1850 = vpop.xlane.xlu0 %1849
    %v1851 = vsel %vm163, %v1777, -inf
    %1852 = vmax.xlane.f32.xlu0 %v1851
    %v1853 = vpop.xlane.xlu0 %1852
    %v1854 = vsel %vm163, %v1830, -inf
    %1855 = vmax.xlane.f32.xlu0 %v1854
    %v1856 = vpop.xlane.xlu0 %1855
    %v1857 = vsel %vm163, %v1833, -inf
    %1858 = vmax.xlane.f32.xlu0 %v1857
    %v1859 = vpop.xlane.xlu0 %1858
    %v1860 = vsub.f32 %v1659, %v1838
    %v1861 = vsub.f32 %v1662, %v1841
    %v1862 = vsub.f32 %v1718, %v1844
    %v1863 = vsub.f32 %v1721, %v1847
    %v1864 = vsub.f32 %v1774, %v1850
    %v1865 = vsub.f32 %v1777, %v1853
    %v1866 = vsub.f32 %v1830, %v1856
    %v1867 = vsub.f32 %v1833, %v1859
    %v1868 = vmul.f32 %v1860, 1.442695
    %v1869 = vpow.pop %v1868
    %v1870 = vmul.f32 %v1861, 1.442695
    %v1871 = vpow.pop %v1870
    %v1872 = vmul.f32 %v1862, 1.442695
    %v1873 = vpow.pop %v1872
    %v1874 = vmul.f32 %v1863, 1.442695
    %v1875 = vpow.pop %v1874
    %v1876 = vmul.f32 %v1864, 1.442695
    %v1877 = vpow.pop %v1876
    %v1878 = vmul.f32 %v1865, 1.442695
    %v1879 = vpow.pop %v1878
    %v1880 = vmul.f32 %v1866, 1.442695
    %v1881 = vpow.pop %v1880
    %v1882 = vmul.f32 %v1867, 1.442695
    %v1883 = vpow.pop %v1882
    %v1884 = vsel %vm163, %v1869, 0.0
    %1885 = vadd.xlane.f32.xlu0 %v1884
    %v1886 = vpop.xlane.xlu0 %1885
    %v1887 = vsel %vm163, %v1871, 0.0
    %1888 = vadd.xlane.f32.xlu0 %v1887
    %v1889 = vpop.xlane.xlu0 %1888
    %v1890 = vsel %vm163, %v1873, 0.0
    %1891 = vadd.xlane.f32.xlu0 %v1890
    %v1892 = vpop.xlane.xlu0 %1891
    %v1893 = vsel %vm163, %v1875, 0.0
    %1894 = vadd.xlane.f32.xlu0 %v1893
    %v1895 = vpop.xlane.xlu0 %1894
    %v1896 = vsel %vm163, %v1877, 0.0
    %1897 = vadd.xlane.f32.xlu0 %v1896
    %v1898 = vpop.xlane.xlu0 %1897
    %v1899 = vsel %vm163, %v1879, 0.0
    %1900 = vadd.xlane.f32.xlu0 %v1899
    %v1901 = vpop.xlane.xlu0 %1900
    %v1902 = vsel %vm163, %v1881, 0.0
    %1903 = vadd.xlane.f32.xlu0 %v1902
    %v1904 = vpop.xlane.xlu0 %1903
    %v1905 = vsel %vm163, %v1883, 0.0
    %1906 = vadd.xlane.f32.xlu0 %v1905
    %v1907 = vpop.xlane.xlu0 %1906
    %v1908 = vrcp.pop %v1886
    %v1909 = vrcp.pop %v1889
    %v1910 = vrcp.pop %v1892
    %v1911 = vrcp.pop %v1895
    %v1912 = vrcp.pop %v1898
    %v1913 = vrcp.pop %v1901
    %v1914 = vrcp.pop %v1904
    %v1915 = vrcp.pop %v1907
    %v1916 = vmul.f32 %v1869, %v1908
    %v1917 = vmul.f32 %v1871, %v1909
    %v1918 = vmul.f32 %v1873, %v1910
    %v1919 = vmul.f32 %v1875, %v1911
    %v1920 = vmul.f32 %v1877, %v1912
    %v1921 = vmul.f32 %v1879, %v1913
    %v1922 = vmul.f32 %v1881, %v1914
    %v1923 = vmul.f32 %v1883, %v1915
    %v1924 = vpack.c.bf16 %v1917, %v1916
    %v1925 = vpack.c.bf16 %v1919, %v1918
    %v1926 = vpack.c.bf16 %v1921, %v1920
    %v1927 = vpack.c.bf16 %v1923, %v1922
    %1928 = vrot.lane.b32.xlu0 %v1613, 96
    %v1929 = vpop.permute.xlu0 %1928
    %1930 = vrot.lane.b32.xlu0 %v1614, 96
    %v1931 = vpop.permute.xlu0 %1930
    %v1935 = vsel %vm163, %v1924, 0
    %1937 = vmatprep.subr.bf16.mxu0 0
    %1938 = vmatpush1.bf16.msra.mxu0 0
    %1939 = vmatprep.subr.bf16.mxu0 0
    %1940 = vmatpush1.bf16.msra.mxu0 0
    %1941 = vmatprep.subr.bf16.mxu0 0
    %1942 = vmatpush1.bf16.msra.mxu0 0
    %1943 = vmatprep.subr.bf16.mxu0 0
    %1944 = vmatpush1.bf16.msra.mxu0 0
    %1945 = vmatprep.subr.bf16.mxu0 0
    %1946 = vmatpush1.bf16.msra.mxu0 0
    %1947 = vmatprep.subr.bf16.mxu0 0
    %1948 = vmatpush1.bf16.msra.mxu0 0
    %1949 = vmatprep.subr.bf16.mxu0 0
    %1950 = vmatpush1.bf16.msra.mxu0 %v1931
    %1951 = vmatprep.subr.bf16.mxu0 0
    %1952 = vmatpush1.bf16.msra.mxu0 %v1929
    %1953 = vmatprep.subr.bf16.mxu0 0
    %1954 = vmatpush2.bf16.msra.mxu0 0
    %1955 = vmatprep.subr.bf16.mxu0 0
    %1956 = vmatpush2.bf16.msra.mxu0 0
    %1957 = vmatprep.subr.bf16.mxu0 0
    %1958 = vmatpush2.bf16.msra.mxu0 0
    %1959 = vmatprep.subr.bf16.mxu0 0
    %1960 = vmatpush2.bf16.msra.mxu0 0
    %1961 = vmatprep.subr.bf16.mxu0 0
    %1962 = vmatpush2.bf16.msra.mxu0 0
    %1963 = vmatprep.subr.bf16.mxu0 0
    %1964 = vmatpush2.bf16.msra.mxu0 0
    %1965 = vmatprep.subr.bf16.mxu0 0
    %1966 = vmatpush2.bf16.msra.mxu0 0
    %1967 = vmatprep.subr.bf16.mxu0 0
    %1968 = vmatpush2.bf16.msra.mxu0 0
    %1969 = vmatprep.mubr.bf16.mxu0 0
    %1970 = vmatmul.mubr.bf16.gmra.mxu0 %v1935
    %v1971 = vpop.f32.mrf.mxu0
    %v1972 = vadd.f32 0.0, %v1971
    %v1973 = vpop.f32.mrf.mxu0
    %v1974 = vpop.f32.mrf.mxu0
    %v1975 = vadd.f32 0.0, %v1974
    %v1976 = vpop.f32.mrf.mxu0
    %1977 = vdwg.mxu0
    %1978 = vrot.lane.b32.xlu0 %v1613, 88
    %v1979 = vpop.permute.xlu0 %1978
    %1980 = vrot.lane.b32.xlu0 %v1614, 88
    %v1981 = vpop.permute.xlu0 %1980
    %v1985 = vsel %vm163, %v1925, 0
    %1987 = vmatprep.subr.bf16.mxu0 0
    %1988 = vmatpush1.bf16.msra.mxu0 0
    %1989 = vmatprep.subr.bf16.mxu0 0
    %1990 = vmatpush1.bf16.msra.mxu0 0
    %1991 = vmatprep.subr.bf16.mxu0 0
    %1992 = vmatpush1.bf16.msra.mxu0 0
    %1993 = vmatprep.subr.bf16.mxu0 0
    %1994 = vmatpush1.bf16.msra.mxu0 0
    %1995 = vmatprep.subr.bf16.mxu0 0
    %1996 = vmatpush1.bf16.msra.mxu0 0
    %1997 = vmatprep.subr.bf16.mxu0 0
    %1998 = vmatpush1.bf16.msra.mxu0 0
    %1999 = vmatprep.subr.bf16.mxu0 0
    %2000 = vmatpush1.bf16.msra.mxu0 %v1981
    %2001 = vmatprep.subr.bf16.mxu0 0
    %2002 = vmatpush1.bf16.msra.mxu0 %v1979
    %2003 = vmatprep.subr.bf16.mxu0 0
    %2004 = vmatpush2.bf16.msra.mxu0 0
    %2005 = vmatprep.subr.bf16.mxu0 0
    %2006 = vmatpush2.bf16.msra.mxu0 0
    %2007 = vmatprep.subr.bf16.mxu0 0
    %2008 = vmatpush2.bf16.msra.mxu0 0
    %2009 = vmatprep.subr.bf16.mxu0 0
    %2010 = vmatpush2.bf16.msra.mxu0 0
    %2011 = vmatprep.subr.bf16.mxu0 0
    %2012 = vmatpush2.bf16.msra.mxu0 0
    %2013 = vmatprep.subr.bf16.mxu0 0
    %2014 = vmatpush2.bf16.msra.mxu0 0
    %2015 = vmatprep.subr.bf16.mxu0 0
    %2016 = vmatpush2.bf16.msra.mxu0 0
    %2017 = vmatprep.subr.bf16.mxu0 0
    %2018 = vmatpush2.bf16.msra.mxu0 0
    %2019 = vmatprep.mubr.bf16.mxu0 0
    %2020 = vmatmul.mubr.bf16.gmra.mxu0 %v1985
    %v2021 = vpop.f32.mrf.mxu0
    %v2022 = vadd.f32 0.0, %v2021
    %v2023 = vpop.f32.mrf.mxu0
    %v2024 = vpop.f32.mrf.mxu0
    %v2025 = vadd.f32 0.0, %v2024
    %v2026 = vpop.f32.mrf.mxu0
    %2027 = vdwg.mxu0
    %2028 = vrot.lane.b32.xlu0 %v1613, 80
    %v2029 = vpop.permute.xlu0 %2028
    %2030 = vrot.lane.b32.xlu0 %v1614, 80
    %v2031 = vpop.permute.xlu0 %2030
    %v2035 = vsel %vm163, %v1926, 0
    %2037 = vmatprep.subr.bf16.mxu0 0
    %2038 = vmatpush1.bf16.msra.mxu0 0
    %2039 = vmatprep.subr.bf16.mxu0 0
    %2040 = vmatpush1.bf16.msra.mxu0 0
    %2041 = vmatprep.subr.bf16.mxu0 0
    %2042 = vmatpush1.bf16.msra.mxu0 0
    %2043 = vmatprep.subr.bf16.mxu0 0
    %2044 = vmatpush1.bf16.msra.mxu0 0
    %2045 = vmatprep.subr.bf16.mxu0 0
    %2046 = vmatpush1.bf16.msra.mxu0 0
    %2047 = vmatprep.subr.bf16.mxu0 0
    %2048 = vmatpush1.bf16.msra.mxu0 0
    %2049 = vmatprep.subr.bf16.mxu0 0
    %2050 = vmatpush1.bf16.msra.mxu0 %v2031
    %2051 = vmatprep.subr.bf16.mxu0 0
    %2052 = vmatpush1.bf16.msra.mxu0 %v2029
    %2053 = vmatprep.subr.bf16.mxu0 0
    %2054 = vmatpush2.bf16.msra.mxu0 0
    %2055 = vmatprep.subr.bf16.mxu0 0
    %2056 = vmatpush2.bf16.msra.mxu0 0
    %2057 = vmatprep.subr.bf16.mxu0 0
    %2058 = vmatpush2.bf16.msra.mxu0 0
    %2059 = vmatprep.subr.bf16.mxu0 0
    %2060 = vmatpush2.bf16.msra.mxu0 0
    %2061 = vmatprep.subr.bf16.mxu0 0
    %2062 = vmatpush2.bf16.msra.mxu0 0
    %2063 = vmatprep.subr.bf16.mxu0 0
    %2064 = vmatpush2.bf16.msra.mxu0 0
    %2065 = vmatprep.subr.bf16.mxu0 0
    %2066 = vmatpush2.bf16.msra.mxu0 0
    %2067 = vmatprep.subr.bf16.mxu0 0
    %2068 = vmatpush2.bf16.msra.mxu0 0
    %2069 = vmatprep.mubr.bf16.mxu0 0
    %2070 = vmatmul.mubr.bf16.gmra.mxu0 %v2035
    %v2071 = vpop.f32.mrf.mxu0
    %v2072 = vadd.f32 0.0, %v2071
    %v2073 = vpop.f32.mrf.mxu0
    %v2074 = vpop.f32.mrf.mxu0
    %v2075 = vadd.f32 0.0, %v2074
    %v2076 = vpop.f32.mrf.mxu0
    %2077 = vdwg.mxu0
    %2078 = vrot.lane.b32.xlu0 %v1613, 72
    %v2079 = vpop.permute.xlu0 %2078
    %2080 = vrot.lane.b32.xlu0 %v1614, 72
    %v2081 = vpop.permute.xlu0 %2080
    %v2085 = vsel %vm163, %v1927, 0
    %2087 = vmatprep.subr.bf16.mxu0 0
    %2088 = vmatpush1.bf16.msra.mxu0 0
    %2089 = vmatprep.subr.bf16.mxu0 0
    %2090 = vmatpush1.bf16.msra.mxu0 0
    %2091 = vmatprep.subr.bf16.mxu0 0
    %2092 = vmatpush1.bf16.msra.mxu0 0
    %2093 = vmatprep.subr.bf16.mxu0 0
    %2094 = vmatpush1.bf16.msra.mxu0 0
    %2095 = vmatprep.subr.bf16.mxu0 0
    %2096 = vmatpush1.bf16.msra.mxu0 0
    %2097 = vmatprep.subr.bf16.mxu0 0
    %2098 = vmatpush1.bf16.msra.mxu0 0
    %2099 = vmatprep.subr.bf16.mxu0 0
    %2100 = vmatpush1.bf16.msra.mxu0 %v2081
    %2101 = vmatprep.subr.bf16.mxu0 0
    %2102 = vmatpush1.bf16.msra.mxu0 %v2079
    %2103 = vmatprep.subr.bf16.mxu0 0
    %2104 = vmatpush2.bf16.msra.mxu0 0
    %2105 = vmatprep.subr.bf16.mxu0 0
    %2106 = vmatpush2.bf16.msra.mxu0 0
    %2107 = vmatprep.subr.bf16.mxu0 0
    %2108 = vmatpush2.bf16.msra.mxu0 0
    %2109 = vmatprep.subr.bf16.mxu0 0
    %2110 = vmatpush2.bf16.msra.mxu0 0
    %2111 = vmatprep.subr.bf16.mxu0 0
    %2112 = vmatpush2.bf16.msra.mxu0 0
    %2113 = vmatprep.subr.bf16.mxu0 0
    %2114 = vmatpush2.bf16.msra.mxu0 0
    %2115 = vmatprep.subr.bf16.mxu0 0
    %2116 = vmatpush2.bf16.msra.mxu0 0
    %2117 = vmatprep.subr.bf16.mxu0 0
    %2118 = vmatpush2.bf16.msra.mxu0 0
    %2119 = vmatprep.mubr.bf16.mxu0 0
    %2120 = vmatmul.mubr.bf16.gmra.mxu0 %v2085
    %v2121 = vpop.f32.mrf.mxu0
    %v2122 = vadd.f32 0.0, %v2121
    %v2123 = vpop.f32.mrf.mxu0
    %v2124 = vpop.f32.mrf.mxu0
    %v2125 = vadd.f32 0.0, %v2124
    %v2126 = vpop.f32.mrf.mxu0
    %2127 = vdwg.mxu0
    %2130 = vrot.lane.b32.xlu0 %v2022, 8
    %v2131 = vpop.permute.xlu0 %2130
    %2132 = vrot.lane.b32.xlu0 %v2025, 8
    %v2133 = vpop.permute.xlu0 %2132
    %2138 = vrot.lane.b32.xlu0 %v2072, 16
    %v2139 = vpop.permute.xlu0 %2138
    %2140 = vrot.lane.b32.xlu0 %v2075, 16
    %v2141 = vpop.permute.xlu0 %2140
    %2146 = vrot.lane.b32.xlu0 %v2122, 24
    %v2147 = vpop.permute.xlu0 %2146
    %2148 = vrot.lane.b32.xlu0 %v2125, 24
    %v2149 = vpop.permute.xlu0 %2148
    %v2152 = vsel %vm235, %v1972, %v2131
    %v2153 = vsel %vm235, %v1975, %v2133
    %v2154 = vsel %vm436, %v2152, %v2139
    %v2155 = vsel %vm436, %v2153, %v2141
    %v2156 = vsel %vm745, %v2154, %v2147
    %v2157 = vsel %vm745, %v2155, %v2149
    %v2158 = vpack.c.bf16 %v2157, %v2156
    %v2159 = vlaneseq
    %v2160 = vshrl.u32 %v2159, 7
    %v2161 = vsub.s32 0, %v2160
    %v2162 = vrot.slane %v1611, %v2161
    %v2167 = vunpack.c.l.b16 %v1607
    %v2168 = vunpack.c.l.b16 %v1608
    %v2169 = vunpack.c.l.b16 %v1609
    %v2170 = vunpack.c.l.b16 %v1610
    %v2171 = vpack.c.b16 %v2168, %v2167
    %v2172 = vpack.c.b16 %v2170, %v2169
    %v2176 = vsel %vm163, %v2158, 0
    %2178 = vmatprep.subr.bf16.mxu0 0
    %2179 = vmatpush1.bf16.msra.mxu0 0
    %2180 = vmatprep.subr.bf16.mxu0 0
    %2181 = vmatpush1.bf16.msra.mxu0 0
    %2182 = vmatprep.subr.bf16.mxu0 0
    %2183 = vmatpush1.bf16.msra.mxu0 0
    %2184 = vmatprep.subr.bf16.mxu0 0
    %2185 = vmatpush1.bf16.msra.mxu0 0
    %2186 = vmatprep.subr.bf16.mxu0 0
    %2187 = vmatpush1.bf16.msra.mxu0 0
    %2188 = vmatprep.subr.bf16.mxu0 0
    %2189 = vmatpush1.bf16.msra.mxu0 0
    %2190 = vmatprep.subr.bf16.mxu0 0
    %2191 = vmatpush1.bf16.msra.mxu0 %v2172
    %2192 = vmatprep.subr.bf16.mxu0 0
    %2193 = vmatpush1.bf16.msra.mxu0 %v2171
    %2194 = vmatprep.subr.bf16.mxu0 0
    %2195 = vmatpush2.bf16.msra.mxu0 0
    %2196 = vmatprep.subr.bf16.mxu0 0
    %2197 = vmatpush2.bf16.msra.mxu0 0
    %2198 = vmatprep.subr.bf16.mxu0 0
    %2199 = vmatpush2.bf16.msra.mxu0 0
    %2200 = vmatprep.subr.bf16.mxu0 0
    %2201 = vmatpush2.bf16.msra.mxu0 0
    %2202 = vmatprep.subr.bf16.mxu0 0
    %2203 = vmatpush2.bf16.msra.mxu0 0
    %2204 = vmatprep.subr.bf16.mxu0 0
    %2205 = vmatpush2.bf16.msra.mxu0 0
    %2206 = vmatprep.subr.bf16.mxu0 0
    %2207 = vmatpush2.bf16.msra.mxu0 0
    %2208 = vmatprep.subr.bf16.mxu0 0
    %2209 = vmatpush2.bf16.msra.mxu0 0
    %2210 = vmatprep.mubr.bf16.mxu0 0
    %2211 = vmatmul.mubr.bf16.gmra.mxu0 %v2176
    %v2212 = vpop.f32.mrf.mxu0
    %v2213 = vadd.f32 %v2162, %v2212
    %v2214 = vpop.f32.mrf.mxu0
    %v2215 = vpop.f32.mrf.mxu0
    %v2216 = vadd.f32 %v2162, %v2215
    %v2217 = vpop.f32.mrf.mxu0
    %2218 = vdwg.mxu0
    %v2219 = vadd.f32 %v1433, %v2213
    %v2220 = vadd.f32 %v1434, %v2216
    %v2221 = vld [vmem:[#allocation13 + $0xd] sm:$0x1]
    %v2222 = vld [vmem:[#allocation13 + $0xe] sm:$0x1]
    %v2223 = vsel %vm163, %v2219, 0.0
    %2224 = vadd.xlane.f32.xlu0 %v2223
    %v2225 = vpop.xlane.xlu0 %2224
    %v2226 = vsel %vm163, %v2220, 0.0
    %2227 = vadd.xlane.f32.xlu0 %v2226
    %v2228 = vpop.xlane.xlu0 %2227
    %v2229 = vmul.f32 %v2225, %v1402
    %v2230 = vmul.f32 %v2228, %v1402
    %v2231 = vsub.f32 %v2219, %v2229
    %v2232 = vsub.f32 %v2220, %v2230
    %v2233 = vmul.f32 %v2231, %v2231
    %v2234 = vmul.f32 %v2232, %v2232
    %v2235 = vsel %vm163, %v2233, 0.0
    %2236 = vadd.xlane.f32.xlu0 %v2235
    %v2237 = vpop.xlane.xlu0 %2236
    %v2238 = vsel %vm163, %v2234, 0.0
    %2239 = vadd.xlane.f32.xlu0 %v2238
    %v2240 = vpop.xlane.xlu0 %2239
    %v2241 = vmul.f32 %v2237, %v1402
    %v2242 = vmul.f32 %v2240, %v1402
    %v2243 = vadd.f32 %v2241, 1e-05
    %v2244 = vadd.f32 %v2242, 1e-05
    %v2245 = vrsqrt.pop %v2243
    %v2246 = vrsqrt.pop %v2244
    %v2247 = vmul.f32 %v2231, %v2245
    %v2248 = vmul.f32 %v2232, %v2246
    %v2249 = vlaneseq
    %v2250 = vshrl.u32 %v2249, 7
    %v2251 = vsub.s32 0, %v2250
    %v2252 = vrot.slane %v2221, %v2251
    %v2253 = vmul.f32 %v2247, %v2252
    %v2254 = vmul.f32 %v2248, %v2252
    %v2255 = vlaneseq
    %v2256 = vshrl.u32 %v2255, 7
    %v2257 = vsub.s32 0, %v2256
    %v2258 = vrot.slane %v2222, %v2257
    %v2259 = vadd.f32 %v2253, %v2258
    %v2260 = vadd.f32 %v2254, %v2258
    %v2261 = vpack.c.bf16 %v2260, %v2259
    %v2262 = vld [vmem:[#allocation11 + $0x24] sm:$0xf]
    %v2263 = vld [vmem:[#allocation11 + $0x50] sm:$0xf]
    %v2264 = vld [vmem:[#allocation11 + $0x7c] sm:$0xf]
    %v2265 = vld [vmem:[#allocation11 + $0xa8] sm:$0xf]
    %v2266 = vld [vmem:[#allocation13 + $0x9] sm:$0x1]
    %v2267 = vlaneseq
    %v2268 = vshrl.u32 %v2267, 7
    %v2269 = vsub.s32 0, %v2268
    %v2270 = vrot.slane %v2266, %v2269
    %v2275 = vunpack.c.l.b16 %v2262
    %v2276 = vunpack.c.l.b16 %v2263
    %v2277 = vunpack.c.l.b16 %v2264
    %v2278 = vunpack.c.l.b16 %v2265
    %v2279 = vpack.c.b16 %v2276, %v2275
    %v2280 = vpack.c.b16 %v2278, %v2277
    %v2284 = vsel %vm163, %v2261, 0
    %2286 = vmatprep.subr.bf16.mxu0 0
    %2287 = vmatpush1.bf16.msra.mxu0 0
    %2288 = vmatprep.subr.bf16.mxu0 0
    %2289 = vmatpush1.bf16.msra.mxu0 0
    %2290 = vmatprep.subr.bf16.mxu0 0
    %2291 = vmatpush1.bf16.msra.mxu0 0
    %2292 = vmatprep.subr.bf16.mxu0 0
    %2293 = vmatpush1.bf16.msra.mxu0 0
    %2294 = vmatprep.subr.bf16.mxu0 0
    %2295 = vmatpush1.bf16.msra.mxu0 0
    %2296 = vmatprep.subr.bf16.mxu0 0
    %2297 = vmatpush1.bf16.msra.mxu0 0
    %2298 = vmatprep.subr.bf16.mxu0 0
    %2299 = vmatpush1.bf16.msra.mxu0 %v2280
    %2300 = vmatprep.subr.bf16.mxu0 0
    %2301 = vmatpush1.bf16.msra.mxu0 %v2279
    %2302 = vmatprep.subr.bf16.mxu0 0
    %2303 = vmatpush2.bf16.msra.mxu0 0
    %2304 = vmatprep.subr.bf16.mxu0 0
    %2305 = vmatpush2.bf16.msra.mxu0 0
    %2306 = vmatprep.subr.bf16.mxu0 0
    %2307 = vmatpush2.bf16.msra.mxu0 0
    %2308 = vmatprep.subr.bf16.mxu0 0
    %2309 = vmatpush2.bf16.msra.mxu0 0
    %2310 = vmatprep.subr.bf16.mxu0 0
    %2311 = vmatpush2.bf16.msra.mxu0 0
    %2312 = vmatprep.subr.bf16.mxu0 0
    %2313 = vmatpush2.bf16.msra.mxu0 0
    %2314 = vmatprep.subr.bf16.mxu0 0
    %2315 = vmatpush2.bf16.msra.mxu0 0
    %2316 = vmatprep.subr.bf16.mxu0 0
    %2317 = vmatpush2.bf16.msra.mxu0 0
    %2318 = vmatprep.mubr.bf16.mxu0 0
    %2319 = vmatmul.mubr.bf16.gmra.mxu0 %v2284
    %v2320 = vpop.f32.mrf.mxu0
    %v2321 = vadd.f32 %v2270, %v2320
    %v2322 = vpop.f32.mrf.mxu0
    %v2323 = vpop.f32.mrf.mxu0
    %v2324 = vadd.f32 %v2270, %v2323
    %v2325 = vpop.f32.mrf.mxu0
    %2326 = vdwg.mxu0
    %v2327 = vmul.f32 %v2321, %v2321
    %v2328 = vmul.f32 %v2324, %v2324
    %v2329 = vmul.f32 %v2321, %v2327
    %v2330 = vmul.f32 %v2324, %v2328
    %v2331 = vmul.f32 %v2329, 0.044715
    %v2332 = vmul.f32 %v2330, 0.044715
    %v2333 = vadd.f32 %v2321, %v2331
    %v2334 = vadd.f32 %v2324, %v2332
    %v2335 = vmul.f32 %v2333, 0.7978846
    %v2336 = vmul.f32 %v2334, 0.7978846
    %v2337 = vtanh.pop %v2335
    %v2338 = vtanh.pop %v2336
    %v2339 = vadd.f32 %v2337, 1.0
    %v2340 = vadd.f32 %v2338, 1.0
    %v2341 = vmul.f32 %v2339, 0.5
    %v2342 = vmul.f32 %v2340, 0.5
    %v2343 = vmul.f32 %v2321, %v2341
    %v2344 = vmul.f32 %v2324, %v2342
    %v2345 = vpack.c.bf16 %v2344, %v2343
    %v2346 = vld [vmem:[#allocation11 + $0x28] sm:$0xf]
    %v2347 = vld [vmem:[#allocation11 + $0x54] sm:$0xf]
    %v2348 = vld [vmem:[#allocation11 + $0x80] sm:$0xf]
    %v2349 = vld [vmem:[#allocation11 + $0xac] sm:$0xf]
    %v2350 = vld [vmem:[#allocation11 + $0xd8] sm:$0xf]
    %v2351 = vld [vmem:[#allocation11 + $0x104] sm:$0xf]
    %v2352 = vld [vmem:[#allocation11 + $0x130] sm:$0xf]
    %v2353 = vld [vmem:[#allocation11 + $0x15c] sm:$0xf]
    %v2362 = vunpack.c.l.b16 %v2346
    %v2363 = vunpack.c.l.b16 %v2347
    %v2364 = vunpack.c.l.b16 %v2348
    %v2365 = vunpack.c.l.b16 %v2349
    %v2366 = vunpack.c.l.b16 %v2350
    %v2367 = vunpack.c.l.b16 %v2351
    %v2368 = vunpack.c.l.b16 %v2352
    %v2369 = vunpack.c.l.b16 %v2353
    %v2370 = vpack.c.b16 %v2363, %v2362
    %v2371 = vpack.c.b16 %v2365, %v2364
    %v2372 = vpack.c.b16 %v2367, %v2366
    %v2373 = vpack.c.b16 %v2369, %v2368
    %vm2378 = vcmask 523264
    %v2380 = vsel %vm2378, %v2345, 0
    %2382 = vmatprep.subr.bf16.mxu0 0
    %2383 = vmatpush1.bf16.msra.mxu0 0
    %2384 = vmatprep.subr.bf16.mxu0 0
    %2385 = vmatpush1.bf16.msra.mxu0 0
    %2386 = vmatprep.subr.bf16.mxu0 0
    %2387 = vmatpush1.bf16.msra.mxu0 0
    %2388 = vmatprep.subr.bf16.mxu0 0
    %2389 = vmatpush1.bf16.msra.mxu0 0
    %2390 = vmatprep.subr.bf16.mxu0 0
    %2391 = vmatpush1.bf16.msra.mxu0 %v2373
    %2392 = vmatprep.subr.bf16.mxu0 0
    %2393 = vmatpush1.bf16.msra.mxu0 %v2372
    %2394 = vmatprep.subr.bf16.mxu0 0
    %2395 = vmatpush1.bf16.msra.mxu0 %v2371
    %2396 = vmatprep.subr.bf16.mxu0 0
    %2397 = vmatpush1.bf16.msra.mxu0 %v2370
    %2398 = vmatprep.subr.bf16.mxu0 0
    %2399 = vmatpush2.bf16.msra.mxu0 0
    %2400 = vmatprep.subr.bf16.mxu0 0
    %2401 = vmatpush2.bf16.msra.mxu0 0
    %2402 = vmatprep.subr.bf16.mxu0 0
    %2403 = vmatpush2.bf16.msra.mxu0 0
    %2404 = vmatprep.subr.bf16.mxu0 0
    %2405 = vmatpush2.bf16.msra.mxu0 0
    %2406 = vmatprep.subr.bf16.mxu0 0
    %2407 = vmatpush2.bf16.msra.mxu0 0
    %2408 = vmatprep.subr.bf16.mxu0 0
    %2409 = vmatpush2.bf16.msra.mxu0 0
    %2410 = vmatprep.subr.bf16.mxu0 0
    %2411 = vmatpush2.bf16.msra.mxu0 0
    %2412 = vmatprep.subr.bf16.mxu0 0
    %2413 = vmatpush2.bf16.msra.mxu0 0
    %2414 = vmatprep.mubr.bf16.mxu0 0
    %2415 = vmatmul.mubr.bf16.gmra.mxu0 %v2380
    %v2416 = vpop.f32.mrf.mxu0
    %v2417 = vadd.f32 0.0, %v2416
    %v2418 = vpop.f32.mrf.mxu0
    %v2419 = vpop.f32.mrf.mxu0
    %v2420 = vadd.f32 0.0, %v2419
    %v2421 = vpop.f32.mrf.mxu0
    %2422 = vdwg.mxu0
    %v2423 = vadd.f32 %v2259, %v2417
    %v2424 = vadd.f32 %v2260, %v2420
    %v2425 = vld [vmem:[#allocation13 + $0xa] sm:$0x1]
    %v2426 = vlaneseq
    %v2427 = vshrl.u32 %v2426, 7
    %v2428 = vsub.s32 0, %v2427
    %v2429 = vrot.slane %v2425, %v2428
    %v2430 = vadd.f32 %v2423, %v2429
    %v2431 = vadd.f32 %v2424, %v2429
    %v2432 = vld [vmem:[#allocation13 + $0xf] sm:$0x1]
    %v2433 = vld [vmem:[#allocation13 + $0x10] sm:$0x1]
    %v2434 = vsel %vm163, %v2430, 0.0
    %2435 = vadd.xlane.f32.xlu0 %v2434
    %v2436 = vpop.xlane.xlu0 %2435
    %v2437 = vsel %vm163, %v2431, 0.0
    %2438 = vadd.xlane.f32.xlu0 %v2437
    %v2439 = vpop.xlane.xlu0 %2438
    %v2440 = vmul.f32 %v2436, %v1402
    %v2441 = vmul.f32 %v2439, %v1402
    %v2442 = vsub.f32 %v2430, %v2440
    %v2443 = vsub.f32 %v2431, %v2441
    %v2444 = vmul.f32 %v2442, %v2442
    %v2445 = vmul.f32 %v2443, %v2443
    %v2446 = vsel %vm163, %v2444, 0.0
    %2447 = vadd.xlane.f32.xlu0 %v2446
    %v2448 = vpop.xlane.xlu0 %2447
    %v2449 = vsel %vm163, %v2445, 0.0
    %2450 = vadd.xlane.f32.xlu0 %v2449
    %v2451 = vpop.xlane.xlu0 %2450
    %v2452 = vmul.f32 %v2448, %v1402
    %v2453 = vmul.f32 %v2451, %v1402
    %v2454 = vadd.f32 %v2452, 1e-05
    %v2455 = vadd.f32 %v2453, 1e-05
    %v2456 = vrsqrt.pop %v2454
    %v2457 = vrsqrt.pop %v2455
    %v2458 = vmul.f32 %v2442, %v2456
    %v2459 = vmul.f32 %v2443, %v2457
    %v2460 = vlaneseq
    %v2461 = vshrl.u32 %v2460, 7
    %v2462 = vsub.s32 0, %v2461
    %v2463 = vrot.slane %v2432, %v2462
    %v2464 = vmul.f32 %v2458, %v2463
    %v2465 = vmul.f32 %v2459, %v2463
    %v2466 = vlaneseq
    %v2467 = vshrl.u32 %v2466, 7
    %v2468 = vsub.s32 0, %v2467
    %v2469 = vrot.slane %v2433, %v2468
    %v2470 = vadd.f32 %v2464, %v2469
    %v2471 = vadd.f32 %v2465, %v2469
    %2472 = vst.msk [vmem:[#allocation14] sm:$0xff] %vm163, %v2470
    %2473 = vst.msk [vmem:[#allocation14 + $0x8] sm:$0xff] %vm163, %v2471
    // Predicated region
    $region58: #{tpu_custom_call.1} parent=1 // pred_check
      _
    $region59: #{tpu_custom_call.1} parent=1 // pred_check_branch
      %2475 = sbr.rel (0) target = $region61
    $region60: #{tpu_custom_call.1} parent=1 // pred_region
      %s2477 = ssub.s32 256, 256
      %2478 = vsyncadd [#allocation4], %s2477
      %s2479 = sshll.u32 [#allocation14], 4
      %s2480 = int_to_ptr.vmem [resolvable:$true] %s2479
      %2485 = dma.vmem_to_hbm [thread:$0]  %s2480, 256, %s7, [#allocation4], 128, 128, 8
    $region61: #{tpu_custom_call.1} parent=1 // pred_fallthru
      _
    // Predicated region
    $region62: #{tpu_custom_call.1} parent=1 // pred_check
      _
    $region63: #{tpu_custom_call.1} parent=1 // pred_check_branch
      %2487 = sbr.rel (0) target = $region65
    $region64: #{tpu_custom_call.1} parent=1 // pred_region
      %s2489 = ssub.s32 256, 256
      %2490 = vsyncadd [#allocation16], %s2489
      %s2491 = sshll.u32 [#allocation15], 4
      %s2492 = int_to_ptr.vmem [resolvable:$true] %s2491
      %2497 = dma.vmem_to_hbm [thread:$0]  %s2492, 256, %s8, [#allocation16], 128, 128, 8
    $region65: #{tpu_custom_call.1} parent=1 // pred_fallthru
      _
    // Predicated region
    $region66: #{tpu_custom_call.1} parent=1 // pred_check
      _
    $region67: #{tpu_custom_call.1} parent=1 // pred_check_branch
      %2499 = sbr.rel (0) target = $region69
    $region68: #{tpu_custom_call.1} parent=1 // pred_region
      %s2501 = ssub.s32 256, 256
      %2502 = vsyncadd [#allocation16], %s2501
      %s2503 = sshll.u32 [#allocation17], 4
      %s2504 = int_to_ptr.vmem [resolvable:$true] %s2503
      %2509 = dma.vmem_to_hbm [thread:$0]  %s2504, 256, %s9, [#allocation16], 128, 128, 8
    $region69: #{tpu_custom_call.1} parent=1 // pred_fallthru
      _
    // Predicated region
    $region70: #{tpu_custom_call.1} parent=1 // pred_check
      _
    $region71: #{tpu_custom_call.1} parent=1 // pred_check_branch
      %2511 = sbr.rel (0) target = $region73
    $region72: #{tpu_custom_call.1} parent=1 // pred_region
      %s2513 = ssub.s32 256, 256
      %2514 = vsyncadd [#allocation19], %s2513
      %s2515 = sshll.u32 [#allocation18], 4
      %s2516 = int_to_ptr.vmem [resolvable:$true] %s2515
      %2521 = dma.vmem_to_hbm [thread:$0]  %s2516, 256, %s10, [#allocation19], 128, 128, 8
    $region73: #{tpu_custom_call.1} parent=1 // pred_fallthru
      _
    // Predicated region
    $region74: #{tpu_custom_call.1} parent=1 // pred_check
      _
    $region75: #{tpu_custom_call.1} parent=1 // pred_check_branch
      %2523 = sbr.rel (0) target = $region77
    $region76: #{tpu_custom_call.1} parent=1 // pred_region
      %s2525 = ssub.s32 256, 256
      %2526 = vsyncadd [#allocation19], %s2525
      %s2527 = sshll.u32 [#allocation20], 4
      %s2528 = int_to_ptr.vmem [resolvable:$true] %s2527
      %2533 = dma.vmem_to_hbm [thread:$0]  %s2528, 256, %s11, [#allocation19], 128, 128, 8
    $region77: #{tpu_custom_call.1} parent=1 // pred_fallthru
      _
    // Predicated region
    $region78: #{tpu_custom_call.1} parent=1 // pred_check
      _
    $region79: #{tpu_custom_call.1} parent=1 // pred_check_branch
      %2535 = sbr.rel (0) target = $region81
    $region80: #{tpu_custom_call.1} parent=1 // pred_region
      %s2537 = ssub.s32 512, 512
      %2538 = vsyncadd [#allocation22], %s2537
      %s2539 = sshll.u32 [#allocation21], 4
      %s2540 = int_to_ptr.vmem [resolvable:$true] %s2539
      %2545 = dma.vmem_to_hbm [thread:$0]  %s2540, 512, %s12, [#allocation22], 128, 128, 8
    $region81: #{tpu_custom_call.1} parent=1 // pred_fallthru
      _
    // Predicated region
    $region82: #{tpu_custom_call.1} parent=1 // pred_check
      _
    $region83: #{tpu_custom_call.1} parent=1 // pred_check_branch
      %2547 = sbr.rel (0) target = $region85
    $region84: #{tpu_custom_call.1} parent=1 // pred_region
      %s2549 = ssub.s32 512, 512
      %2550 = vsyncadd [#allocation22], %s2549
      %s2551 = sshll.u32 [#allocation23], 4
      %s2552 = int_to_ptr.vmem [resolvable:$true] %s2551
      %2557 = dma.vmem_to_hbm [thread:$0]  %s2552, 512, %s13, [#allocation22], 128, 128, 8
    $region85: #{tpu_custom_call.1} parent=1 // pred_fallthru
      _
    // Predicated region
    $region86: #{tpu_custom_call.1} parent=1 // pred_check
      _
    $region87: #{tpu_custom_call.1} parent=1 // pred_check_branch
      %2559 = sbr.rel (0) target = $region89
    $region88: #{tpu_custom_call.1} parent=1 // pred_region
      %2560 = dma.done [#allocation4], 256
    $region89: #{tpu_custom_call.1} parent=1 // pred_fallthru
      _
    // Predicated region
    $region90: #{tpu_custom_call.1} parent=1 // pred_check
      _
    $region91: #{tpu_custom_call.1} parent=1 // pred_check_branch
      %2562 = sbr.rel (0) target = $region93
    $region92: #{tpu_custom_call.1} parent=1 // pred_region
      %2563 = dma.done [#allocation16], 256
    $region93: #{tpu_custom_call.1} parent=1 // pred_fallthru
      _
    // Predicated region
    $region94: #{tpu_custom_call.1} parent=1 // pred_check
      _
    $region95: #{tpu_custom_call.1} parent=1 // pred_check_branch
      %2565 = sbr.rel (0) target = $region97
    $region96: #{tpu_custom_call.1} parent=1 // pred_region
      %2566 = dma.done [#allocation16], 256
    $region97: #{tpu_custom_call.1} parent=1 // pred_fallthru
      _
    // Predicated region
    $region98: #{tpu_custom_call.1} parent=1 // pred_check
      _
    $region99: #{tpu_custom_call.1} parent=1 // pred_check_branch
      %2568 = sbr.rel (0) target = $region101
    $region100: #{tpu_custom_call.1} parent=1 // pred_region
      %2569 = dma.done [#allocation19], 256
    $region101: #{tpu_custom_call.1} parent=1 // pred_fallthru
      _
    // Predicated region
    $region102: #{tpu_custom_call.1} parent=1 // pred_check
      _
    $region103: #{tpu_custom_call.1} parent=1 // pred_check_branch
      %2571 = sbr.rel (0) target = $region105
    $region104: #{tpu_custom_call.1} parent=1 // pred_region
      %2572 = dma.done [#allocation19], 256
    $region105: #{tpu_custom_call.1} parent=1 // pred_fallthru
      _
    // Predicated region
    $region106: #{tpu_custom_call.1} parent=1 // pred_check
      _
    $region107: #{tpu_custom_call.1} parent=1 // pred_check_branch
      %2574 = sbr.rel (0) target = $region109
    $region108: #{tpu_custom_call.1} parent=1 // pred_region
      %2575 = dma.done [#allocation22], 512
    $region109: #{tpu_custom_call.1} parent=1 // pred_fallthru
      _
    // Predicated region
    $region110: #{tpu_custom_call.1} parent=1 // pred_check
      _
    $region111: #{tpu_custom_call.1} parent=1 // pred_check_branch
      %2577 = sbr.rel (0) target = $region113
    $region112: #{tpu_custom_call.1} parent=1 // pred_region
      %2578 = dma.done [#allocation22], 512
    $region113: #{tpu_custom_call.1} parent=1 // pred_fallthru
      _
    %2579 = vsyncpa [#allocation3], 1
    %2580 = vsyncpa [#allocation6], 1
    %2581 = vsyncpa [#allocation9], 1
    %2582 = vsyncpa [#allocation12], 1
    %2583 = vsyncpa [#allocation4], 1
    %2584 = vsyncpa [#allocation16], 1
    %2585 = vsyncpa [#allocation19], 1
    %2586 = vsyncpa [#allocation22], 1

</llo_original>
